<compile_context>
chip_gen: v7x
topology: tpu7x:2x2x1
jax: 0.10.0
libtpu: 0.0.40
codegen_flags: <defaults>
</compile_context>

<pallas_src>
import jax
import jax.numpy as jnp
from jax import lax
from jax.experimental import pallas as pl
from jax.experimental.pallas import tpu as pltpu

_EPS = 1e-5
_SLACK = 8          # spare rows so the (ky=2,kx=2) tap view stays in bounds
_ROW_TILE = 1024    # row tile for the flattened (N*H*W, C) stages
# Matmul operand dtype.  Keep f32 so the strict demo tolerance holds; set to
# jnp.bfloat16 on v6e/v7x for ~2x MXU throughput (and loosen the tolerance).
_MXU_DTYPE = jnp.float32
_VMEM_LIMIT = 32 * 1024 * 1024   # explicit scoped-VMEM limit (fits v5e/v6e/v7x)


def _cparams(sem):
    return pltpu.CompilerParams(dimension_semantics=sem,
                                vmem_limit_bytes=_VMEM_LIMIT)


def _fold_bn(y2d, gamma, beta):
    """Global batch stats -> per-channel (scale, shift); kernels apply one FMA."""
    mean = jnp.mean(y2d, axis=0, keepdims=True)                      # (1, C)
    var = jnp.mean(jnp.square(y2d - mean), axis=0, keepdims=True)    # biased (torch)
    scale = gamma * lax.rsqrt(var + _EPS)
    shift = beta - mean * scale
    return scale, shift


# ---------------------------------------------------------------------------
# Stage kernels
# ---------------------------------------------------------------------------
def _conv1x1_kernel(x_ref, w_ref, o_ref):
    # (TM, Cin) @ (Cin, F1) -> pre-BN1 activations.
    o_ref[...] = jnp.dot(
        x_ref[...].astype(_MXU_DTYPE), w_ref[...].astype(_MXU_DTYPE),
        preferred_element_type=jnp.float32).astype(o_ref.dtype)


def _bn_relu_conv1x1_kernel(x_ref, s_ref, t_ref, w_ref, o_ref):
    # Folded BN (per-channel scale/shift) + ReLU fused into the 1x1 conv matmul.
    y = jnp.maximum(x_ref[...] * s_ref[...] + t_ref[...], 0.0)
    o_ref[...] = jnp.dot(
        y.astype(_MXU_DTYPE), w_ref[...].astype(_MXU_DTYPE),
        preferred_element_type=jnp.float32).astype(o_ref.dtype)


def _bn_add_relu_kernel(y_ref, s_ref, t_ref, x_ref, o_ref):
    # Folded BN3 + residual add + ReLU.  The shortcut x is re-read here from its
    # own HBM tile rather than being kept live across the whole block.
    o_ref[...] = jnp.maximum(
        y_ref[...] * s_ref[...] + t_ref[...] + x_ref[...], 0.0).astype(o_ref.dtype)


def _bn_relu_conv3x3_kernel(y_ref, s_ref, t_ref, w_ref, o_ref, pad_ref, col_ref):
    # One image per grid step: folded BN1 + ReLU, halo-only zero padding in a
    # flat (pixel-row, channel) scratch, im2col, single K=9*F1 MXU matmul.
    _, H, W, F1 = y_ref.shape
    F2 = o_ref.shape[-1]
    Wp = W + 2
    mrows = H * Wp   # conv runs at the padded row pitch; 2 junk cols/row dropped at the end

    # Folded BN1 + ReLU over the whole image (scale/shift precomputed outside).
    y = jnp.maximum(y_ref[0] * s_ref[...] + t_ref[...], 0.0)         # (H, W, F1)

    # Fill the flat padded scratch: row index = padded pixel in row-major order
    # over the (H+2)x(W+2) padded image, lanes = channels.  Zero only the halo;
    # the interior is stored once per image row (no full-buffer zero fill).
    zero_pair = jnp.zeros((2, F1), jnp.float32)
    pad_ref[0:Wp + 1, :] = jnp.zeros((Wp + 1, F1), jnp.float32)       # top row + left halo of row 1
    for p in range(1, H + 1):
        base = p * Wp
        pad_ref[base + 1:base + 1 + W, :] = y[p - 1]                  # interior of padded row p
        if p < H:
            # right halo of row p and left halo of row p+1 are adjacent flat rows
            pad_ref[base + W + 1:base + W + 3, :] = zero_pair
    bot = H * Wp + W + 1
    pr = pad_ref.shape[0]
    pad_ref[bot:pr, :] = jnp.zeros((pr - bot, F1), jnp.float32)       # right halo of row H + bottom row + slack

    # im2col: every tap is a contiguous sublane-offset view of the flat padded
    # image (no strided 4-D retile copies); taps are packed along K so the 3x3
    # conv is one MXU matmul with K = 9*F1.
    for ky in range(3):
        for kx in range(3):
            i = ky * 3 + kx
            off = ky * Wp + kx
            col_ref[:, i * F1:(i + 1) * F1] = pad_ref[off:off + mrows, :]

    acc = jnp.dot(col_ref[...].astype(_MXU_DTYPE), w_ref[...].astype(_MXU_DTYPE),
                  preferred_element_type=jnp.float32)                 # (mrows, F2)

    # Drop the 2 junk columns per row (single interior slice at the end).
    o_ref[...] = acc.reshape(H, Wp, F2)[:, :W, :].reshape(o_ref.shape).astype(o_ref.dtype)


# ---------------------------------------------------------------------------
# Wrapper
# ---------------------------------------------------------------------------
@jax.jit
def identity_block(x, w1, w2, w3, g1, b1, g2, b2, g3, b3):
    """NHWC forward. x:(N,H,W,Cin) w1:(Cin,F1) w2:(3,3,F1,F2) w3:(F2,F3), BN params (1,C)."""
    N, H, W, Cin = x.shape
    f = w2.shape[0]
    F1, F2, F3 = w1.shape[1], w2.shape[3], w3.shape[1]
    assert F3 == Cin, "residual add requires F3 == in_channels"
    assert f == 3, "torch padding=True means padding=1; 'same' spatial only for f=3"

    M = N * H * W
    tm = min(M, _ROW_TILE)
    gm = pl.cdiv(M, tm)
    x2d = x.reshape(M, Cin)

    row_spec = lambda c: pl.BlockSpec((tm, c), lambda i: (i, 0))
    full_spec = lambda a: pl.BlockSpec(a.shape, lambda i, n=a.ndim: (0,) * n)

    # ---- stage 1: 1x1 conv (pre-BN1), tiled & pipelined over rows ----------
    y1p = pl.pallas_call(
        _conv1x1_kernel,
        out_shape=jax.ShapeDtypeStruct((M, F1), jnp.float32),
        grid=(gm,),
        in_specs=[row_spec(Cin), full_spec(w1)],
        out_specs=row_spec(F1),
        compiler_params=_cparams(("parallel",)),
    )(x2d, w1)
    # BN needs global batch stats -> cheap XLA reduction, folded to scale/shift.
    s1, t1 = _fold_bn(y1p, g1, b1)

    # ---- stage 2: BN1+ReLU fused into the 3x3 conv (pre-BN2), per image ----
    w2_2d = w2.reshape(f * f * F1, F2)
    padrows = (H + 2) * (W + 2) + _SLACK
    y2p = pl.pallas_call(
        _bn_relu_conv3x3_kernel,
        out_shape=jax.ShapeDtypeStruct((N, H, W, F2), jnp.float32),
        grid=(N,),
        in_specs=[pl.BlockSpec((1, H, W, F1), lambda n: (n, 0, 0, 0)),
                  full_spec(s1), full_spec(t1), full_spec(w2_2d)],
        out_specs=pl.BlockSpec((1, H, W, F2), lambda n: (n, 0, 0, 0)),
        scratch_shapes=[pltpu.VMEM((padrows, F1), jnp.float32),
                        pltpu.VMEM((H * (W + 2), f * f * F1), jnp.float32)],
        compiler_params=_cparams(("parallel",)),
    )(y1p.reshape(N, H, W, F1), s1, t1, w2_2d)
    s2, t2 = _fold_bn(y2p.reshape(M, F2), g2, b2)

    # ---- stage 3: BN2+ReLU fused into the 1x1 conv (pre-BN3) ---------------
    y3p = pl.pallas_call(
        _bn_relu_conv1x1_kernel,
        out_shape=jax.ShapeDtypeStruct((M, F3), jnp.float32),
        grid=(gm,),
        in_specs=[row_spec(F2), full_spec(s2), full_spec(t2), full_spec(w3)],
        out_specs=row_spec(F3),
        compiler_params=_cparams(("parallel",)),
    )(y2p.reshape(M, F2), s2, t2, w3)
    s3, t3 = _fold_bn(y3p, g3, b3)

    # ---- stage 4: BN3 + residual add + ReLU --------------------------------
    out2d = pl.pallas_call(
        _bn_add_relu_kernel,
        out_shape=jax.ShapeDtypeStruct((M, F3), x.dtype),
        grid=(gm,),
        in_specs=[row_spec(F3), full_spec(s3), full_spec(t3), row_spec(F3)],
        out_specs=row_spec(F3),
        compiler_params=_cparams(("parallel",)),
    )(y3p, s3, t3, x2d)
    return out2d.reshape(N, H, W, F3)


# ---------------------------------------------------------------------------
# Pure-JAX reference (NHWC) mirroring the PyTorch forward semantics.
# ---------------------------------------------------------------------------
def ref_identity_block(x, w1, w2, w3, g1, b1, g2, b2, g3, b3):
    def bn(y, g, b):
        mean = jnp.mean(y, axis=(0, 1, 2), keepdims=True)
        var = jnp.mean((y - mean) ** 2, axis=(0, 1, 2), keepdims=True)
        return (y - mean) / jnp.sqrt(var + _EPS) * g.reshape(1, 1, 1, -1) \
            + b.reshape(1, 1, 1, -1)

    dn = ("NHWC", "HWIO", "NHWC")
    y = lax.conv_general_dilated(x, w1.reshape(1, 1, *w1.shape), (1, 1),
                                 "VALID", dimension_numbers=dn)
    y = jax.nn.relu(bn(y, g1, b1))
    y = lax.conv_general_dilated(y, w2, (1, 1), [(1, 1), (1, 1)],
                                 dimension_numbers=dn)
    y = jax.nn.relu(bn(y, g2, b2))
    y = lax.conv_general_dilated(y, w3.reshape(1, 1, *w3.shape), (1, 1),
                                 "VALID", dimension_numbers=dn)
    y = bn(y, g3, b3)
    return jax.nn.relu(y + x)


if __name__ == "__main__":
    key = jax.random.PRNGKey(0)
    N, H, W = 2, 16, 16
    in_channel, f = 4, 3
    F1, F2, F3 = 8, 8, in_channel   # F3 == in_channel so the residual add is valid

    ks = jax.random.split(key, 10)
    x = jax.random.normal(ks[0], (N, H, W, in_channel), jnp.float32)
    w1 = 0.2 * jax.random.normal(ks[1], (in_channel, F1), jnp.float32)
    w2 = 0.1 * jax.random.normal(ks[2], (f, f, F1, F2), jnp.float32)
    w3 = 0.2 * jax.random.normal(ks[3], (F2, F3), jnp.float32)
    g1 = 1.0 + 0.1 * jax.random.normal(ks[4], (1, F1), jnp.float32)
    b1 = 0.1 * jax.random.normal(ks[5], (1, F1), jnp.float32)
    g2 = 1.0 + 0.1 * jax.random.normal(ks[6], (1, F2), jnp.float32)
    b2 = 0.1 * jax.random.normal(ks[7], (1, F2), jnp.float32)
    g3 = 1.0 + 0.1 * jax.random.normal(ks[8], (1, F3), jnp.float32)
    b3 = 0.1 * jax.random.normal(ks[9], (1, F3), jnp.float32)

    out = identity_block(x, w1, w2, w3, g1, b1, g2, b2, g3, b3)
    out = jax.block_until_ready(out)

    ref = ref_identity_block(x, w1, w2, w3, g1, b1, g2, b2, g3, b3)
    ref = jax.block_until_ready(ref)

    err = float(jnp.max(jnp.abs(out - ref)))
    assert out.shape == (N, H, W, F3)
    assert jnp.allclose(out, ref, atol=2e-4, rtol=2e-4), f"max abs err {err}"
    print("KERNEL_OK")
</pallas_src>

<mosaic_0001>
module attributes {stable_mosaic.version = 11 : i64} {
  func.func @_conv1x1_kernel(%arg0: i32, %arg1: memref<512x4xf32, #tpu.memory_space<vmem>>, %arg2: memref<4x8xf32, #tpu.memory_space<vmem>>, %arg3: memref<512x8xf32, #tpu.memory_space<vmem>>) attributes {dimension_semantics = [#tpu.dimension_semantics<parallel>], iteration_bounds = array<i64: 1>, scalar_prefetch = 0 : i64, scratch_operands = 0 : i64, tpu.core_type = #tpu.core_type<tc>, window_params = [{transform_indices = @transform_0, window_bounds = array<i64: 512, 4>}, {pipeline_mode = #tpu.pipeline_mode<synchronous>, transform_indices = @transform_1, window_bounds = array<i64: 4, 8>}, {transform_indices = @transform_2, window_bounds = array<i64: 512, 8>}]} {
    %c0 = arith.constant 0 : index
    %c0_0 = arith.constant 0 : index
    %0 = vector.load %arg1[%c0, %c0_0] : memref<512x4xf32, #tpu.memory_space<vmem>>, vector<512x4xf32>
    %c0_1 = arith.constant 0 : index
    %c0_2 = arith.constant 0 : index
    %1 = vector.load %arg2[%c0_1, %c0_2] : memref<4x8xf32, #tpu.memory_space<vmem>>, vector<4x8xf32>
    %cst = arith.constant dense<0.000000e+00> : vector<512x8xf32>
    %2 = tpu.matmul %0, %1, %cst {dimension_numbers = #tpu.dot_dimension_numbers<[1], [0], [0], [1], [0, 0, 1, 1], [], []>} : vector<512x4xf32>, vector<4x8xf32>, vector<512x8xf32> -> vector<512x8xf32>
    %c0_3 = arith.constant 0 : index
    %c0_4 = arith.constant 0 : index
    %3 = vector.load %arg3[%c0_3, %c0_4] : memref<512x8xf32, #tpu.memory_space<vmem>>, vector<512x8xf32>
    tpu.vector_store %arg3[%c0_3, %c0_4], %2 {strides = array<i32>} : memref<512x8xf32, #tpu.memory_space<vmem>>, vector<512x8xf32>,
    return
  }
  func.func @transform_0(%arg0: i32) -> (i32, i32) {
    %c0_i32 = arith.constant 0 : i32
    %c0_i32_0 = arith.constant 0 : i32
    return %arg0, %c0_i32 : i32, i32
  }
  func.func @transform_1(%arg0: i32) -> (i32, i32) {
    %c0_i32 = arith.constant 0 : i32
    %c0_i32_0 = arith.constant 0 : i32
    %c0_i32_1 = arith.constant 0 : i32
    return %c0_i32, %c0_i32_0 : i32, i32
  }
  func.func @transform_2(%arg0: i32) -> (i32, i32) {
    %c0_i32 = arith.constant 0 : i32
    %c0_i32_0 = arith.constant 0 : i32
    return %arg0, %c0_i32 : i32, i32
  }
}

module attributes {stable_mosaic.version = 11 : i64} {
  func.func @_bn_relu_conv3x3_kernel(%arg0: i32, %arg1: memref<1x16x16x8xf32, #tpu.memory_space<vmem>>, %arg2: memref<1x8xf32, #tpu.memory_space<vmem>>, %arg3: memref<1x8xf32, #tpu.memory_space<vmem>>, %arg4: memref<72x8xf32, #tpu.memory_space<vmem>>, %arg5: memref<1x16x16x8xf32, #tpu.memory_space<vmem>>, %arg6: memref<332x8xf32, #tpu.memory_space<vmem>>, %arg7: memref<288x72xf32, #tpu.memory_space<vmem>>) attributes {dimension_semantics = [#tpu.dimension_semantics<parallel>], iteration_bounds = array<i64: 2>, scalar_prefetch = 0 : i64, scratch_operands = 2 : i64, tpu.core_type = #tpu.core_type<tc>, window_params = [{transform_indices = @transform_0, window_bounds = array<i64: 1, 16, 16, 8>}, {pipeline_mode = #tpu.pipeline_mode<synchronous>, transform_indices = @transform_1, window_bounds = array<i64: 1, 8>}, {pipeline_mode = #tpu.pipeline_mode<synchronous>, transform_indices = @transform_2, window_bounds = array<i64: 1, 8>}, {pipeline_mode = #tpu.pipeline_mode<synchronous>, transform_indices = @transform_3, window_bounds = array<i64: 72, 8>}, {transform_indices = @transform_4, window_bounds = array<i64: 1, 16, 16, 8>}]} {
    %c0 = arith.constant 0 : index
    %c0_0 = arith.constant 0 : index
    %c0_1 = arith.constant 0 : index
    %c0_2 = arith.constant 0 : index
    %0 = vector.load %arg1[%c0, %c0_0, %c0_1, %c0_2] : memref<1x16x16x8xf32, #tpu.memory_space<vmem>>, vector<1x16x16x8xf32>
    %1 = vector.shape_cast %0 : vector<1x16x16x8xf32> to vector<16x16x8xf32>
    %c0_3 = arith.constant 0 : index
    %c0_4 = arith.constant 0 : index
    %2 = vector.load %arg2[%c0_3, %c0_4] : memref<1x8xf32, #tpu.memory_space<vmem>>, vector<1x8xf32>
    %3 = vector.shape_cast %2 : vector<1x8xf32> to vector<1x1x8xf32>
    %4 = vector.broadcast %3 : vector<1x1x8xf32> to vector<16x16x8xf32>
    %5 = arith.mulf %1, %4 : vector<16x16x8xf32>
    %c0_5 = arith.constant 0 : index
    %c0_6 = arith.constant 0 : index
    %6 = vector.load %arg3[%c0_5, %c0_6] : memref<1x8xf32, #tpu.memory_space<vmem>>, vector<1x8xf32>
    %7 = vector.shape_cast %6 : vector<1x8xf32> to vector<1x1x8xf32>
    %8 = vector.broadcast %7 : vector<1x1x8xf32> to vector<16x16x8xf32>
    %9 = arith.addf %5, %8 : vector<16x16x8xf32>
    %cst = arith.constant 0.000000e+00 : f32
    %10 = vector.broadcast %cst : f32 to vector<16x16x8xf32>
    %11 = arith.maximumf %9, %10 : vector<16x16x8xf32>
    %cst_7 = arith.constant 0.000000e+00 : f32
    %12 = vector.broadcast %cst_7 : f32 to vector<2x8xf32>
    %cst_8 = arith.constant 0.000000e+00 : f32
    %13 = vector.broadcast %cst_8 : f32 to vector<19x8xf32>
    %c0_9 = arith.constant 0 : index
    %c0_10 = arith.constant 0 : index
    %14 = vector.load %arg6[%c0_9, %c0_10] : memref<332x8xf32, #tpu.memory_space<vmem>>, vector<19x8xf32>
    tpu.vector_store %arg6[%c0_9, %c0_10], %13 {strides = array<i32>} : memref<332x8xf32, #tpu.memory_space<vmem>>, vector<19x8xf32>,
    %15 = vector.extract_strided_slice %11 {offsets = [0, 0, 0], sizes = [1, 16, 8], strides = [1, 1, 1]} : vector<16x16x8xf32> to vector<1x16x8xf32>
    %16 = vector.shape_cast %15 : vector<1x16x8xf32> to vector<16x8xf32>
    %c19 = arith.constant 19 : index
    %c0_11 = arith.constant 0 : index
    %17 = vector.load %arg6[%c19, %c0_11] : memref<332x8xf32, #tpu.memory_space<vmem>>, vector<16x8xf32>
    tpu.vector_store %arg6[%c19, %c0_11], %16 {strides = array<i32>} : memref<332x8xf32, #tpu.memory_space<vmem>>, vector<16x8xf32>,
    %c35 = arith.constant 35 : index
    %c0_12 = arith.constant 0 : index
    %18 = vector.load %arg6[%c35, %c0_12] : memref<332x8xf32, #tpu.memory_space<vmem>>, vector<2x8xf32>
    tpu.vector_store %arg6[%c35, %c0_12], %12 {strides = array<i32>} : memref<332x8xf32, #tpu.memory_space<vmem>>, vector<2x8xf32>,
    %19 = vector.extract_strided_slice %11 {offsets = [1, 0, 0], sizes = [1, 16, 8], strides = [1, 1, 1]} : vector<16x16x8xf32> to vector<1x16x8xf32>
    %20 = vector.shape_cast %19 : vector<1x16x8xf32> to vector<16x8xf32>
    %c37 = arith.constant 37 : index
    %c0_13 = arith.constant 0 : index
    %21 = vector.load %arg6[%c37, %c0_13] : memref<332x8xf32, #tpu.memory_space<vmem>>, vector<16x8xf32>
    tpu.vector_store %arg6[%c37, %c0_13], %20 {strides = array<i32>} : memref<332x8xf32, #tpu.memory_space<vmem>>, vector<16x8xf32>,
    %c53 = arith.constant 53 : index
    %c0_14 = arith.constant 0 : index
    %22 = vector.load %arg6[%c53, %c0_14] : memref<332x8xf32, #tpu.memory_space<vmem>>, vector<2x8xf32>
    tpu.vector_store %arg6[%c53, %c0_14], %12 {strides = array<i32>} : memref<332x8xf32, #tpu.memory_space<vmem>>, vector<2x8xf32>,
    %23 = vector.extract_strided_slice %11 {offsets = [2, 0, 0], sizes = [1, 16, 8], strides = [1, 1, 1]} : vector<16x16x8xf32> to vector<1x16x8xf32>
    %24 = vector.shape_cast %23 : vector<1x16x8xf32> to vector<16x8xf32>
    %c55 = arith.constant 55 : index
    %c0_15 = arith.constant 0 : index
    %25 = vector.load %arg6[%c55, %c0_15] : memref<332x8xf32, #tpu.memory_space<vmem>>, vector<16x8xf32>
    tpu.vector_store %arg6[%c55, %c0_15], %24 {strides = array<i32>} : memref<332x8xf32, #tpu.memory_space<vmem>>, vector<16x8xf32>,
    %c71 = arith.constant 71 : index
    %c0_16 = arith.constant 0 : index
    %26 = vector.load %arg6[%c71, %c0_16] : memref<332x8xf32, #tpu.memory_space<vmem>>, vector<2x8xf32>
    tpu.vector_store %arg6[%c71, %c0_16], %12 {strides = array<i32>} : memref<332x8xf32, #tpu.memory_space<vmem>>, vector<2x8xf32>,
    %27 = vector.extract_strided_slice %11 {offsets = [3, 0, 0], sizes = [1, 16, 8], strides = [1, 1, 1]} : vector<16x16x8xf32> to vector<1x16x8xf32>
    %28 = vector.shape_cast %27 : vector<1x16x8xf32> to vector<16x8xf32>
    %c73 = arith.constant 73 : index
    %c0_17 = arith.constant 0 : index
    %29 = vector.load %arg6[%c73, %c0_17] : memref<332x8xf32, #tpu.memory_space<vmem>>, vector<16x8xf32>
    tpu.vector_store %arg6[%c73, %c0_17], %28 {strides = array<i32>} : memref<332x8xf32, #tpu.memory_space<vmem>>, vector<16x8xf32>,
    %c89 = arith.constant 89 : index
    %c0_18 = arith.constant 0 : index
    %30 = vector.load %arg6[%c89, %c0_18] : memref<332x8xf32, #tpu.memory_space<vmem>>, vector<2x8xf32>
    tpu.vector_store %arg6[%c89, %c0_18], %12 {strides = array<i32>} : memref<332x8xf32, #tpu.memory_space<vmem>>, vector<2x8xf32>,
    %31 = vector.extract_strided_slice %11 {offsets = [4, 0, 0], sizes = [1, 16, 8], strides = [1, 1, 1]} : vector<16x16x8xf32> to vector<1x16x8xf32>
    %32 = vector.shape_cast %31 : vector<1x16x8xf32> to vector<16x8xf32>
    %c91 = arith.constant 91 : index
    %c0_19 = arith.constant 0 : index
    %33 = vector.load %arg6[%c91, %c0_19] : memref<332x8xf32, #tpu.memory_space<vmem>>, vector<16x8xf32>
    tpu.vector_store %arg6[%c91, %c0_19], %32 {strides = array<i32>} : memref<332x8xf32, #tpu.memory_space<vmem>>, vector<16x8xf32>,
    %c107 = arith.constant 107 : index
    %c0_20 = arith.constant 0 : index
    %34 = vector.load %arg6[%c107, %c0_20] : memref<332x8xf32, #tpu.memory_space<vmem>>, vector<2x8xf32>
    tpu.vector_store %arg6[%c107, %c0_20], %12 {strides = array<i32>} : memref<332x8xf32, #tpu.memory_space<vmem>>, vector<2x8xf32>,
    %35 = vector.extract_strided_slice %11 {offsets = [5, 0, 0], sizes = [1, 16, 8], strides = [1, 1, 1]} : vector<16x16x8xf32> to vector<1x16x8xf32>
    %36 = vector.shape_cast %35 : vector<1x16x8xf32> to vector<16x8xf32>
    %c109 = arith.constant 109 : index
    %c0_21 = arith.constant 0 : index
    %37 = vector.load %arg6[%c109, %c0_21] : memref<332x8xf32, #tpu.memory_space<vmem>>, vector<16x8xf32>
    tpu.vector_store %arg6[%c109, %c0_21], %36 {strides = array<i32>} : memref<332x8xf32, #tpu.memory_space<vmem>>, vector<16x8xf32>,
    %c125 = arith.constant 125 : index
    %c0_22 = arith.constant 0 : index
    %38 = vector.load %arg6[%c125, %c0_22] : memref<332x8xf32, #tpu.memory_space<vmem>>, vector<2x8xf32>
    tpu.vector_store %arg6[%c125, %c0_22], %12 {strides = array<i32>} : memref<332x8xf32, #tpu.memory_space<vmem>>, vector<2x8xf32>,
    %39 = vector.extract_strided_slice %11 {offsets = [6, 0, 0], sizes = [1, 16, 8], strides = [1, 1, 1]} : vector<16x16x8xf32> to vector<1x16x8xf32>
    %40 = vector.shape_cast %39 : vector<1x16x8xf32> to vector<16x8xf32>
    %c127 = arith.constant 127 : index
    %c0_23 = arith.constant 0 : index
    %41 = vector.load %arg6[%c127, %c0_23] : memref<332x8xf32, #tpu.memory_space<vmem>>, vector<16x8xf32>
    tpu.vector_store %arg6[%c127, %c0_23], %40 {strides = array<i32>} : memref<332x8xf32, #tpu.memory_space<vmem>>, vector<16x8xf32>,
    %c143 = arith.constant 143 : index
    %c0_24 = arith.constant 0 : index
    %42 = vector.load %arg6[%c143, %c0_24] : memref<332x8xf32, #tpu.memory_space<vmem>>, vector<2x8xf32>
    tpu.vector_store %arg6[%c143, %c0_24], %12 {strides = array<i32>} : memref<332x8xf32, #tpu.memory_space<vmem>>, vector<2x8xf32>,
    %43 = vector.extract_strided_slice %11 {offsets = [7, 0, 0], sizes = [1, 16, 8], strides = [1, 1, 1]} : vector<16x16x8xf32> to vector<1x16x8xf32>
    %44 = vector.shape_cast %43 : vector<1x16x8xf32> to vector<16x8xf32>
    %c145 = arith.constant 145 : index
    %c0_25 = arith.constant 0 : index
    %45 = vector.load %arg6[%c145, %c0_25] : memref<332x8xf32, #tpu.memory_space<vmem>>, vector<16x8xf32>
    tpu.vector_store %arg6[%c145, %c0_25], %44 {strides = array<i32>} : memref<332x8xf32, #tpu.memory_space<vmem>>, vector<16x8xf32>,
    %c161 = arith.constant 161 : index
    %c0_26 = arith.constant 0 : index
    %46 = vector.load %arg6[%c161, %c0_26] : memref<332x8xf32, #tpu.memory_space<vmem>>, vector<2x8xf32>
    tpu.vector_store %arg6[%c161, %c0_26], %12 {strides = array<i32>} : memref<332x8xf32, #tpu.memory_space<vmem>>, vector<2x8xf32>,
    %47 = vector.extract_strided_slice %11 {offsets = [8, 0, 0], sizes = [1, 16, 8], strides = [1, 1, 1]} : vector<16x16x8xf32> to vector<1x16x8xf32>
    %48 = vector.shape_cast %47 : vector<1x16x8xf32> to vector<16x8xf32>
    %c163 = arith.constant 163 : index
    %c0_27 = arith.constant 0 : index
    %49 = vector.load %arg6[%c163, %c0_27] : memref<332x8xf32, #tpu.memory_space<vmem>>, vector<16x8xf32>
    tpu.vector_store %arg6[%c163, %c0_27], %48 {strides = array<i32>} : memref<332x8xf32, #tpu.memory_space<vmem>>, vector<16x8xf32>,
    %c179 = arith.constant 179 : index
    %c0_28 = arith.constant 0 : index
    %50 = vector.load %arg6[%c179, %c0_28] : memref<332x8xf32, #tpu.memory_space<vmem>>, vector<2x8xf32>
    tpu.vector_store %arg6[%c179, %c0_28], %12 {strides = array<i32>} : memref<332x8xf32, #tpu.memory_space<vmem>>, vector<2x8xf32>,
    %51 = vector.extract_strided_slice %11 {offsets = [9, 0, 0], sizes = [1, 16, 8], strides = [1, 1, 1]} : vector<16x16x8xf32> to vector<1x16x8xf32>
    %52 = vector.shape_cast %51 : vector<1x16x8xf32> to vector<16x8xf32>
    %c181 = arith.constant 181 : index
    %c0_29 = arith.constant 0 : index
    %53 = vector.load %arg6[%c181, %c0_29] : memref<332x8xf32, #tpu.memory_space<vmem>>, vector<16x8xf32>
    tpu.vector_store %arg6[%c181, %c0_29], %52 {strides = array<i32>} : memref<332x8xf32, #tpu.memory_space<vmem>>, vector<16x8xf32>,
    %c197 = arith.constant 197 : index
    %c0_30 = arith.constant 0 : index
    %54 = vector.load %arg6[%c197, %c0_30] : memref<332x8xf32, #tpu.memory_space<vmem>>, vector<2x8xf32>
    tpu.vector_store %arg6[%c197, %c0_30], %12 {strides = array<i32>} : memref<332x8xf32, #tpu.memory_space<vmem>>, vector<2x8xf32>,
    %55 = vector.extract_strided_slice %11 {offsets = [10, 0, 0], sizes = [1, 16, 8], strides = [1, 1, 1]} : vector<16x16x8xf32> to vector<1x16x8xf32>
    %56 = vector.shape_cast %55 : vector<1x16x8xf32> to vector<16x8xf32>
    %c199 = arith.constant 199 : index
    %c0_31 = arith.constant 0 : index
    %57 = vector.load %arg6[%c199, %c0_31] : memref<332x8xf32, #tpu.memory_space<vmem>>, vector<16x8xf32>
    tpu.vector_store %arg6[%c199, %c0_31], %56 {strides = array<i32>} : memref<332x8xf32, #tpu.memory_space<vmem>>, vector<16x8xf32>,
    %c215 = arith.constant 215 : index
    %c0_32 = arith.constant 0 : index
    %58 = vector.load %arg6[%c215, %c0_32] : memref<332x8xf32, #tpu.memory_space<vmem>>, vector<2x8xf32>
    tpu.vector_store %arg6[%c215, %c0_32], %12 {strides = array<i32>} : memref<332x8xf32, #tpu.memory_space<vmem>>, vector<2x8xf32>,
    %59 = vector.extract_strided_slice %11 {offsets = [11, 0, 0], sizes = [1, 16, 8], strides = [1, 1, 1]} : vector<16x16x8xf32> to vector<1x16x8xf32>
    %60 = vector.shape_cast %59 : vector<1x16x8xf32> to vector<16x8xf32>
    %c217 = arith.constant 217 : index
    %c0_33 = arith.constant 0 : index
    %61 = vector.load %arg6[%c217, %c0_33] : memref<332x8xf32, #tpu.memory_space<vmem>>, vector<16x8xf32>
    tpu.vector_store %arg6[%c217, %c0_33], %60 {strides = array<i32>} : memref<332x8xf32, #tpu.memory_space<vmem>>, vector<16x8xf32>,
    %c233 = arith.constant 233 : index
    %c0_34 = arith.constant 0 : index
    %62 = vector.load %arg6[%c233, %c0_34] : memref<332x8xf32, #tpu.memory_space<vmem>>, vector<2x8xf32>
    tpu.vector_store %arg6[%c233, %c0_34], %12 {strides = array<i32>} : memref<332x8xf32, #tpu.memory_space<vmem>>, vector<2x8xf32>,
    %63 = vector.extract_strided_slice %11 {offsets = [12, 0, 0], sizes = [1, 16, 8], strides = [1, 1, 1]} : vector<16x16x8xf32> to vector<1x16x8xf32>
    %64 = vector.shape_cast %63 : vector<1x16x8xf32> to vector<16x8xf32>
    %c235 = arith.constant 235 : index
    %c0_35 = arith.constant 0 : index
    %65 = vector.load %arg6[%c235, %c0_35] : memref<332x8xf32, #tpu.memory_space<vmem>>, vector<16x8xf32>
    tpu.vector_store %arg6[%c235, %c0_35], %64 {strides = array<i32>} : memref<332x8xf32, #tpu.memory_space<vmem>>, vector<16x8xf32>,
    %c251 = arith.constant 251 : index
    %c0_36 = arith.constant 0 : index
    %66 = vector.load %arg6[%c251, %c0_36] : memref<332x8xf32, #tpu.memory_space<vmem>>, vector<2x8xf32>
    tpu.vector_store %arg6[%c251, %c0_36], %12 {strides = array<i32>} : memref<332x8xf32, #tpu.memory_space<vmem>>, vector<2x8xf32>,
    %67 = vector.extract_strided_slice %11 {offsets = [13, 0, 0], sizes = [1, 16, 8], strides = [1, 1, 1]} : vector<16x16x8xf32> to vector<1x16x8xf32>
    %68 = vector.shape_cast %67 : vector<1x16x8xf32> to vector<16x8xf32>
    %c253 = arith.constant 253 : index
    %c0_37 = arith.constant 0 : index
    %69 = vector.load %arg6[%c253, %c0_37] : memref<332x8xf32, #tpu.memory_space<vmem>>, vector<16x8xf32>
    tpu.vector_store %arg6[%c253, %c0_37], %68 {strides = array<i32>} : memref<332x8xf32, #tpu.memory_space<vmem>>, vector<16x8xf32>,
    %c269 = arith.constant 269 : index
    %c0_38 = arith.constant 0 : index
    %70 = vector.load %arg6[%c269, %c0_38] : memref<332x8xf32, #tpu.memory_space<vmem>>, vector<2x8xf32>
    tpu.vector_store %arg6[%c269, %c0_38], %12 {strides = array<i32>} : memref<332x8xf32, #tpu.memory_space<vmem>>, vector<2x8xf32>,
    %71 = vector.extract_strided_slice %11 {offsets = [14, 0, 0], sizes = [1, 16, 8], strides = [1, 1, 1]} : vector<16x16x8xf32> to vector<1x16x8xf32>
    %72 = vector.shape_cast %71 : vector<1x16x8xf32> to vector<16x8xf32>
    %c271 = arith.constant 271 : index
    %c0_39 = arith.constant 0 : index
    %73 = vector.load %arg6[%c271, %c0_39] : memref<332x8xf32, #tpu.memory_space<vmem>>, vector<16x8xf32>
    tpu.vector_store %arg6[%c271, %c0_39], %72 {strides = array<i32>} : memref<332x8xf32, #tpu.memory_space<vmem>>, vector<16x8xf32>,
    %c287 = arith.constant 287 : index
    %c0_40 = arith.constant 0 : index
    %74 = vector.load %arg6[%c287, %c0_40] : memref<332x8xf32, #tpu.memory_space<vmem>>, vector<2x8xf32>
    tpu.vector_store %arg6[%c287, %c0_40], %12 {strides = array<i32>} : memref<332x8xf32, #tpu.memory_space<vmem>>, vector<2x8xf32>,
    %75 = vector.extract_strided_slice %11 {offsets = [15, 0, 0], sizes = [1, 16, 8], strides = [1, 1, 1]} : vector<16x16x8xf32> to vector<1x16x8xf32>
    %76 = vector.shape_cast %75 : vector<1x16x8xf32> to vector<16x8xf32>
    %c289 = arith.constant 289 : index
    %c0_41 = arith.constant 0 : index
    %77 = vector.load %arg6[%c289, %c0_41] : memref<332x8xf32, #tpu.memory_space<vmem>>, vector<16x8xf32>
    tpu.vector_store %arg6[%c289, %c0_41], %76 {strides = array<i32>} : memref<332x8xf32, #tpu.memory_space<vmem>>, vector<16x8xf32>,
    %cst_42 = arith.constant 0.000000e+00 : f32
    %78 = vector.broadcast %cst_42 : f32 to vector<27x8xf32>
    %c305 = arith.constant 305 : index
    %c0_43 = arith.constant 0 : index
    %79 = vector.load %arg6[%c305, %c0_43] : memref<332x8xf32, #tpu.memory_space<vmem>>, vector<27x8xf32>
    tpu.vector_store %arg6[%c305, %c0_43], %78 {strides = array<i32>} : memref<332x8xf32, #tpu.memory_space<vmem>>, vector<27x8xf32>,
    %c0_44 = arith.constant 0 : index
    %c0_45 = arith.constant 0 : index
    %80 = vector.load %arg6[%c0_44, %c0_45] : memref<332x8xf32, #tpu.memory_space<vmem>>, vector<288x8xf32>
    %c0_46 = arith.constant 0 : index
    %c0_47 = arith.constant 0 : index
    %81 = vector.load %arg7[%c0_46, %c0_47] : memref<288x72xf32, #tpu.memory_space<vmem>>, vector<288x8xf32>
    tpu.vector_store %arg7[%c0_46, %c0_47], %80 {strides = array<i32>} : memref<288x72xf32, #tpu.memory_space<vmem>>, vector<288x8xf32>,
    %c1 = arith.constant 1 : index
    %c0_48 = arith.constant 0 : index
    %82 = vector.load %arg6[%c1, %c0_48] : memref<332x8xf32, #tpu.memory_space<vmem>>, vector<288x8xf32>
    %c0_49 = arith.constant 0 : index
    %c8 = arith.constant 8 : index
    %83 = vector.load %arg7[%c0_49, %c8] : memref<288x72xf32, #tpu.memory_space<vmem>>, vector<288x8xf32>
    tpu.vector_store %arg7[%c0_49, %c8], %82 {strides = array<i32>} : memref<288x72xf32, #tpu.memory_space<vmem>>, vector<288x8xf32>,
    %c2 = arith.constant 2 : index
    %c0_50 = arith.constant 0 : index
    %84 = vector.load %arg6[%c2, %c0_50] : memref<332x8xf32, #tpu.memory_space<vmem>>, vector<288x8xf32>
    %c0_51 = arith.constant 0 : index
    %c16 = arith.constant 16 : index
    %85 = vector.load %arg7[%c0_51, %c16] : memref<288x72xf32, #tpu.memory_space<vmem>>, vector<288x8xf32>
    tpu.vector_store %arg7[%c0_51, %c16], %84 {strides = array<i32>} : memref<288x72xf32, #tpu.memory_space<vmem>>, vector<288x8xf32>,
    %c18 = arith.constant 18 : index
    %c0_52 = arith.constant 0 : index
    %86 = vector.load %arg6[%c18, %c0_52] : memref<332x8xf32, #tpu.memory_space<vmem>>, vector<288x8xf32>
    %c0_53 = arith.constant 0 : index
    %c24 = arith.constant 24 : index
    %87 = vector.load %arg7[%c0_53, %c24] : memref<288x72xf32, #tpu.memory_space<vmem>>, vector<288x8xf32>
    tpu.vector_store %arg7[%c0_53, %c24], %86 {strides = array<i32>} : memref<288x72xf32, #tpu.memory_space<vmem>>, vector<288x8xf32>,
    %c19_54 = arith.constant 19 : index
    %c0_55 = arith.constant 0 : index
    %88 = vector.load %arg6[%c19_54, %c0_55] : memref<332x8xf32, #tpu.memory_space<vmem>>, vector<288x8xf32>
    %c0_56 = arith.constant 0 : index
    %c32 = arith.constant 32 : index
    %89 = vector.load %arg7[%c0_56, %c32] : memref<288x72xf32, #tpu.memory_space<vmem>>, vector<288x8xf32>
    tpu.vector_store %arg7[%c0_56, %c32], %88 {strides = array<i32>} : memref<288x72xf32, #tpu.memory_space<vmem>>, vector<288x8xf32>,
    %c20 = arith.constant 20 : index
    %c0_57 = arith.constant 0 : index
    %90 = vector.load %arg6[%c20, %c0_57] : memref<332x8xf32, #tpu.memory_space<vmem>>, vector<288x8xf32>
    %c0_58 = arith.constant 0 : index
    %c40 = arith.constant 40 : index
    %91 = vector.load %arg7[%c0_58, %c40] : memref<288x72xf32, #tpu.memory_space<vmem>>, vector<288x8xf32>
    tpu.vector_store %arg7[%c0_58, %c40], %90 {strides = array<i32>} : memref<288x72xf32, #tpu.memory_space<vmem>>, vector<288x8xf32>,
    %c36 = arith.constant 36 : index
    %c0_59 = arith.constant 0 : index
    %92 = vector.load %arg6[%c36, %c0_59] : memref<332x8xf32, #tpu.memory_space<vmem>>, vector<288x8xf32>
    %c0_60 = arith.constant 0 : index
    %c48 = arith.constant 48 : index
    %93 = vector.load %arg7[%c0_60, %c48] : memref<288x72xf32, #tpu.memory_space<vmem>>, vector<288x8xf32>
    tpu.vector_store %arg7[%c0_60, %c48], %92 {strides = array<i32>} : memref<288x72xf32, #tpu.memory_space<vmem>>, vector<288x8xf32>,
    %c37_61 = arith.constant 37 : index
    %c0_62 = arith.constant 0 : index
    %94 = vector.load %arg6[%c37_61, %c0_62] : memref<332x8xf32, #tpu.memory_space<vmem>>, vector<288x8xf32>
    %c0_63 = arith.constant 0 : index
    %c56 = arith.constant 56 : index
    %95 = vector.load %arg7[%c0_63, %c56] : memref<288x72xf32, #tpu.memory_space<vmem>>, vector<288x8xf32>
    tpu.vector_store %arg7[%c0_63, %c56], %94 {strides = array<i32>} : memref<288x72xf32, #tpu.memory_space<vmem>>, vector<288x8xf32>,
    %c38 = arith.constant 38 : index
    %c0_64 = arith.constant 0 : index
    %96 = vector.load %arg6[%c38, %c0_64] : memref<332x8xf32, #tpu.memory_space<vmem>>, vector<288x8xf32>
    %c0_65 = arith.constant 0 : index
    %c64 = arith.constant 64 : index
    %97 = vector.load %arg7[%c0_65, %c64] : memref<288x72xf32, #tpu.memory_space<vmem>>, vector<288x8xf32>
    tpu.vector_store %arg7[%c0_65, %c64], %96 {strides = array<i32>} : memref<288x72xf32, #tpu.memory_space<vmem>>, vector<288x8xf32>,
    %c0_66 = arith.constant 0 : index
    %c0_67 = arith.constant 0 : index
    %98 = vector.load %arg7[%c0_66, %c0_67] : memref<288x72xf32, #tpu.memory_space<vmem>>, vector<288x72xf32>
    %c0_68 = arith.constant 0 : index
    %c0_69 = arith.constant 0 : index
    %99 = vector.load %arg4[%c0_68, %c0_69] : memref<72x8xf32, #tpu.memory_space<vmem>>, vector<72x8xf32>
    %cst_70 = arith.constant dense<0.000000e+00> : vector<288x8xf32>
    %100 = tpu.matmul %98, %99, %cst_70 {dimension_numbers = #tpu.dot_dimension_numbers<[1], [0], [0], [1], [0, 0, 1, 1], [], []>} : vector<288x72xf32>, vector<72x8xf32>, vector<288x8xf32> -> vector<288x8xf32>
    %101 = vector.shape_cast %100 : vector<288x8xf32> to vector<16x18x8xf32>
    %102 = vector.extract_strided_slice %101 {offsets = [0, 0, 0], sizes = [16, 16, 8], strides = [1, 1, 1]} : vector<16x18x8xf32> to vector<16x16x8xf32>
    %103 = vector.shape_cast %102 : vector<16x16x8xf32> to vector<1x16x16x8xf32>
    %c0_71 = arith.constant 0 : index
    %c0_72 = arith.constant 0 : index
    %c0_73 = arith.constant 0 : index
    %c0_74 = arith.constant 0 : index
    %104 = vector.load %arg5[%c0_71, %c0_72, %c0_73, %c0_74] : memref<1x16x16x8xf32, #tpu.memory_space<vmem>>, vector<1x16x16x8xf32>
    tpu.vector_store %arg5[%c0_71, %c0_72, %c0_73, %c0_74], %103 {strides = array<i32>} : memref<1x16x16x8xf32, #tpu.memory_space<vmem>>, vector<1x16x16x8xf32>,
    return
  }
  func.func @transform_0(%arg0: i32) -> (i32, i32, i32, i32) {
    %c0_i32 = arith.constant 0 : i32
    %c0_i32_0 = arith.constant 0 : i32
    %c0_i32_1 = arith.constant 0 : i32
    %c0_i32_2 = arith.constant 0 : i32
    return %arg0, %c0_i32, %c0_i32_0, %c0_i32_1 : i32, i32, i32, i32
  }
  func.func @transform_1(%arg0: i32) -> (i32, i32) {
    %c0_i32 = arith.constant 0 : i32
    %c0_i32_0 = arith.constant 0 : i32
    %c0_i32_1 = arith.constant 0 : i32
    return %c0_i32, %c0_i32_0 : i32, i32
  }
  func.func @transform_2(%arg0: i32) -> (i32, i32) {
    %c0_i32 = arith.constant 0 : i32
    %c0_i32_0 = arith.constant 0 : i32
    %c0_i32_1 = arith.constant 0 : i32
    return %c0_i32, %c0_i32_0 : i32, i32
  }
  func.func @transform_3(%arg0: i32) -> (i32, i32) {
    %c0_i32 = arith.constant 0 : i32
    %c0_i32_0 = arith.constant 0 : i32
    %c0_i32_1 = arith.constant 0 : i32
    return %c0_i32, %c0_i32_0 : i32, i32
  }
  func.func @transform_4(%arg0: i32) -> (i32, i32, i32, i32) {
    %c0_i32 = arith.constant 0 : i32
    %c0_i32_0 = arith.constant 0 : i32
    %c0_i32_1 = arith.constant 0 : i32
    %c0_i32_2 = arith.constant 0 : i32
    return %arg0, %c0_i32, %c0_i32_0, %c0_i32_1 : i32, i32, i32, i32
  }
}

module attributes {stable_mosaic.version = 11 : i64} {
  func.func @_bn_relu_conv1x1_kernel(%arg0: i32, %arg1: memref<512x8xf32, #tpu.memory_space<vmem>>, %arg2: memref<1x8xf32, #tpu.memory_space<vmem>>, %arg3: memref<1x8xf32, #tpu.memory_space<vmem>>, %arg4: memref<8x4xf32, #tpu.memory_space<vmem>>, %arg5: memref<512x4xf32, #tpu.memory_space<vmem>>) attributes {dimension_semantics = [#tpu.dimension_semantics<parallel>], iteration_bounds = array<i64: 1>, scalar_prefetch = 0 : i64, scratch_operands = 0 : i64, tpu.core_type = #tpu.core_type<tc>, window_params = [{transform_indices = @transform_0, window_bounds = array<i64: 512, 8>}, {pipeline_mode = #tpu.pipeline_mode<synchronous>, transform_indices = @transform_1, window_bounds = array<i64: 1, 8>}, {pipeline_mode = #tpu.pipeline_mode<synchronous>, transform_indices = @transform_2, window_bounds = array<i64: 1, 8>}, {pipeline_mode = #tpu.pipeline_mode<synchronous>, transform_indices = @transform_3, window_bounds = array<i64: 8, 4>}, {transform_indices = @transform_4, window_bounds = array<i64: 512, 4>}]} {
    %c0 = arith.constant 0 : index
    %c0_0 = arith.constant 0 : index
    %0 = vector.load %arg1[%c0, %c0_0] : memref<512x8xf32, #tpu.memory_space<vmem>>, vector<512x8xf32>
    %c0_1 = arith.constant 0 : index
    %c0_2 = arith.constant 0 : index
    %1 = vector.load %arg2[%c0_1, %c0_2] : memref<1x8xf32, #tpu.memory_space<vmem>>, vector<1x8xf32>
    %2 = vector.broadcast %1 : vector<1x8xf32> to vector<512x8xf32>
    %3 = arith.mulf %0, %2 : vector<512x8xf32>
    %c0_3 = arith.constant 0 : index
    %c0_4 = arith.constant 0 : index
    %4 = vector.load %arg3[%c0_3, %c0_4] : memref<1x8xf32, #tpu.memory_space<vmem>>, vector<1x8xf32>
    %5 = vector.broadcast %4 : vector<1x8xf32> to vector<512x8xf32>
    %6 = arith.addf %3, %5 : vector<512x8xf32>
    %cst = arith.constant 0.000000e+00 : f32
    %7 = vector.broadcast %cst : f32 to vector<512x8xf32>
    %8 = arith.maximumf %6, %7 : vector<512x8xf32>
    %c0_5 = arith.constant 0 : index
    %c0_6 = arith.constant 0 : index
    %9 = vector.load %arg4[%c0_5, %c0_6] : memref<8x4xf32, #tpu.memory_space<vmem>>, vector<8x4xf32>
    %cst_7 = arith.constant dense<0.000000e+00> : vector<512x4xf32>
    %10 = tpu.matmul %8, %9, %cst_7 {dimension_numbers = #tpu.dot_dimension_numbers<[1], [0], [0], [1], [0, 0, 1, 1], [], []>} : vector<512x8xf32>, vector<8x4xf32>, vector<512x4xf32> -> vector<512x4xf32>
    %c0_8 = arith.constant 0 : index
    %c0_9 = arith.constant 0 : index
    %11 = vector.load %arg5[%c0_8, %c0_9] : memref<512x4xf32, #tpu.memory_space<vmem>>, vector<512x4xf32>
    tpu.vector_store %arg5[%c0_8, %c0_9], %10 {strides = array<i32>} : memref<512x4xf32, #tpu.memory_space<vmem>>, vector<512x4xf32>,
    return
  }
  func.func @transform_0(%arg0: i32) -> (i32, i32) {
    %c0_i32 = arith.constant 0 : i32
    %c0_i32_0 = arith.constant 0 : i32
    return %arg0, %c0_i32 : i32, i32
  }
  func.func @transform_1(%arg0: i32) -> (i32, i32) {
    %c0_i32 = arith.constant 0 : i32
    %c0_i32_0 = arith.constant 0 : i32
    %c0_i32_1 = arith.constant 0 : i32
    return %c0_i32, %c0_i32_0 : i32, i32
  }
  func.func @transform_2(%arg0: i32) -> (i32, i32) {
    %c0_i32 = arith.constant 0 : i32
    %c0_i32_0 = arith.constant 0 : i32
    %c0_i32_1 = arith.constant 0 : i32
    return %c0_i32, %c0_i32_0 : i32, i32
  }
  func.func @transform_3(%arg0: i32) -> (i32, i32) {
    %c0_i32 = arith.constant 0 : i32
    %c0_i32_0 = arith.constant 0 : i32
    %c0_i32_1 = arith.constant 0 : i32
    return %c0_i32, %c0_i32_0 : i32, i32
  }
  func.func @transform_4(%arg0: i32) -> (i32, i32) {
    %c0_i32 = arith.constant 0 : i32
    %c0_i32_0 = arith.constant 0 : i32
    return %arg0, %c0_i32 : i32, i32
  }
}

module attributes {stable_mosaic.version = 11 : i64} {
  func.func @_bn_add_relu_kernel(%arg0: i32, %arg1: memref<512x4xf32, #tpu.memory_space<vmem>>, %arg2: memref<1x4xf32, #tpu.memory_space<vmem>>, %arg3: memref<1x4xf32, #tpu.memory_space<vmem>>, %arg4: memref<512x4xf32, #tpu.memory_space<vmem>>, %arg5: memref<512x4xf32, #tpu.memory_space<vmem>>) attributes {dimension_semantics = [#tpu.dimension_semantics<parallel>], iteration_bounds = array<i64: 1>, scalar_prefetch = 0 : i64, scratch_operands = 0 : i64, tpu.core_type = #tpu.core_type<tc>, window_params = [{transform_indices = @transform_0, window_bounds = array<i64: 512, 4>}, {pipeline_mode = #tpu.pipeline_mode<synchronous>, transform_indices = @transform_1, window_bounds = array<i64: 1, 4>}, {pipeline_mode = #tpu.pipeline_mode<synchronous>, transform_indices = @transform_2, window_bounds = array<i64: 1, 4>}, {transform_indices = @transform_3, window_bounds = array<i64: 512, 4>}, {transform_indices = @transform_4, window_bounds = array<i64: 512, 4>}]} {
    %c0 = arith.constant 0 : index
    %c0_0 = arith.constant 0 : index
    %0 = vector.load %arg1[%c0, %c0_0] : memref<512x4xf32, #tpu.memory_space<vmem>>, vector<512x4xf32>
    %c0_1 = arith.constant 0 : index
    %c0_2 = arith.constant 0 : index
    %1 = vector.load %arg2[%c0_1, %c0_2] : memref<1x4xf32, #tpu.memory_space<vmem>>, vector<1x4xf32>
    %2 = vector.broadcast %1 : vector<1x4xf32> to vector<512x4xf32>
    %3 = arith.mulf %0, %2 : vector<512x4xf32>
    %c0_3 = arith.constant 0 : index
    %c0_4 = arith.constant 0 : index
    %4 = vector.load %arg3[%c0_3, %c0_4] : memref<1x4xf32, #tpu.memory_space<vmem>>, vector<1x4xf32>
    %5 = vector.broadcast %4 : vector<1x4xf32> to vector<512x4xf32>
    %6 = arith.addf %3, %5 : vector<512x4xf32>
    %c0_5 = arith.constant 0 : index
    %c0_6 = arith.constant 0 : index
    %7 = vector.load %arg4[%c0_5, %c0_6] : memref<512x4xf32, #tpu.memory_space<vmem>>, vector<512x4xf32>
    %8 = arith.addf %6, %7 : vector<512x4xf32>
    %cst = arith.constant 0.000000e+00 : f32
    %9 = vector.broadcast %cst : f32 to vector<512x4xf32>
    %10 = arith.maximumf %8, %9 : vector<512x4xf32>
    %c0_7 = arith.constant 0 : index
    %c0_8 = arith.constant 0 : index
    %11 = vector.load %arg5[%c0_7, %c0_8] : memref<512x4xf32, #tpu.memory_space<vmem>>, vector<512x4xf32>
    tpu.vector_store %arg5[%c0_7, %c0_8], %10 {strides = array<i32>} : memref<512x4xf32, #tpu.memory_space<vmem>>, vector<512x4xf32>,
    return
  }
  func.func @transform_0(%arg0: i32) -> (i32, i32) {
    %c0_i32 = arith.constant 0 : i32
    %c0_i32_0 = arith.constant 0 : i32
    return %arg0, %c0_i32 : i32, i32
  }
  func.func @transform_1(%arg0: i32) -> (i32, i32) {
    %c0_i32 = arith.constant 0 : i32
    %c0_i32_0 = arith.constant 0 : i32
    %c0_i32_1 = arith.constant 0 : i32
    return %c0_i32, %c0_i32_0 : i32, i32
  }
  func.func @transform_2(%arg0: i32) -> (i32, i32) {
    %c0_i32 = arith.constant 0 : i32
    %c0_i32_0 = arith.constant 0 : i32
    %c0_i32_1 = arith.constant 0 : i32
    return %c0_i32, %c0_i32_0 : i32, i32
  }
  func.func @transform_3(%arg0: i32) -> (i32, i32) {
    %c0_i32 = arith.constant 0 : i32
    %c0_i32_0 = arith.constant 0 : i32
    return %arg0, %c0_i32 : i32, i32
  }
  func.func @transform_4(%arg0: i32) -> (i32, i32) {
    %c0_i32 = arith.constant 0 : i32
    %c0_i32_0 = arith.constant 0 : i32
    return %arg0, %c0_i32 : i32, i32
  }
}

</mosaic_0001>

<llo_original>
// kernel: identity_block.4
$region0: #{identity_block.4}
  #allocation0 [shape = 'u32[]', space=smem, size = 0x4, offset = 0x4, fixed_abs, tag = 'smem constant byte address 0x4 - core index']
  #allocation1 [shape = 'u32[144,128]{1,0:T(1,128)}', space=vmem, size = 0x12000, scoped, tag = 'internal scratch']
  %s0 = inlined_call_operand.vmem [shape: f32[512,4], index: 0, kind: input, shape index: {}]
  %s1 = inlined_call_operand.vmem [shape: f32[4,8], index: 1, kind: input, shape index: {}]
  %s2 = inlined_call_operand.vmem [shape: f32[512,8], index: 2, kind: output, shape index: {}]
  %s3 = sld [smem:[#allocation0]]
  $region18: #{identity_block.4} parent=0
    _
  %s5 = ssub.s32 1, %s3
  %s6 = scalar_select 0, %s5, %s3
  // Predicated region
  $region2: #{identity_block.4} parent=0 // pred_check
    _
  $region3: #{identity_block.4} parent=0 // pred_check_branch
    %8 = sbr.rel (0) target = $region5
  $region4: #{identity_block.4} parent=0 // pred_region
    _
  $region5: #{identity_block.4} parent=0 // pred_fallthru
    _
  // Predicated region
  $region6: #{identity_block.4} parent=0 // pred_check
    _
  $region7: #{identity_block.4} parent=0 // pred_check_branch
    %10 = sbr.rel (0) target = $region9
  $region8: #{identity_block.4} parent=0 // pred_region
    _
  $region9: #{identity_block.4} parent=0 // pred_fallthru
    _
  %v11 = vld [vmem:[%s0] sm:$0xff]
  %v12 = vld [vmem:[%s0 + $0x8] sm:$0xff]
  %v13 = vld [vmem:[%s0 + $0x10] sm:$0xff]
  %v14 = vld [vmem:[%s0 + $0x18] sm:$0xff]
  %v15 = vld [vmem:[%s0 + $0x20] sm:$0xff]
  %v16 = vld [vmem:[%s0 + $0x28] sm:$0xff]
  %v17 = vld [vmem:[%s0 + $0x30] sm:$0xff]
  %v18 = vld [vmem:[%s0 + $0x38] sm:$0xff]
  %v19 = vld [vmem:[%s0 + $0x40] sm:$0xff]
  %v20 = vld [vmem:[%s0 + $0x48] sm:$0xff]
  %v21 = vld [vmem:[%s0 + $0x50] sm:$0xff]
  %v22 = vld [vmem:[%s0 + $0x58] sm:$0xff]
  %v23 = vld [vmem:[%s0 + $0x60] sm:$0xff]
  %v24 = vld [vmem:[%s0 + $0x68] sm:$0xff]
  %v25 = vld [vmem:[%s0 + $0x70] sm:$0xff]
  %v26 = vld [vmem:[%s0 + $0x78] sm:$0xff]
  %v27 = vld [vmem:[%s0 + $0x80] sm:$0xff]
  %v28 = vld [vmem:[%s0 + $0x88] sm:$0xff]
  %v29 = vld [vmem:[%s0 + $0x90] sm:$0xff]
  %v30 = vld [vmem:[%s0 + $0x98] sm:$0xff]
  %v31 = vld [vmem:[%s0 + $0xa0] sm:$0xff]
  %v32 = vld [vmem:[%s0 + $0xa8] sm:$0xff]
  %v33 = vld [vmem:[%s0 + $0xb0] sm:$0xff]
  %v34 = vld [vmem:[%s0 + $0xb8] sm:$0xff]
  %v35 = vld [vmem:[%s0 + $0xc0] sm:$0xff]
  %v36 = vld [vmem:[%s0 + $0xc8] sm:$0xff]
  %v37 = vld [vmem:[%s0 + $0xd0] sm:$0xff]
  %v38 = vld [vmem:[%s0 + $0xd8] sm:$0xff]
  %v39 = vld [vmem:[%s0 + $0xe0] sm:$0xff]
  %v40 = vld [vmem:[%s0 + $0xe8] sm:$0xff]
  %v41 = vld [vmem:[%s0 + $0xf0] sm:$0xff]
  %v42 = vld [vmem:[%s0 + $0xf8] sm:$0xff]
  %v43 = vld [vmem:[%s0 + $0x100] sm:$0xff]
  %v44 = vld [vmem:[%s0 + $0x108] sm:$0xff]
  %v45 = vld [vmem:[%s0 + $0x110] sm:$0xff]
  %v46 = vld [vmem:[%s0 + $0x118] sm:$0xff]
  %v47 = vld [vmem:[%s0 + $0x120] sm:$0xff]
  %v48 = vld [vmem:[%s0 + $0x128] sm:$0xff]
  %v49 = vld [vmem:[%s0 + $0x130] sm:$0xff]
  %v50 = vld [vmem:[%s0 + $0x138] sm:$0xff]
  %v51 = vld [vmem:[%s0 + $0x140] sm:$0xff]
  %v52 = vld [vmem:[%s0 + $0x148] sm:$0xff]
  %v53 = vld [vmem:[%s0 + $0x150] sm:$0xff]
  %v54 = vld [vmem:[%s0 + $0x158] sm:$0xff]
  %v55 = vld [vmem:[%s0 + $0x160] sm:$0xff]
  %v56 = vld [vmem:[%s0 + $0x168] sm:$0xff]
  %v57 = vld [vmem:[%s0 + $0x170] sm:$0xff]
  %v58 = vld [vmem:[%s0 + $0x178] sm:$0xff]
  %v59 = vld [vmem:[%s0 + $0x180] sm:$0xff]
  %v60 = vld [vmem:[%s0 + $0x188] sm:$0xff]
  %v61 = vld [vmem:[%s0 + $0x190] sm:$0xff]
  %v62 = vld [vmem:[%s0 + $0x198] sm:$0xff]
  %v63 = vld [vmem:[%s0 + $0x1a0] sm:$0xff]
  %v64 = vld [vmem:[%s0 + $0x1a8] sm:$0xff]
  %v65 = vld [vmem:[%s0 + $0x1b0] sm:$0xff]
  %v66 = vld [vmem:[%s0 + $0x1b8] sm:$0xff]
  %v67 = vld [vmem:[%s0 + $0x1c0] sm:$0xff]
  %v68 = vld [vmem:[%s0 + $0x1c8] sm:$0xff]
  %v69 = vld [vmem:[%s0 + $0x1d0] sm:$0xff]
  %v70 = vld [vmem:[%s0 + $0x1d8] sm:$0xff]
  %v71 = vld [vmem:[%s0 + $0x1e0] sm:$0xff]
  %v72 = vld [vmem:[%s0 + $0x1e8] sm:$0xff]
  %v73 = vld [vmem:[%s0 + $0x1f0] sm:$0xff]
  %v74 = vld [vmem:[%s0 + $0x1f8] sm:$0xff]
  %v75 = vld [vmem:[%s1] sm:$0xf]
  %vm76 = vcmask 31744
  %v78 = vsel %vm76, %v11, 0
  %v81 = vsel %vm76, %v12, 0
  %v84 = vsel %vm76, %v13, 0
  %v87 = vsel %vm76, %v14, 0
  %v90 = vsel %vm76, %v15, 0
  %v93 = vsel %vm76, %v16, 0
  %v96 = vsel %vm76, %v17, 0
  %v99 = vsel %vm76, %v18, 0
  %v102 = vsel %vm76, %v19, 0
  %v105 = vsel %vm76, %v20, 0
  %v108 = vsel %vm76, %v21, 0
  %v111 = vsel %vm76, %v22, 0
  %v114 = vsel %vm76, %v23, 0
  %v117 = vsel %vm76, %v24, 0
  %v120 = vsel %vm76, %v25, 0
  %v123 = vsel %vm76, %v26, 0
  %v126 = vsel %vm76, %v27, 0
  %v129 = vsel %vm76, %v28, 0
  %v132 = vsel %vm76, %v29, 0
  %v135 = vsel %vm76, %v30, 0
  %v138 = vsel %vm76, %v31, 0
  %v141 = vsel %vm76, %v32, 0
  %v144 = vsel %vm76, %v33, 0
  %v147 = vsel %vm76, %v34, 0
  %v150 = vsel %vm76, %v35, 0
  %v153 = vsel %vm76, %v36, 0
  %v156 = vsel %vm76, %v37, 0
  %v159 = vsel %vm76, %v38, 0
  %v162 = vsel %vm76, %v39, 0
  %v165 = vsel %vm76, %v40, 0
  %v168 = vsel %vm76, %v41, 0
  %v171 = vsel %vm76, %v42, 0
  %v174 = vsel %vm76, %v43, 0
  %v177 = vsel %vm76, %v44, 0
  %v180 = vsel %vm76, %v45, 0
  %v183 = vsel %vm76, %v46, 0
  %v186 = vsel %vm76, %v47, 0
  %v189 = vsel %vm76, %v48, 0
  %v192 = vsel %vm76, %v49, 0
  %v195 = vsel %vm76, %v50, 0
  %v198 = vsel %vm76, %v51, 0
  %v201 = vsel %vm76, %v52, 0
  %v204 = vsel %vm76, %v53, 0
  %v207 = vsel %vm76, %v54, 0
  %v210 = vsel %vm76, %v55, 0
  %v213 = vsel %vm76, %v56, 0
  %v216 = vsel %vm76, %v57, 0
  %v219 = vsel %vm76, %v58, 0
  %v222 = vsel %vm76, %v59, 0
  %v225 = vsel %vm76, %v60, 0
  %v228 = vsel %vm76, %v61, 0
  %v231 = vsel %vm76, %v62, 0
  %v234 = vsel %vm76, %v63, 0
  %v237 = vsel %vm76, %v64, 0
  %v240 = vsel %vm76, %v65, 0
  %v243 = vsel %vm76, %v66, 0
  %v246 = vsel %vm76, %v67, 0
  %v249 = vsel %vm76, %v68, 0
  %v252 = vsel %vm76, %v69, 0
  %v255 = vsel %vm76, %v70, 0
  %v258 = vsel %vm76, %v71, 0
  %v261 = vsel %vm76, %v72, 0
  %v264 = vsel %vm76, %v73, 0
  %v267 = vsel %vm76, %v74, 0
  %vm269 = vcmask 1043456
  %v271 = vsel %vm269, %v75, 0
  %273 = vmatprep.subr.mxu0 0.0
  %274 = vmatpush1.msra.mxu0 %v271
  %275 = vmatprep.subr.mxu0 0.0
  %276 = vmatpush1.msra.mxu0 0.0
  %277 = vmatprep.subr.mxu0 0.0
  %278 = vmatpush1.msra.mxu0 0.0
  %279 = vmatprep.subr.mxu0 0.0
  %280 = vmatpush1.msra.mxu0 0.0
  %281 = vmatprep.subr.mxu0 0.0
  %282 = vmatpush1.msra.mxu0 0.0
  %283 = vmatprep.subr.mxu0 0.0
  %284 = vmatpush1.msra.mxu0 0.0
  %285 = vmatprep.subr.mxu0 0.0
  %286 = vmatpush1.msra.mxu0 0.0
  %287 = vmatprep.subr.mxu0 0.0
  %288 = vmatpush1.msra.mxu0 0.0
  %289 = vmatprep.subr.mxu0 0.0
  %290 = vmatpush1.msra.mxu0 0.0
  %291 = vmatprep.subr.mxu0 0.0
  %292 = vmatpush1.msra.mxu0 0.0
  %293 = vmatprep.subr.mxu0 0.0
  %294 = vmatpush1.msra.mxu0 0.0
  %295 = vmatprep.subr.mxu0 0.0
  %296 = vmatpush1.msra.mxu0 0.0
  %297 = vmatprep.subr.mxu0 0.0
  %298 = vmatpush1.msra.mxu0 0.0
  %299 = vmatprep.subr.mxu0 0.0
  %300 = vmatpush1.msra.mxu0 0.0
  %301 = vmatprep.subr.mxu0 0.0
  %302 = vmatpush1.msra.mxu0 0.0
  %303 = vmatprep.subr.mxu0 0.0
  %304 = vmatpush1.msra.mxu0 0.0
  %305 = vmatprep.subr.mxu0 0.0
  %306 = vmatpush1.msra.mxu0 0.0
  %307 = vmatprep.subr.mxu0 0.0
  %308 = vmatpush1.msra.mxu0 0.0
  %309 = vmatprep.subr.mxu0 0.0
  %310 = vmatpush1.msra.mxu0 0.0
  %311 = vmatprep.subr.mxu0 0.0
  %312 = vmatpush1.msra.mxu0 0.0
  %313 = vmatprep.subr.mxu0 0.0
  %314 = vmatpush1.msra.mxu0 0.0
  %315 = vmatprep.subr.mxu0 0.0
  %316 = vmatpush1.msra.mxu0 0.0
  %317 = vmatprep.subr.mxu0 0.0
  %318 = vmatpush1.msra.mxu0 0.0
  %319 = vmatprep.subr.mxu0 0.0
  %320 = vmatpush1.msra.mxu0 0.0
  %321 = vmatprep.subr.mxu0 0.0
  %322 = vmatpush1.msra.mxu0 0.0
  %323 = vmatprep.subr.mxu0 0.0
  %324 = vmatpush1.msra.mxu0 0.0
  %325 = vmatprep.subr.mxu0 0.0
  %326 = vmatpush1.msra.mxu0 0.0
  %327 = vmatprep.subr.mxu0 0.0
  %328 = vmatpush1.msra.mxu0 0.0
  %329 = vmatprep.subr.mxu0 0.0
  %330 = vmatpush1.msra.mxu0 0.0
  %331 = vmatprep.subr.mxu0 0.0
  %332 = vmatpush1.msra.mxu0 0.0
  %333 = vmatprep.subr.mxu0 0.0
  %334 = vmatpush1.msra.mxu0 0.0
  %335 = vmatprep.subr.mxu0 0.0
  %336 = vmatpush1.msra.mxu0 0.0
  %337 = vmatprep.mubr.f32.mxu0 0.0
  %338 = vmatmul.mubr.f32.gmra.mrb[0].mxu0 %v78
  %v339 = vpop.f32.mrb[0].mxu0
  %v340 = vadd.f32 0.0, %v339
  %v341 = vpop.f32.mrb[0].mxu0
  %342 = vmatprep.mubr.f32.mxu0 0.0
  %343 = vmatmul.mubr.f32.gmra.mrb[0].mxu0 %v81
  %v344 = vpop.f32.mrb[0].mxu0
  %v345 = vadd.f32 0.0, %v344
  %v346 = vpop.f32.mrb[0].mxu0
  %347 = vmatprep.mubr.f32.mxu0 0.0
  %348 = vmatmul.mubr.f32.gmra.mrb[0].mxu0 %v84
  %v349 = vpop.f32.mrb[0].mxu0
  %v350 = vadd.f32 0.0, %v349
  %v351 = vpop.f32.mrb[0].mxu0
  %352 = vmatprep.mubr.f32.mxu0 0.0
  %353 = vmatmul.mubr.f32.gmra.mrb[0].mxu0 %v87
  %v354 = vpop.f32.mrb[0].mxu0
  %v355 = vadd.f32 0.0, %v354
  %v356 = vpop.f32.mrb[0].mxu0
  %357 = vmatprep.mubr.f32.mxu0 0.0
  %358 = vmatmul.mubr.f32.gmra.mrb[0].mxu0 %v90
  %v359 = vpop.f32.mrb[0].mxu0
  %v360 = vadd.f32 0.0, %v359
  %v361 = vpop.f32.mrb[0].mxu0
  %362 = vmatprep.mubr.f32.mxu0 0.0
  %363 = vmatmul.mubr.f32.gmra.mrb[0].mxu0 %v93
  %v364 = vpop.f32.mrb[0].mxu0
  %v365 = vadd.f32 0.0, %v364
  %v366 = vpop.f32.mrb[0].mxu0
  %367 = vmatprep.mubr.f32.mxu0 0.0
  %368 = vmatmul.mubr.f32.gmra.mrb[0].mxu0 %v96
  %v369 = vpop.f32.mrb[0].mxu0
  %v370 = vadd.f32 0.0, %v369
  %v371 = vpop.f32.mrb[0].mxu0
  %372 = vmatprep.mubr.f32.mxu0 0.0
  %373 = vmatmul.mubr.f32.gmra.mrb[0].mxu0 %v99
  %v374 = vpop.f32.mrb[0].mxu0
  %v375 = vadd.f32 0.0, %v374
  %v376 = vpop.f32.mrb[0].mxu0
  %377 = vmatprep.mubr.f32.mxu0 0.0
  %378 = vmatmul.mubr.f32.gmra.mrb[0].mxu0 %v102
  %v379 = vpop.f32.mrb[0].mxu0
  %v380 = vadd.f32 0.0, %v379
  %v381 = vpop.f32.mrb[0].mxu0
  %382 = vmatprep.mubr.f32.mxu0 0.0
  %383 = vmatmul.mubr.f32.gmra.mrb[0].mxu0 %v105
  %v384 = vpop.f32.mrb[0].mxu0
  %v385 = vadd.f32 0.0, %v384
  %v386 = vpop.f32.mrb[0].mxu0
  %387 = vmatprep.mubr.f32.mxu0 0.0
  %388 = vmatmul.mubr.f32.gmra.mrb[0].mxu0 %v108
  %v389 = vpop.f32.mrb[0].mxu0
  %v390 = vadd.f32 0.0, %v389
  %v391 = vpop.f32.mrb[0].mxu0
  %392 = vmatprep.mubr.f32.mxu0 0.0
  %393 = vmatmul.mubr.f32.gmra.mrb[0].mxu0 %v111
  %v394 = vpop.f32.mrb[0].mxu0
  %v395 = vadd.f32 0.0, %v394
  %v396 = vpop.f32.mrb[0].mxu0
  %397 = vmatprep.mubr.f32.mxu0 0.0
  %398 = vmatmul.mubr.f32.gmra.mrb[0].mxu0 %v114
  %v399 = vpop.f32.mrb[0].mxu0
  %v400 = vadd.f32 0.0, %v399
  %v401 = vpop.f32.mrb[0].mxu0
  %402 = vmatprep.mubr.f32.mxu0 0.0
  %403 = vmatmul.mubr.f32.gmra.mrb[0].mxu0 %v117
  %v404 = vpop.f32.mrb[0].mxu0
  %v405 = vadd.f32 0.0, %v404
  %v406 = vpop.f32.mrb[0].mxu0
  %407 = vmatprep.mubr.f32.mxu0 0.0
  %408 = vmatmul.mubr.f32.gmra.mrb[0].mxu0 %v120
  %v409 = vpop.f32.mrb[0].mxu0
  %v410 = vadd.f32 0.0, %v409
  %v411 = vpop.f32.mrb[0].mxu0
  %412 = vmatprep.mubr.f32.mxu0 0.0
  %413 = vmatmul.mubr.f32.gmra.mrb[0].mxu0 %v123
  %v414 = vpop.f32.mrb[0].mxu0
  %v415 = vadd.f32 0.0, %v414
  %v416 = vpop.f32.mrb[0].mxu0
  %417 = vmatprep.mubr.f32.mxu0 0.0
  %418 = vmatmul.mubr.f32.gmra.mrb[0].mxu0 %v126
  %v419 = vpop.f32.mrb[0].mxu0
  %v420 = vadd.f32 0.0, %v419
  %v421 = vpop.f32.mrb[0].mxu0
  %422 = vmatprep.mubr.f32.mxu0 0.0
  %423 = vmatmul.mubr.f32.gmra.mrb[0].mxu0 %v129
  %v424 = vpop.f32.mrb[0].mxu0
  %v425 = vadd.f32 0.0, %v424
  %v426 = vpop.f32.mrb[0].mxu0
  %427 = vmatprep.mubr.f32.mxu0 0.0
  %428 = vmatmul.mubr.f32.gmra.mrb[0].mxu0 %v132
  %v429 = vpop.f32.mrb[0].mxu0
  %v430 = vadd.f32 0.0, %v429
  %v431 = vpop.f32.mrb[0].mxu0
  %432 = vmatprep.mubr.f32.mxu0 0.0
  %433 = vmatmul.mubr.f32.gmra.mrb[0].mxu0 %v135
  %v434 = vpop.f32.mrb[0].mxu0
  %v435 = vadd.f32 0.0, %v434
  %v436 = vpop.f32.mrb[0].mxu0
  %437 = vmatprep.mubr.f32.mxu0 0.0
  %438 = vmatmul.mubr.f32.gmra.mrb[0].mxu0 %v138
  %v439 = vpop.f32.mrb[0].mxu0
  %v440 = vadd.f32 0.0, %v439
  %v441 = vpop.f32.mrb[0].mxu0
  %442 = vmatprep.mubr.f32.mxu0 0.0
  %443 = vmatmul.mubr.f32.gmra.mrb[0].mxu0 %v141
  %v444 = vpop.f32.mrb[0].mxu0
  %v445 = vadd.f32 0.0, %v444
  %v446 = vpop.f32.mrb[0].mxu0
  %447 = vmatprep.mubr.f32.mxu0 0.0
  %448 = vmatmul.mubr.f32.gmra.mrb[0].mxu0 %v144
  %v449 = vpop.f32.mrb[0].mxu0
  %v450 = vadd.f32 0.0, %v449
  %v451 = vpop.f32.mrb[0].mxu0
  %452 = vmatprep.mubr.f32.mxu0 0.0
  %453 = vmatmul.mubr.f32.gmra.mrb[0].mxu0 %v147
  %v454 = vpop.f32.mrb[0].mxu0
  %v455 = vadd.f32 0.0, %v454
  %v456 = vpop.f32.mrb[0].mxu0
  %457 = vmatprep.mubr.f32.mxu0 0.0
  %458 = vmatmul.mubr.f32.gmra.mrb[0].mxu0 %v150
  %v459 = vpop.f32.mrb[0].mxu0
  %v460 = vadd.f32 0.0, %v459
  %v461 = vpop.f32.mrb[0].mxu0
  %462 = vmatprep.mubr.f32.mxu0 0.0
  %463 = vmatmul.mubr.f32.gmra.mrb[0].mxu0 %v153
  %v464 = vpop.f32.mrb[0].mxu0
  %v465 = vadd.f32 0.0, %v464
  %v466 = vpop.f32.mrb[0].mxu0
  %467 = vmatprep.mubr.f32.mxu0 0.0
  %468 = vmatmul.mubr.f32.gmra.mrb[0].mxu0 %v156
  %v469 = vpop.f32.mrb[0].mxu0
  %v470 = vadd.f32 0.0, %v469
  %v471 = vpop.f32.mrb[0].mxu0
  %472 = vmatprep.mubr.f32.mxu0 0.0
  %473 = vmatmul.mubr.f32.gmra.mrb[0].mxu0 %v159
  %v474 = vpop.f32.mrb[0].mxu0
  %v475 = vadd.f32 0.0, %v474
  %v476 = vpop.f32.mrb[0].mxu0
  %477 = vmatprep.mubr.f32.mxu0 0.0
  %478 = vmatmul.mubr.f32.gmra.mrb[0].mxu0 %v162
  %v479 = vpop.f32.mrb[0].mxu0
  %v480 = vadd.f32 0.0, %v479
  %v481 = vpop.f32.mrb[0].mxu0
  %482 = vmatprep.mubr.f32.mxu0 0.0
  %483 = vmatmul.mubr.f32.gmra.mrb[0].mxu0 %v165
  %v484 = vpop.f32.mrb[0].mxu0
  %v485 = vadd.f32 0.0, %v484
  %v486 = vpop.f32.mrb[0].mxu0
  %487 = vmatprep.mubr.f32.mxu0 0.0
  %488 = vmatmul.mubr.f32.gmra.mrb[0].mxu0 %v168
  %v489 = vpop.f32.mrb[0].mxu0
  %v490 = vadd.f32 0.0, %v489
  %v491 = vpop.f32.mrb[0].mxu0
  %492 = vmatprep.mubr.f32.mxu0 0.0
  %493 = vmatmul.mubr.f32.gmra.mrb[0].mxu0 %v171
  %v494 = vpop.f32.mrb[0].mxu0
  %v495 = vadd.f32 0.0, %v494
  %v496 = vpop.f32.mrb[0].mxu0
  %497 = vmatprep.mubr.f32.mxu0 0.0
  %498 = vmatmul.mubr.f32.gmra.mrb[0].mxu0 %v174
  %v499 = vpop.f32.mrb[0].mxu0
  %v500 = vadd.f32 0.0, %v499
  %v501 = vpop.f32.mrb[0].mxu0
  %502 = vmatprep.mubr.f32.mxu0 0.0
  %503 = vmatmul.mubr.f32.gmra.mrb[0].mxu0 %v177
  %v504 = vpop.f32.mrb[0].mxu0
  %v505 = vadd.f32 0.0, %v504
  %v506 = vpop.f32.mrb[0].mxu0
  %507 = vmatprep.mubr.f32.mxu0 0.0
  %508 = vmatmul.mubr.f32.gmra.mrb[0].mxu0 %v180
  %v509 = vpop.f32.mrb[0].mxu0
  %v510 = vadd.f32 0.0, %v509
  %v511 = vpop.f32.mrb[0].mxu0
  %512 = vmatprep.mubr.f32.mxu0 0.0
  %513 = vmatmul.mubr.f32.gmra.mrb[0].mxu0 %v183
  %v514 = vpop.f32.mrb[0].mxu0
  %v515 = vadd.f32 0.0, %v514
  %v516 = vpop.f32.mrb[0].mxu0
  %517 = vmatprep.mubr.f32.mxu0 0.0
  %518 = vmatmul.mubr.f32.gmra.mrb[0].mxu0 %v186
  %v519 = vpop.f32.mrb[0].mxu0
  %v520 = vadd.f32 0.0, %v519
  %v521 = vpop.f32.mrb[0].mxu0
  %522 = vmatprep.mubr.f32.mxu0 0.0
  %523 = vmatmul.mubr.f32.gmra.mrb[0].mxu0 %v189
  %v524 = vpop.f32.mrb[0].mxu0
  %v525 = vadd.f32 0.0, %v524
  %v526 = vpop.f32.mrb[0].mxu0
  %527 = vmatprep.mubr.f32.mxu0 0.0
  %528 = vmatmul.mubr.f32.gmra.mrb[0].mxu0 %v192
  %v529 = vpop.f32.mrb[0].mxu0
  %v530 = vadd.f32 0.0, %v529
  %v531 = vpop.f32.mrb[0].mxu0
  %532 = vmatprep.mubr.f32.mxu0 0.0
  %533 = vmatmul.mubr.f32.gmra.mrb[0].mxu0 %v195
  %v534 = vpop.f32.mrb[0].mxu0
  %v535 = vadd.f32 0.0, %v534
  %v536 = vpop.f32.mrb[0].mxu0
  %537 = vmatprep.mubr.f32.mxu0 0.0
  %538 = vmatmul.mubr.f32.gmra.mrb[0].mxu0 %v198
  %v539 = vpop.f32.mrb[0].mxu0
  %v540 = vadd.f32 0.0, %v539
  %v541 = vpop.f32.mrb[0].mxu0
  %542 = vmatprep.mubr.f32.mxu0 0.0
  %543 = vmatmul.mubr.f32.gmra.mrb[0].mxu0 %v201
  %v544 = vpop.f32.mrb[0].mxu0
  %v545 = vadd.f32 0.0, %v544
  %v546 = vpop.f32.mrb[0].mxu0
  %547 = vmatprep.mubr.f32.mxu0 0.0
  %548 = vmatmul.mubr.f32.gmra.mrb[0].mxu0 %v204
  %v549 = vpop.f32.mrb[0].mxu0
  %v550 = vadd.f32 0.0, %v549
  %v551 = vpop.f32.mrb[0].mxu0
  %552 = vmatprep.mubr.f32.mxu0 0.0
  %553 = vmatmul.mubr.f32.gmra.mrb[0].mxu0 %v207
  %v554 = vpop.f32.mrb[0].mxu0
  %v555 = vadd.f32 0.0, %v554
  %v556 = vpop.f32.mrb[0].mxu0
  %557 = vmatprep.mubr.f32.mxu0 0.0
  %558 = vmatmul.mubr.f32.gmra.mrb[0].mxu0 %v210
  %v559 = vpop.f32.mrb[0].mxu0
  %v560 = vadd.f32 0.0, %v559
  %v561 = vpop.f32.mrb[0].mxu0
  %562 = vmatprep.mubr.f32.mxu0 0.0
  %563 = vmatmul.mubr.f32.gmra.mrb[0].mxu0 %v213
  %v564 = vpop.f32.mrb[0].mxu0
  %v565 = vadd.f32 0.0, %v564
  %v566 = vpop.f32.mrb[0].mxu0
  %567 = vmatprep.mubr.f32.mxu0 0.0
  %568 = vmatmul.mubr.f32.gmra.mrb[0].mxu0 %v216
  %v569 = vpop.f32.mrb[0].mxu0
  %v570 = vadd.f32 0.0, %v569
  %v571 = vpop.f32.mrb[0].mxu0
  %572 = vmatprep.mubr.f32.mxu0 0.0
  %573 = vmatmul.mubr.f32.gmra.mrb[0].mxu0 %v219
  %v574 = vpop.f32.mrb[0].mxu0
  %v575 = vadd.f32 0.0, %v574
  %v576 = vpop.f32.mrb[0].mxu0
  %577 = vmatprep.mubr.f32.mxu0 0.0
  %578 = vmatmul.mubr.f32.gmra.mrb[0].mxu0 %v222
  %v579 = vpop.f32.mrb[0].mxu0
  %v580 = vadd.f32 0.0, %v579
  %v581 = vpop.f32.mrb[0].mxu0
  %582 = vmatprep.mubr.f32.mxu0 0.0
  %583 = vmatmul.mubr.f32.gmra.mrb[0].mxu0 %v225
  %v584 = vpop.f32.mrb[0].mxu0
  %v585 = vadd.f32 0.0, %v584
  %v586 = vpop.f32.mrb[0].mxu0
  %587 = vmatprep.mubr.f32.mxu0 0.0
  %588 = vmatmul.mubr.f32.gmra.mrb[0].mxu0 %v228
  %v589 = vpop.f32.mrb[0].mxu0
  %v590 = vadd.f32 0.0, %v589
  %v591 = vpop.f32.mrb[0].mxu0
  %592 = vmatprep.mubr.f32.mxu0 0.0
  %593 = vmatmul.mubr.f32.gmra.mrb[0].mxu0 %v231
  %v594 = vpop.f32.mrb[0].mxu0
  %v595 = vadd.f32 0.0, %v594
  %v596 = vpop.f32.mrb[0].mxu0
  %597 = vmatprep.mubr.f32.mxu0 0.0
  %598 = vmatmul.mubr.f32.gmra.mrb[0].mxu0 %v234
  %v599 = vpop.f32.mrb[0].mxu0
  %v600 = vadd.f32 0.0, %v599
  %v601 = vpop.f32.mrb[0].mxu0
  %602 = vmatprep.mubr.f32.mxu0 0.0
  %603 = vmatmul.mubr.f32.gmra.mrb[0].mxu0 %v237
  %v604 = vpop.f32.mrb[0].mxu0
  %v605 = vadd.f32 0.0, %v604
  %v606 = vpop.f32.mrb[0].mxu0
  %607 = vmatprep.mubr.f32.mxu0 0.0
  %608 = vmatmul.mubr.f32.gmra.mrb[0].mxu0 %v240
  %v609 = vpop.f32.mrb[0].mxu0
  %v610 = vadd.f32 0.0, %v609
  %v611 = vpop.f32.mrb[0].mxu0
  %612 = vmatprep.mubr.f32.mxu0 0.0
  %613 = vmatmul.mubr.f32.gmra.mrb[0].mxu0 %v243
  %v614 = vpop.f32.mrb[0].mxu0
  %v615 = vadd.f32 0.0, %v614
  %v616 = vpop.f32.mrb[0].mxu0
  %617 = vmatprep.mubr.f32.mxu0 0.0
  %618 = vmatmul.mubr.f32.gmra.mrb[0].mxu0 %v246
  %v619 = vpop.f32.mrb[0].mxu0
  %v620 = vadd.f32 0.0, %v619
  %v621 = vpop.f32.mrb[0].mxu0
  %622 = vmatprep.mubr.f32.mxu0 0.0
  %623 = vmatmul.mubr.f32.gmra.mrb[0].mxu0 %v249
  %v624 = vpop.f32.mrb[0].mxu0
  %v625 = vadd.f32 0.0, %v624
  %v626 = vpop.f32.mrb[0].mxu0
  %627 = vmatprep.mubr.f32.mxu0 0.0
  %628 = vmatmul.mubr.f32.gmra.mrb[0].mxu0 %v252
  %v629 = vpop.f32.mrb[0].mxu0
  %v630 = vadd.f32 0.0, %v629
  %v631 = vpop.f32.mrb[0].mxu0
  %632 = vmatprep.mubr.f32.mxu0 0.0
  %633 = vmatmul.mubr.f32.gmra.mrb[0].mxu0 %v255
  %v634 = vpop.f32.mrb[0].mxu0
  %v635 = vadd.f32 0.0, %v634
  %v636 = vpop.f32.mrb[0].mxu0
  %637 = vmatprep.mubr.f32.mxu0 0.0
  %638 = vmatmul.mubr.f32.gmra.mrb[0].mxu0 %v258
  %v639 = vpop.f32.mrb[0].mxu0
  %v640 = vadd.f32 0.0, %v639
  %v641 = vpop.f32.mrb[0].mxu0
  %642 = vmatprep.mubr.f32.mxu0 0.0
  %643 = vmatmul.mubr.f32.gmra.mrb[0].mxu0 %v261
  %v644 = vpop.f32.mrb[0].mxu0
  %v645 = vadd.f32 0.0, %v644
  %v646 = vpop.f32.mrb[0].mxu0
  %647 = vmatprep.mubr.f32.mxu0 0.0
  %648 = vmatmul.mubr.f32.gmra.mrb[0].mxu0 %v264
  %v649 = vpop.f32.mrb[0].mxu0
  %v650 = vadd.f32 0.0, %v649
  %v651 = vpop.f32.mrb[0].mxu0
  %652 = vmatprep.mubr.f32.mxu0 0.0
  %653 = vmatmul.mubr.f32.gmra.mrb[0].mxu0 %v267
  %v654 = vpop.f32.mrb[0].mxu0
  %v655 = vadd.f32 0.0, %v654
  %v656 = vpop.f32.mrb[0].mxu0
  %657 = vdwg.mxu0
  %vm658 = vcmask 64512
  %659 = vst.msk [vmem:[%s2] sm:$0xff] %vm658, %v340
  %660 = vst.msk [vmem:[%s2 + $0x8] sm:$0xff] %vm658, %v345
  %661 = vst.msk [vmem:[%s2 + $0x10] sm:$0xff] %vm658, %v350
  %662 = vst.msk [vmem:[%s2 + $0x18] sm:$0xff] %vm658, %v355
  %663 = vst.msk [vmem:[%s2 + $0x20] sm:$0xff] %vm658, %v360
  %664 = vst.msk [vmem:[%s2 + $0x28] sm:$0xff] %vm658, %v365
  %665 = vst.msk [vmem:[%s2 + $0x30] sm:$0xff] %vm658, %v370
  %666 = vst.msk [vmem:[%s2 + $0x38] sm:$0xff] %vm658, %v375
  %667 = vst.msk [vmem:[%s2 + $0x40] sm:$0xff] %vm658, %v380
  %668 = vst.msk [vmem:[%s2 + $0x48] sm:$0xff] %vm658, %v385
  %669 = vst.msk [vmem:[%s2 + $0x50] sm:$0xff] %vm658, %v390
  %670 = vst.msk [vmem:[%s2 + $0x58] sm:$0xff] %vm658, %v395
  %671 = vst.msk [vmem:[%s2 + $0x60] sm:$0xff] %vm658, %v400
  %672 = vst.msk [vmem:[%s2 + $0x68] sm:$0xff] %vm658, %v405
  %673 = vst.msk [vmem:[%s2 + $0x70] sm:$0xff] %vm658, %v410
  %674 = vst.msk [vmem:[%s2 + $0x78] sm:$0xff] %vm658, %v415
  %675 = vst.msk [vmem:[%s2 + $0x80] sm:$0xff] %vm658, %v420
  %676 = vst.msk [vmem:[%s2 + $0x88] sm:$0xff] %vm658, %v425
  %677 = vst.msk [vmem:[%s2 + $0x90] sm:$0xff] %vm658, %v430
  %678 = vst.msk [vmem:[%s2 + $0x98] sm:$0xff] %vm658, %v435
  %679 = vst.msk [vmem:[%s2 + $0xa0] sm:$0xff] %vm658, %v440
  %680 = vst.msk [vmem:[%s2 + $0xa8] sm:$0xff] %vm658, %v445
  %681 = vst.msk [vmem:[%s2 + $0xb0] sm:$0xff] %vm658, %v450
  %682 = vst.msk [vmem:[%s2 + $0xb8] sm:$0xff] %vm658, %v455
  %683 = vst.msk [vmem:[%s2 + $0xc0] sm:$0xff] %vm658, %v460
  %684 = vst.msk [vmem:[%s2 + $0xc8] sm:$0xff] %vm658, %v465
  %685 = vst.msk [vmem:[%s2 + $0xd0] sm:$0xff] %vm658, %v470
  %686 = vst.msk [vmem:[%s2 + $0xd8] sm:$0xff] %vm658, %v475
  %687 = vst.msk [vmem:[%s2 + $0xe0] sm:$0xff] %vm658, %v480
  %688 = vst.msk [vmem:[%s2 + $0xe8] sm:$0xff] %vm658, %v485
  %689 = vst.msk [vmem:[%s2 + $0xf0] sm:$0xff] %vm658, %v490
  %690 = vst.msk [vmem:[%s2 + $0xf8] sm:$0xff] %vm658, %v495
  %691 = vst.msk [vmem:[%s2 + $0x100] sm:$0xff] %vm658, %v500
  %692 = vst.msk [vmem:[%s2 + $0x108] sm:$0xff] %vm658, %v505
  %693 = vst.msk [vmem:[%s2 + $0x110] sm:$0xff] %vm658, %v510
  %694 = vst.msk [vmem:[%s2 + $0x118] sm:$0xff] %vm658, %v515
  %695 = vst.msk [vmem:[%s2 + $0x120] sm:$0xff] %vm658, %v520
  %696 = vst.msk [vmem:[%s2 + $0x128] sm:$0xff] %vm658, %v525
  %697 = vst.msk [vmem:[%s2 + $0x130] sm:$0xff] %vm658, %v530
  %698 = vst.msk [vmem:[%s2 + $0x138] sm:$0xff] %vm658, %v535
  %699 = vst.msk [vmem:[%s2 + $0x140] sm:$0xff] %vm658, %v540
  %700 = vst.msk [vmem:[%s2 + $0x148] sm:$0xff] %vm658, %v545
  %701 = vst.msk [vmem:[%s2 + $0x150] sm:$0xff] %vm658, %v550
  %702 = vst.msk [vmem:[%s2 + $0x158] sm:$0xff] %vm658, %v555
  %703 = vst.msk [vmem:[%s2 + $0x160] sm:$0xff] %vm658, %v560
  %704 = vst.msk [vmem:[%s2 + $0x168] sm:$0xff] %vm658, %v565
  %705 = vst.msk [vmem:[%s2 + $0x170] sm:$0xff] %vm658, %v570
  %706 = vst.msk [vmem:[%s2 + $0x178] sm:$0xff] %vm658, %v575
  %707 = vst.msk [vmem:[%s2 + $0x180] sm:$0xff] %vm658, %v580
  %708 = vst.msk [vmem:[%s2 + $0x188] sm:$0xff] %vm658, %v585
  %709 = vst.msk [vmem:[%s2 + $0x190] sm:$0xff] %vm658, %v590
  %710 = vst.msk [vmem:[%s2 + $0x198] sm:$0xff] %vm658, %v595
  %711 = vst.msk [vmem:[%s2 + $0x1a0] sm:$0xff] %vm658, %v600
  %712 = vst.msk [vmem:[%s2 + $0x1a8] sm:$0xff] %vm658, %v605
  %713 = vst.msk [vmem:[%s2 + $0x1b0] sm:$0xff] %vm658, %v610
  %714 = vst.msk [vmem:[%s2 + $0x1b8] sm:$0xff] %vm658, %v615
  %715 = vst.msk [vmem:[%s2 + $0x1c0] sm:$0xff] %vm658, %v620
  %716 = vst.msk [vmem:[%s2 + $0x1c8] sm:$0xff] %vm658, %v625
  %717 = vst.msk [vmem:[%s2 + $0x1d0] sm:$0xff] %vm658, %v630
  %718 = vst.msk [vmem:[%s2 + $0x1d8] sm:$0xff] %vm658, %v635
  %719 = vst.msk [vmem:[%s2 + $0x1e0] sm:$0xff] %vm658, %v640
  %720 = vst.msk [vmem:[%s2 + $0x1e8] sm:$0xff] %vm658, %v645
  %721 = vst.msk [vmem:[%s2 + $0x1f0] sm:$0xff] %vm658, %v650
  %722 = vst.msk [vmem:[%s2 + $0x1f8] sm:$0xff] %vm658, %v655
  // Predicated region
  $region10: #{identity_block.4} parent=0 // pred_check
    _
  $region11: #{identity_block.4} parent=0 // pred_check_branch
    %724 = sbr.rel (0) target = $region13
  $region12: #{identity_block.4} parent=0 // pred_region
    _
  $region13: #{identity_block.4} parent=0 // pred_fallthru
    _
  // Predicated region
  $region14: #{identity_block.4} parent=0 // pred_check
    _
  $region15: #{identity_block.4} parent=0 // pred_check_branch
    %726 = sbr.rel (0) target = $region17
  $region16: #{identity_block.4} parent=0 // pred_region
    _
  $region17: #{identity_block.4} parent=0 // pred_fallthru
    _

// kernel: identity_block.6
$region0: #{identity_block.6}
  #allocation0 [shape = 'u32[]', space=smem, size = 0x4, offset = 0x4, fixed_abs, tag = 'smem constant byte address 0x4 - core index']
  #allocation1 [shape = 'u32[144,128]{1,0:T(1,128)}', space=vmem, size = 0x12000, scoped, tag = 'internal scratch']
  %s0 = inlined_call_operand.vmem [shape: f32[512,8], index: 0, kind: input, shape index: {}]
  %s1 = inlined_call_operand.vmem [shape: f32[1,8], index: 1, kind: input, shape index: {}]
  %s2 = inlined_call_operand.vmem [shape: f32[1,8], index: 2, kind: input, shape index: {}]
  %s3 = inlined_call_operand.vmem [shape: f32[8,4], index: 3, kind: input, shape index: {}]
  %s4 = inlined_call_operand.vmem [shape: f32[512,4], index: 4, kind: output, shape index: {}]
  %s5 = sld [smem:[#allocation0]]
  $region26: #{identity_block.6} parent=0
    _
  %s7 = ssub.s32 1, %s5
  %s8 = scalar_select 0, %s7, %s5
  // Predicated region
  $region2: #{identity_block.6} parent=0 // pred_check
    _
  $region3: #{identity_block.6} parent=0 // pred_check_branch
    %10 = sbr.rel (0) target = $region5
  $region4: #{identity_block.6} parent=0 // pred_region
    _
  $region5: #{identity_block.6} parent=0 // pred_fallthru
    _
  // Predicated region
  $region6: #{identity_block.6} parent=0 // pred_check
    _
  $region7: #{identity_block.6} parent=0 // pred_check_branch
    %12 = sbr.rel (0) target = $region9
  $region8: #{identity_block.6} parent=0 // pred_region
    _
  $region9: #{identity_block.6} parent=0 // pred_fallthru
    _
  // Predicated region
  $region10: #{identity_block.6} parent=0 // pred_check
    _
  $region11: #{identity_block.6} parent=0 // pred_check_branch
    %14 = sbr.rel (0) target = $region13
  $region12: #{identity_block.6} parent=0 // pred_region
    _
  $region13: #{identity_block.6} parent=0 // pred_fallthru
    _
  // Predicated region
  $region14: #{identity_block.6} parent=0 // pred_check
    _
  $region15: #{identity_block.6} parent=0 // pred_check_branch
    %16 = sbr.rel (0) target = $region17
  $region16: #{identity_block.6} parent=0 // pred_region
    _
  $region17: #{identity_block.6} parent=0 // pred_fallthru
    _
  %v17 = vld [vmem:[%s0] sm:$0xff]
  %v18 = vld [vmem:[%s0 + $0x8] sm:$0xff]
  %v19 = vld [vmem:[%s0 + $0x10] sm:$0xff]
  %v20 = vld [vmem:[%s0 + $0x18] sm:$0xff]
  %v21 = vld [vmem:[%s0 + $0x20] sm:$0xff]
  %v22 = vld [vmem:[%s0 + $0x28] sm:$0xff]
  %v23 = vld [vmem:[%s0 + $0x30] sm:$0xff]
  %v24 = vld [vmem:[%s0 + $0x38] sm:$0xff]
  %v25 = vld [vmem:[%s0 + $0x40] sm:$0xff]
  %v26 = vld [vmem:[%s0 + $0x48] sm:$0xff]
  %v27 = vld [vmem:[%s0 + $0x50] sm:$0xff]
  %v28 = vld [vmem:[%s0 + $0x58] sm:$0xff]
  %v29 = vld [vmem:[%s0 + $0x60] sm:$0xff]
  %v30 = vld [vmem:[%s0 + $0x68] sm:$0xff]
  %v31 = vld [vmem:[%s0 + $0x70] sm:$0xff]
  %v32 = vld [vmem:[%s0 + $0x78] sm:$0xff]
  %v33 = vld [vmem:[%s0 + $0x80] sm:$0xff]
  %v34 = vld [vmem:[%s0 + $0x88] sm:$0xff]
  %v35 = vld [vmem:[%s0 + $0x90] sm:$0xff]
  %v36 = vld [vmem:[%s0 + $0x98] sm:$0xff]
  %v37 = vld [vmem:[%s0 + $0xa0] sm:$0xff]
  %v38 = vld [vmem:[%s0 + $0xa8] sm:$0xff]
  %v39 = vld [vmem:[%s0 + $0xb0] sm:$0xff]
  %v40 = vld [vmem:[%s0 + $0xb8] sm:$0xff]
  %v41 = vld [vmem:[%s0 + $0xc0] sm:$0xff]
  %v42 = vld [vmem:[%s0 + $0xc8] sm:$0xff]
  %v43 = vld [vmem:[%s0 + $0xd0] sm:$0xff]
  %v44 = vld [vmem:[%s0 + $0xd8] sm:$0xff]
  %v45 = vld [vmem:[%s0 + $0xe0] sm:$0xff]
  %v46 = vld [vmem:[%s0 + $0xe8] sm:$0xff]
  %v47 = vld [vmem:[%s0 + $0xf0] sm:$0xff]
  %v48 = vld [vmem:[%s0 + $0xf8] sm:$0xff]
  %v49 = vld [vmem:[%s0 + $0x100] sm:$0xff]
  %v50 = vld [vmem:[%s0 + $0x108] sm:$0xff]
  %v51 = vld [vmem:[%s0 + $0x110] sm:$0xff]
  %v52 = vld [vmem:[%s0 + $0x118] sm:$0xff]
  %v53 = vld [vmem:[%s0 + $0x120] sm:$0xff]
  %v54 = vld [vmem:[%s0 + $0x128] sm:$0xff]
  %v55 = vld [vmem:[%s0 + $0x130] sm:$0xff]
  %v56 = vld [vmem:[%s0 + $0x138] sm:$0xff]
  %v57 = vld [vmem:[%s0 + $0x140] sm:$0xff]
  %v58 = vld [vmem:[%s0 + $0x148] sm:$0xff]
  %v59 = vld [vmem:[%s0 + $0x150] sm:$0xff]
  %v60 = vld [vmem:[%s0 + $0x158] sm:$0xff]
  %v61 = vld [vmem:[%s0 + $0x160] sm:$0xff]
  %v62 = vld [vmem:[%s0 + $0x168] sm:$0xff]
  %v63 = vld [vmem:[%s0 + $0x170] sm:$0xff]
  %v64 = vld [vmem:[%s0 + $0x178] sm:$0xff]
  %v65 = vld [vmem:[%s0 + $0x180] sm:$0xff]
  %v66 = vld [vmem:[%s0 + $0x188] sm:$0xff]
  %v67 = vld [vmem:[%s0 + $0x190] sm:$0xff]
  %v68 = vld [vmem:[%s0 + $0x198] sm:$0xff]
  %v69 = vld [vmem:[%s0 + $0x1a0] sm:$0xff]
  %v70 = vld [vmem:[%s0 + $0x1a8] sm:$0xff]
  %v71 = vld [vmem:[%s0 + $0x1b0] sm:$0xff]
  %v72 = vld [vmem:[%s0 + $0x1b8] sm:$0xff]
  %v73 = vld [vmem:[%s0 + $0x1c0] sm:$0xff]
  %v74 = vld [vmem:[%s0 + $0x1c8] sm:$0xff]
  %v75 = vld [vmem:[%s0 + $0x1d0] sm:$0xff]
  %v76 = vld [vmem:[%s0 + $0x1d8] sm:$0xff]
  %v77 = vld [vmem:[%s0 + $0x1e0] sm:$0xff]
  %v78 = vld [vmem:[%s0 + $0x1e8] sm:$0xff]
  %v79 = vld [vmem:[%s0 + $0x1f0] sm:$0xff]
  %v80 = vld [vmem:[%s0 + $0x1f8] sm:$0xff]
  %v81 = vld [vmem:[%s1] sm:$0x1]
  %v83 = vlaneseq
  %v84 = vshrl.u32 %v83, 7
  %v85 = vsub.s32 0, %v84
  %v86 = vrot.slane %v81, %v85
  %v88 = vmul.f32 %v17, %v86
  %v89 = vmul.f32 %v18, %v86
  %v90 = vmul.f32 %v19, %v86
  %v91 = vmul.f32 %v20, %v86
  %v92 = vmul.f32 %v21, %v86
  %v93 = vmul.f32 %v22, %v86
  %v94 = vmul.f32 %v23, %v86
  %v95 = vmul.f32 %v24, %v86
  %v96 = vmul.f32 %v25, %v86
  %v97 = vmul.f32 %v26, %v86
  %v98 = vmul.f32 %v27, %v86
  %v99 = vmul.f32 %v28, %v86
  %v100 = vmul.f32 %v29, %v86
  %v101 = vmul.f32 %v30, %v86
  %v102 = vmul.f32 %v31, %v86
  %v103 = vmul.f32 %v32, %v86
  %v104 = vmul.f32 %v33, %v86
  %v105 = vmul.f32 %v34, %v86
  %v106 = vmul.f32 %v35, %v86
  %v107 = vmul.f32 %v36, %v86
  %v108 = vmul.f32 %v37, %v86
  %v109 = vmul.f32 %v38, %v86
  %v110 = vmul.f32 %v39, %v86
  %v111 = vmul.f32 %v40, %v86
  %v112 = vmul.f32 %v41, %v86
  %v113 = vmul.f32 %v42, %v86
  %v114 = vmul.f32 %v43, %v86
  %v115 = vmul.f32 %v44, %v86
  %v116 = vmul.f32 %v45, %v86
  %v117 = vmul.f32 %v46, %v86
  %v118 = vmul.f32 %v47, %v86
  %v119 = vmul.f32 %v48, %v86
  %v120 = vmul.f32 %v49, %v86
  %v121 = vmul.f32 %v50, %v86
  %v122 = vmul.f32 %v51, %v86
  %v123 = vmul.f32 %v52, %v86
  %v124 = vmul.f32 %v53, %v86
  %v125 = vmul.f32 %v54, %v86
  %v126 = vmul.f32 %v55, %v86
  %v127 = vmul.f32 %v56, %v86
  %v128 = vmul.f32 %v57, %v86
  %v129 = vmul.f32 %v58, %v86
  %v130 = vmul.f32 %v59, %v86
  %v131 = vmul.f32 %v60, %v86
  %v132 = vmul.f32 %v61, %v86
  %v133 = vmul.f32 %v62, %v86
  %v134 = vmul.f32 %v63, %v86
  %v135 = vmul.f32 %v64, %v86
  %v136 = vmul.f32 %v65, %v86
  %v137 = vmul.f32 %v66, %v86
  %v138 = vmul.f32 %v67, %v86
  %v139 = vmul.f32 %v68, %v86
  %v140 = vmul.f32 %v69, %v86
  %v141 = vmul.f32 %v70, %v86
  %v142 = vmul.f32 %v71, %v86
  %v143 = vmul.f32 %v72, %v86
  %v144 = vmul.f32 %v73, %v86
  %v145 = vmul.f32 %v74, %v86
  %v146 = vmul.f32 %v75, %v86
  %v147 = vmul.f32 %v76, %v86
  %v148 = vmul.f32 %v77, %v86
  %v149 = vmul.f32 %v78, %v86
  %v150 = vmul.f32 %v79, %v86
  %v151 = vmul.f32 %v80, %v86
  %v152 = vld [vmem:[%s2] sm:$0x1]
  %v154 = vlaneseq
  %v155 = vshrl.u32 %v154, 7
  %v156 = vsub.s32 0, %v155
  %v157 = vrot.slane %v152, %v156
  %v159 = vadd.f32 %v88, %v157
  %v160 = vadd.f32 %v89, %v157
  %v161 = vadd.f32 %v90, %v157
  %v162 = vadd.f32 %v91, %v157
  %v163 = vadd.f32 %v92, %v157
  %v164 = vadd.f32 %v93, %v157
  %v165 = vadd.f32 %v94, %v157
  %v166 = vadd.f32 %v95, %v157
  %v167 = vadd.f32 %v96, %v157
  %v168 = vadd.f32 %v97, %v157
  %v169 = vadd.f32 %v98, %v157
  %v170 = vadd.f32 %v99, %v157
  %v171 = vadd.f32 %v100, %v157
  %v172 = vadd.f32 %v101, %v157
  %v173 = vadd.f32 %v102, %v157
  %v174 = vadd.f32 %v103, %v157
  %v175 = vadd.f32 %v104, %v157
  %v176 = vadd.f32 %v105, %v157
  %v177 = vadd.f32 %v106, %v157
  %v178 = vadd.f32 %v107, %v157
  %v179 = vadd.f32 %v108, %v157
  %v180 = vadd.f32 %v109, %v157
  %v181 = vadd.f32 %v110, %v157
  %v182 = vadd.f32 %v111, %v157
  %v183 = vadd.f32 %v112, %v157
  %v184 = vadd.f32 %v113, %v157
  %v185 = vadd.f32 %v114, %v157
  %v186 = vadd.f32 %v115, %v157
  %v187 = vadd.f32 %v116, %v157
  %v188 = vadd.f32 %v117, %v157
  %v189 = vadd.f32 %v118, %v157
  %v190 = vadd.f32 %v119, %v157
  %v191 = vadd.f32 %v120, %v157
  %v192 = vadd.f32 %v121, %v157
  %v193 = vadd.f32 %v122, %v157
  %v194 = vadd.f32 %v123, %v157
  %v195 = vadd.f32 %v124, %v157
  %v196 = vadd.f32 %v125, %v157
  %v197 = vadd.f32 %v126, %v157
  %v198 = vadd.f32 %v127, %v157
  %v199 = vadd.f32 %v128, %v157
  %v200 = vadd.f32 %v129, %v157
  %v201 = vadd.f32 %v130, %v157
  %v202 = vadd.f32 %v131, %v157
  %v203 = vadd.f32 %v132, %v157
  %v204 = vadd.f32 %v133, %v157
  %v205 = vadd.f32 %v134, %v157
  %v206 = vadd.f32 %v135, %v157
  %v207 = vadd.f32 %v136, %v157
  %v208 = vadd.f32 %v137, %v157
  %v209 = vadd.f32 %v138, %v157
  %v210 = vadd.f32 %v139, %v157
  %v211 = vadd.f32 %v140, %v157
  %v212 = vadd.f32 %v141, %v157
  %v213 = vadd.f32 %v142, %v157
  %v214 = vadd.f32 %v143, %v157
  %v215 = vadd.f32 %v144, %v157
  %v216 = vadd.f32 %v145, %v157
  %v217 = vadd.f32 %v146, %v157
  %v218 = vadd.f32 %v147, %v157
  %v219 = vadd.f32 %v148, %v157
  %v220 = vadd.f32 %v149, %v157
  %v221 = vadd.f32 %v150, %v157
  %v222 = vadd.f32 %v151, %v157
  %v223 = vmax.f32 %v159, 0.0
  %v224 = vmax.f32 %v160, 0.0
  %v225 = vmax.f32 %v161, 0.0
  %v226 = vmax.f32 %v162, 0.0
  %v227 = vmax.f32 %v163, 0.0
  %v228 = vmax.f32 %v164, 0.0
  %v229 = vmax.f32 %v165, 0.0
  %v230 = vmax.f32 %v166, 0.0
  %v231 = vmax.f32 %v167, 0.0
  %v232 = vmax.f32 %v168, 0.0
  %v233 = vmax.f32 %v169, 0.0
  %v234 = vmax.f32 %v170, 0.0
  %v235 = vmax.f32 %v171, 0.0
  %v236 = vmax.f32 %v172, 0.0
  %v237 = vmax.f32 %v173, 0.0
  %v238 = vmax.f32 %v174, 0.0
  %v239 = vmax.f32 %v175, 0.0
  %v240 = vmax.f32 %v176, 0.0
  %v241 = vmax.f32 %v177, 0.0
  %v242 = vmax.f32 %v178, 0.0
  %v243 = vmax.f32 %v179, 0.0
  %v244 = vmax.f32 %v180, 0.0
  %v245 = vmax.f32 %v181, 0.0
  %v246 = vmax.f32 %v182, 0.0
  %v247 = vmax.f32 %v183, 0.0
  %v248 = vmax.f32 %v184, 0.0
  %v249 = vmax.f32 %v185, 0.0
  %v250 = vmax.f32 %v186, 0.0
  %v251 = vmax.f32 %v187, 0.0
  %v252 = vmax.f32 %v188, 0.0
  %v253 = vmax.f32 %v189, 0.0
  %v254 = vmax.f32 %v190, 0.0
  %v255 = vmax.f32 %v191, 0.0
  %v256 = vmax.f32 %v192, 0.0
  %v257 = vmax.f32 %v193, 0.0
  %v258 = vmax.f32 %v194, 0.0
  %v259 = vmax.f32 %v195, 0.0
  %v260 = vmax.f32 %v196, 0.0
  %v261 = vmax.f32 %v197, 0.0
  %v262 = vmax.f32 %v198, 0.0
  %v263 = vmax.f32 %v199, 0.0
  %v264 = vmax.f32 %v200, 0.0
  %v265 = vmax.f32 %v201, 0.0
  %v266 = vmax.f32 %v202, 0.0
  %v267 = vmax.f32 %v203, 0.0
  %v268 = vmax.f32 %v204, 0.0
  %v269 = vmax.f32 %v205, 0.0
  %v270 = vmax.f32 %v206, 0.0
  %v271 = vmax.f32 %v207, 0.0
  %v272 = vmax.f32 %v208, 0.0
  %v273 = vmax.f32 %v209, 0.0
  %v274 = vmax.f32 %v210, 0.0
  %v275 = vmax.f32 %v211, 0.0
  %v276 = vmax.f32 %v212, 0.0
  %v277 = vmax.f32 %v213, 0.0
  %v278 = vmax.f32 %v214, 0.0
  %v279 = vmax.f32 %v215, 0.0
  %v280 = vmax.f32 %v216, 0.0
  %v281 = vmax.f32 %v217, 0.0
  %v282 = vmax.f32 %v218, 0.0
  %v283 = vmax.f32 %v219, 0.0
  %v284 = vmax.f32 %v220, 0.0
  %v285 = vmax.f32 %v221, 0.0
  %v286 = vmax.f32 %v222, 0.0
  %v287 = vld [vmem:[%s3] sm:$0xff]
  %vm288 = vcmask 64512
  %v290 = vsel %vm288, %v223, 0
  %v293 = vsel %vm288, %v224, 0
  %v296 = vsel %vm288, %v225, 0
  %v299 = vsel %vm288, %v226, 0
  %v302 = vsel %vm288, %v227, 0
  %v305 = vsel %vm288, %v228, 0
  %v308 = vsel %vm288, %v229, 0
  %v311 = vsel %vm288, %v230, 0
  %v314 = vsel %vm288, %v231, 0
  %v317 = vsel %vm288, %v232, 0
  %v320 = vsel %vm288, %v233, 0
  %v323 = vsel %vm288, %v234, 0
  %v326 = vsel %vm288, %v235, 0
  %v329 = vsel %vm288, %v236, 0
  %v332 = vsel %vm288, %v237, 0
  %v335 = vsel %vm288, %v238, 0
  %v338 = vsel %vm288, %v239, 0
  %v341 = vsel %vm288, %v240, 0
  %v344 = vsel %vm288, %v241, 0
  %v347 = vsel %vm288, %v242, 0
  %v350 = vsel %vm288, %v243, 0
  %v353 = vsel %vm288, %v244, 0
  %v356 = vsel %vm288, %v245, 0
  %v359 = vsel %vm288, %v246, 0
  %v362 = vsel %vm288, %v247, 0
  %v365 = vsel %vm288, %v248, 0
  %v368 = vsel %vm288, %v249, 0
  %v371 = vsel %vm288, %v250, 0
  %v374 = vsel %vm288, %v251, 0
  %v377 = vsel %vm288, %v252, 0
  %v380 = vsel %vm288, %v253, 0
  %v383 = vsel %vm288, %v254, 0
  %v386 = vsel %vm288, %v255, 0
  %v389 = vsel %vm288, %v256, 0
  %v392 = vsel %vm288, %v257, 0
  %v395 = vsel %vm288, %v258, 0
  %v398 = vsel %vm288, %v259, 0
  %v401 = vsel %vm288, %v260, 0
  %v404 = vsel %vm288, %v261, 0
  %v407 = vsel %vm288, %v262, 0
  %v410 = vsel %vm288, %v263, 0
  %v413 = vsel %vm288, %v264, 0
  %v416 = vsel %vm288, %v265, 0
  %v419 = vsel %vm288, %v266, 0
  %v422 = vsel %vm288, %v267, 0
  %v425 = vsel %vm288, %v268, 0
  %v428 = vsel %vm288, %v269, 0
  %v431 = vsel %vm288, %v270, 0
  %v434 = vsel %vm288, %v271, 0
  %v437 = vsel %vm288, %v272, 0
  %v440 = vsel %vm288, %v273, 0
  %v443 = vsel %vm288, %v274, 0
  %v446 = vsel %vm288, %v275, 0
  %v449 = vsel %vm288, %v276, 0
  %v452 = vsel %vm288, %v277, 0
  %v455 = vsel %vm288, %v278, 0
  %v458 = vsel %vm288, %v279, 0
  %v461 = vsel %vm288, %v280, 0
  %v464 = vsel %vm288, %v281, 0
  %v467 = vsel %vm288, %v282, 0
  %v470 = vsel %vm288, %v283, 0
  %v473 = vsel %vm288, %v284, 0
  %v476 = vsel %vm288, %v285, 0
  %v479 = vsel %vm288, %v286, 0
  %481 = vmatprep.subr.mxu0 0.0
  %482 = vmatpush1.msra.mxu0 %v287
  %483 = vmatprep.subr.mxu0 0.0
  %484 = vmatpush1.msra.mxu0 0.0
  %485 = vmatprep.subr.mxu0 0.0
  %486 = vmatpush1.msra.mxu0 0.0
  %487 = vmatprep.subr.mxu0 0.0
  %488 = vmatpush1.msra.mxu0 0.0
  %489 = vmatprep.subr.mxu0 0.0
  %490 = vmatpush1.msra.mxu0 0.0
  %491 = vmatprep.subr.mxu0 0.0
  %492 = vmatpush1.msra.mxu0 0.0
  %493 = vmatprep.subr.mxu0 0.0
  %494 = vmatpush1.msra.mxu0 0.0
  %495 = vmatprep.subr.mxu0 0.0
  %496 = vmatpush1.msra.mxu0 0.0
  %497 = vmatprep.subr.mxu0 0.0
  %498 = vmatpush1.msra.mxu0 0.0
  %499 = vmatprep.subr.mxu0 0.0
  %500 = vmatpush1.msra.mxu0 0.0
  %501 = vmatprep.subr.mxu0 0.0
  %502 = vmatpush1.msra.mxu0 0.0
  %503 = vmatprep.subr.mxu0 0.0
  %504 = vmatpush1.msra.mxu0 0.0
  %505 = vmatprep.subr.mxu0 0.0
  %506 = vmatpush1.msra.mxu0 0.0
  %507 = vmatprep.subr.mxu0 0.0
  %508 = vmatpush1.msra.mxu0 0.0
  %509 = vmatprep.subr.mxu0 0.0
  %510 = vmatpush1.msra.mxu0 0.0
  %511 = vmatprep.subr.mxu0 0.0
  %512 = vmatpush1.msra.mxu0 0.0
  %513 = vmatprep.subr.mxu0 0.0
  %514 = vmatpush1.msra.mxu0 0.0
  %515 = vmatprep.subr.mxu0 0.0
  %516 = vmatpush1.msra.mxu0 0.0
  %517 = vmatprep.subr.mxu0 0.0
  %518 = vmatpush1.msra.mxu0 0.0
  %519 = vmatprep.subr.mxu0 0.0
  %520 = vmatpush1.msra.mxu0 0.0
  %521 = vmatprep.subr.mxu0 0.0
  %522 = vmatpush1.msra.mxu0 0.0
  %523 = vmatprep.subr.mxu0 0.0
  %524 = vmatpush1.msra.mxu0 0.0
  %525 = vmatprep.subr.mxu0 0.0
  %526 = vmatpush1.msra.mxu0 0.0
  %527 = vmatprep.subr.mxu0 0.0
  %528 = vmatpush1.msra.mxu0 0.0
  %529 = vmatprep.subr.mxu0 0.0
  %530 = vmatpush1.msra.mxu0 0.0
  %531 = vmatprep.subr.mxu0 0.0
  %532 = vmatpush1.msra.mxu0 0.0
  %533 = vmatprep.subr.mxu0 0.0
  %534 = vmatpush1.msra.mxu0 0.0
  %535 = vmatprep.subr.mxu0 0.0
  %536 = vmatpush1.msra.mxu0 0.0
  %537 = vmatprep.subr.mxu0 0.0
  %538 = vmatpush1.msra.mxu0 0.0
  %539 = vmatprep.subr.mxu0 0.0
  %540 = vmatpush1.msra.mxu0 0.0
  %541 = vmatprep.subr.mxu0 0.0
  %542 = vmatpush1.msra.mxu0 0.0
  %543 = vmatprep.subr.mxu0 0.0
  %544 = vmatpush1.msra.mxu0 0.0
  %545 = vmatprep.mubr.f32.mxu0 0.0
  %546 = vmatmul.mubr.f32.gmra.mrb[0].mxu0 %v290
  %v547 = vpop.f32.mrb[0].mxu0
  %v548 = vadd.f32 0.0, %v547
  %v549 = vpop.f32.mrb[0].mxu0
  %550 = vmatprep.mubr.f32.mxu0 0.0
  %551 = vmatmul.mubr.f32.gmra.mrb[0].mxu0 %v293
  %v552 = vpop.f32.mrb[0].mxu0
  %v553 = vadd.f32 0.0, %v552
  %v554 = vpop.f32.mrb[0].mxu0
  %555 = vmatprep.mubr.f32.mxu0 0.0
  %556 = vmatmul.mubr.f32.gmra.mrb[0].mxu0 %v296
  %v557 = vpop.f32.mrb[0].mxu0
  %v558 = vadd.f32 0.0, %v557
  %v559 = vpop.f32.mrb[0].mxu0
  %560 = vmatprep.mubr.f32.mxu0 0.0
  %561 = vmatmul.mubr.f32.gmra.mrb[0].mxu0 %v299
  %v562 = vpop.f32.mrb[0].mxu0
  %v563 = vadd.f32 0.0, %v562
  %v564 = vpop.f32.mrb[0].mxu0
  %565 = vmatprep.mubr.f32.mxu0 0.0
  %566 = vmatmul.mubr.f32.gmra.mrb[0].mxu0 %v302
  %v567 = vpop.f32.mrb[0].mxu0
  %v568 = vadd.f32 0.0, %v567
  %v569 = vpop.f32.mrb[0].mxu0
  %570 = vmatprep.mubr.f32.mxu0 0.0
  %571 = vmatmul.mubr.f32.gmra.mrb[0].mxu0 %v305
  %v572 = vpop.f32.mrb[0].mxu0
  %v573 = vadd.f32 0.0, %v572
  %v574 = vpop.f32.mrb[0].mxu0
  %575 = vmatprep.mubr.f32.mxu0 0.0
  %576 = vmatmul.mubr.f32.gmra.mrb[0].mxu0 %v308
  %v577 = vpop.f32.mrb[0].mxu0
  %v578 = vadd.f32 0.0, %v577
  %v579 = vpop.f32.mrb[0].mxu0
  %580 = vmatprep.mubr.f32.mxu0 0.0
  %581 = vmatmul.mubr.f32.gmra.mrb[0].mxu0 %v311
  %v582 = vpop.f32.mrb[0].mxu0
  %v583 = vadd.f32 0.0, %v582
  %v584 = vpop.f32.mrb[0].mxu0
  %585 = vmatprep.mubr.f32.mxu0 0.0
  %586 = vmatmul.mubr.f32.gmra.mrb[0].mxu0 %v314
  %v587 = vpop.f32.mrb[0].mxu0
  %v588 = vadd.f32 0.0, %v587
  %v589 = vpop.f32.mrb[0].mxu0
  %590 = vmatprep.mubr.f32.mxu0 0.0
  %591 = vmatmul.mubr.f32.gmra.mrb[0].mxu0 %v317
  %v592 = vpop.f32.mrb[0].mxu0
  %v593 = vadd.f32 0.0, %v592
  %v594 = vpop.f32.mrb[0].mxu0
  %595 = vmatprep.mubr.f32.mxu0 0.0
  %596 = vmatmul.mubr.f32.gmra.mrb[0].mxu0 %v320
  %v597 = vpop.f32.mrb[0].mxu0
  %v598 = vadd.f32 0.0, %v597
  %v599 = vpop.f32.mrb[0].mxu0
  %600 = vmatprep.mubr.f32.mxu0 0.0
  %601 = vmatmul.mubr.f32.gmra.mrb[0].mxu0 %v323
  %v602 = vpop.f32.mrb[0].mxu0
  %v603 = vadd.f32 0.0, %v602
  %v604 = vpop.f32.mrb[0].mxu0
  %605 = vmatprep.mubr.f32.mxu0 0.0
  %606 = vmatmul.mubr.f32.gmra.mrb[0].mxu0 %v326
  %v607 = vpop.f32.mrb[0].mxu0
  %v608 = vadd.f32 0.0, %v607
  %v609 = vpop.f32.mrb[0].mxu0
  %610 = vmatprep.mubr.f32.mxu0 0.0
  %611 = vmatmul.mubr.f32.gmra.mrb[0].mxu0 %v329
  %v612 = vpop.f32.mrb[0].mxu0
  %v613 = vadd.f32 0.0, %v612
  %v614 = vpop.f32.mrb[0].mxu0
  %615 = vmatprep.mubr.f32.mxu0 0.0
  %616 = vmatmul.mubr.f32.gmra.mrb[0].mxu0 %v332
  %v617 = vpop.f32.mrb[0].mxu0
  %v618 = vadd.f32 0.0, %v617
  %v619 = vpop.f32.mrb[0].mxu0
  %620 = vmatprep.mubr.f32.mxu0 0.0
  %621 = vmatmul.mubr.f32.gmra.mrb[0].mxu0 %v335
  %v622 = vpop.f32.mrb[0].mxu0
  %v623 = vadd.f32 0.0, %v622
  %v624 = vpop.f32.mrb[0].mxu0
  %625 = vmatprep.mubr.f32.mxu0 0.0
  %626 = vmatmul.mubr.f32.gmra.mrb[0].mxu0 %v338
  %v627 = vpop.f32.mrb[0].mxu0
  %v628 = vadd.f32 0.0, %v627
  %v629 = vpop.f32.mrb[0].mxu0
  %630 = vmatprep.mubr.f32.mxu0 0.0
  %631 = vmatmul.mubr.f32.gmra.mrb[0].mxu0 %v341
  %v632 = vpop.f32.mrb[0].mxu0
  %v633 = vadd.f32 0.0, %v632
  %v634 = vpop.f32.mrb[0].mxu0
  %635 = vmatprep.mubr.f32.mxu0 0.0
  %636 = vmatmul.mubr.f32.gmra.mrb[0].mxu0 %v344
  %v637 = vpop.f32.mrb[0].mxu0
  %v638 = vadd.f32 0.0, %v637
  %v639 = vpop.f32.mrb[0].mxu0
  %640 = vmatprep.mubr.f32.mxu0 0.0
  %641 = vmatmul.mubr.f32.gmra.mrb[0].mxu0 %v347
  %v642 = vpop.f32.mrb[0].mxu0
  %v643 = vadd.f32 0.0, %v642
  %v644 = vpop.f32.mrb[0].mxu0
  %645 = vmatprep.mubr.f32.mxu0 0.0
  %646 = vmatmul.mubr.f32.gmra.mrb[0].mxu0 %v350
  %v647 = vpop.f32.mrb[0].mxu0
  %v648 = vadd.f32 0.0, %v647
  %v649 = vpop.f32.mrb[0].mxu0
  %650 = vmatprep.mubr.f32.mxu0 0.0
  %651 = vmatmul.mubr.f32.gmra.mrb[0].mxu0 %v353
  %v652 = vpop.f32.mrb[0].mxu0
  %v653 = vadd.f32 0.0, %v652
  %v654 = vpop.f32.mrb[0].mxu0
  %655 = vmatprep.mubr.f32.mxu0 0.0
  %656 = vmatmul.mubr.f32.gmra.mrb[0].mxu0 %v356
  %v657 = vpop.f32.mrb[0].mxu0
  %v658 = vadd.f32 0.0, %v657
  %v659 = vpop.f32.mrb[0].mxu0
  %660 = vmatprep.mubr.f32.mxu0 0.0
  %661 = vmatmul.mubr.f32.gmra.mrb[0].mxu0 %v359
  %v662 = vpop.f32.mrb[0].mxu0
  %v663 = vadd.f32 0.0, %v662
  %v664 = vpop.f32.mrb[0].mxu0
  %665 = vmatprep.mubr.f32.mxu0 0.0
  %666 = vmatmul.mubr.f32.gmra.mrb[0].mxu0 %v362
  %v667 = vpop.f32.mrb[0].mxu0
  %v668 = vadd.f32 0.0, %v667
  %v669 = vpop.f32.mrb[0].mxu0
  %670 = vmatprep.mubr.f32.mxu0 0.0
  %671 = vmatmul.mubr.f32.gmra.mrb[0].mxu0 %v365
  %v672 = vpop.f32.mrb[0].mxu0
  %v673 = vadd.f32 0.0, %v672
  %v674 = vpop.f32.mrb[0].mxu0
  %675 = vmatprep.mubr.f32.mxu0 0.0
  %676 = vmatmul.mubr.f32.gmra.mrb[0].mxu0 %v368
  %v677 = vpop.f32.mrb[0].mxu0
  %v678 = vadd.f32 0.0, %v677
  %v679 = vpop.f32.mrb[0].mxu0
  %680 = vmatprep.mubr.f32.mxu0 0.0
  %681 = vmatmul.mubr.f32.gmra.mrb[0].mxu0 %v371
  %v682 = vpop.f32.mrb[0].mxu0
  %v683 = vadd.f32 0.0, %v682
  %v684 = vpop.f32.mrb[0].mxu0
  %685 = vmatprep.mubr.f32.mxu0 0.0
  %686 = vmatmul.mubr.f32.gmra.mrb[0].mxu0 %v374
  %v687 = vpop.f32.mrb[0].mxu0
  %v688 = vadd.f32 0.0, %v687
  %v689 = vpop.f32.mrb[0].mxu0
  %690 = vmatprep.mubr.f32.mxu0 0.0
  %691 = vmatmul.mubr.f32.gmra.mrb[0].mxu0 %v377
  %v692 = vpop.f32.mrb[0].mxu0
  %v693 = vadd.f32 0.0, %v692
  %v694 = vpop.f32.mrb[0].mxu0
  %695 = vmatprep.mubr.f32.mxu0 0.0
  %696 = vmatmul.mubr.f32.gmra.mrb[0].mxu0 %v380
  %v697 = vpop.f32.mrb[0].mxu0
  %v698 = vadd.f32 0.0, %v697
  %v699 = vpop.f32.mrb[0].mxu0
  %700 = vmatprep.mubr.f32.mxu0 0.0
  %701 = vmatmul.mubr.f32.gmra.mrb[0].mxu0 %v383
  %v702 = vpop.f32.mrb[0].mxu0
  %v703 = vadd.f32 0.0, %v702
  %v704 = vpop.f32.mrb[0].mxu0
  %705 = vmatprep.mubr.f32.mxu0 0.0
  %706 = vmatmul.mubr.f32.gmra.mrb[0].mxu0 %v386
  %v707 = vpop.f32.mrb[0].mxu0
  %v708 = vadd.f32 0.0, %v707
  %v709 = vpop.f32.mrb[0].mxu0
  %710 = vmatprep.mubr.f32.mxu0 0.0
  %711 = vmatmul.mubr.f32.gmra.mrb[0].mxu0 %v389
  %v712 = vpop.f32.mrb[0].mxu0
  %v713 = vadd.f32 0.0, %v712
  %v714 = vpop.f32.mrb[0].mxu0
  %715 = vmatprep.mubr.f32.mxu0 0.0
  %716 = vmatmul.mubr.f32.gmra.mrb[0].mxu0 %v392
  %v717 = vpop.f32.mrb[0].mxu0
  %v718 = vadd.f32 0.0, %v717
  %v719 = vpop.f32.mrb[0].mxu0
  %720 = vmatprep.mubr.f32.mxu0 0.0
  %721 = vmatmul.mubr.f32.gmra.mrb[0].mxu0 %v395
  %v722 = vpop.f32.mrb[0].mxu0
  %v723 = vadd.f32 0.0, %v722
  %v724 = vpop.f32.mrb[0].mxu0
  %725 = vmatprep.mubr.f32.mxu0 0.0
  %726 = vmatmul.mubr.f32.gmra.mrb[0].mxu0 %v398
  %v727 = vpop.f32.mrb[0].mxu0
  %v728 = vadd.f32 0.0, %v727
  %v729 = vpop.f32.mrb[0].mxu0
  %730 = vmatprep.mubr.f32.mxu0 0.0
  %731 = vmatmul.mubr.f32.gmra.mrb[0].mxu0 %v401
  %v732 = vpop.f32.mrb[0].mxu0
  %v733 = vadd.f32 0.0, %v732
  %v734 = vpop.f32.mrb[0].mxu0
  %735 = vmatprep.mubr.f32.mxu0 0.0
  %736 = vmatmul.mubr.f32.gmra.mrb[0].mxu0 %v404
  %v737 = vpop.f32.mrb[0].mxu0
  %v738 = vadd.f32 0.0, %v737
  %v739 = vpop.f32.mrb[0].mxu0
  %740 = vmatprep.mubr.f32.mxu0 0.0
  %741 = vmatmul.mubr.f32.gmra.mrb[0].mxu0 %v407
  %v742 = vpop.f32.mrb[0].mxu0
  %v743 = vadd.f32 0.0, %v742
  %v744 = vpop.f32.mrb[0].mxu0
  %745 = vmatprep.mubr.f32.mxu0 0.0
  %746 = vmatmul.mubr.f32.gmra.mrb[0].mxu0 %v410
  %v747 = vpop.f32.mrb[0].mxu0
  %v748 = vadd.f32 0.0, %v747
  %v749 = vpop.f32.mrb[0].mxu0
  %750 = vmatprep.mubr.f32.mxu0 0.0
  %751 = vmatmul.mubr.f32.gmra.mrb[0].mxu0 %v413
  %v752 = vpop.f32.mrb[0].mxu0
  %v753 = vadd.f32 0.0, %v752
  %v754 = vpop.f32.mrb[0].mxu0
  %755 = vmatprep.mubr.f32.mxu0 0.0
  %756 = vmatmul.mubr.f32.gmra.mrb[0].mxu0 %v416
  %v757 = vpop.f32.mrb[0].mxu0
  %v758 = vadd.f32 0.0, %v757
  %v759 = vpop.f32.mrb[0].mxu0
  %760 = vmatprep.mubr.f32.mxu0 0.0
  %761 = vmatmul.mubr.f32.gmra.mrb[0].mxu0 %v419
  %v762 = vpop.f32.mrb[0].mxu0
  %v763 = vadd.f32 0.0, %v762
  %v764 = vpop.f32.mrb[0].mxu0
  %765 = vmatprep.mubr.f32.mxu0 0.0
  %766 = vmatmul.mubr.f32.gmra.mrb[0].mxu0 %v422
  %v767 = vpop.f32.mrb[0].mxu0
  %v768 = vadd.f32 0.0, %v767
  %v769 = vpop.f32.mrb[0].mxu0
  %770 = vmatprep.mubr.f32.mxu0 0.0
  %771 = vmatmul.mubr.f32.gmra.mrb[0].mxu0 %v425
  %v772 = vpop.f32.mrb[0].mxu0
  %v773 = vadd.f32 0.0, %v772
  %v774 = vpop.f32.mrb[0].mxu0
  %775 = vmatprep.mubr.f32.mxu0 0.0
  %776 = vmatmul.mubr.f32.gmra.mrb[0].mxu0 %v428
  %v777 = vpop.f32.mrb[0].mxu0
  %v778 = vadd.f32 0.0, %v777
  %v779 = vpop.f32.mrb[0].mxu0
  %780 = vmatprep.mubr.f32.mxu0 0.0
  %781 = vmatmul.mubr.f32.gmra.mrb[0].mxu0 %v431
  %v782 = vpop.f32.mrb[0].mxu0
  %v783 = vadd.f32 0.0, %v782
  %v784 = vpop.f32.mrb[0].mxu0
  %785 = vmatprep.mubr.f32.mxu0 0.0
  %786 = vmatmul.mubr.f32.gmra.mrb[0].mxu0 %v434
  %v787 = vpop.f32.mrb[0].mxu0
  %v788 = vadd.f32 0.0, %v787
  %v789 = vpop.f32.mrb[0].mxu0
  %790 = vmatprep.mubr.f32.mxu0 0.0
  %791 = vmatmul.mubr.f32.gmra.mrb[0].mxu0 %v437
  %v792 = vpop.f32.mrb[0].mxu0
  %v793 = vadd.f32 0.0, %v792
  %v794 = vpop.f32.mrb[0].mxu0
  %795 = vmatprep.mubr.f32.mxu0 0.0
  %796 = vmatmul.mubr.f32.gmra.mrb[0].mxu0 %v440
  %v797 = vpop.f32.mrb[0].mxu0
  %v798 = vadd.f32 0.0, %v797
  %v799 = vpop.f32.mrb[0].mxu0
  %800 = vmatprep.mubr.f32.mxu0 0.0
  %801 = vmatmul.mubr.f32.gmra.mrb[0].mxu0 %v443
  %v802 = vpop.f32.mrb[0].mxu0
  %v803 = vadd.f32 0.0, %v802
  %v804 = vpop.f32.mrb[0].mxu0
  %805 = vmatprep.mubr.f32.mxu0 0.0
  %806 = vmatmul.mubr.f32.gmra.mrb[0].mxu0 %v446
  %v807 = vpop.f32.mrb[0].mxu0
  %v808 = vadd.f32 0.0, %v807
  %v809 = vpop.f32.mrb[0].mxu0
  %810 = vmatprep.mubr.f32.mxu0 0.0
  %811 = vmatmul.mubr.f32.gmra.mrb[0].mxu0 %v449
  %v812 = vpop.f32.mrb[0].mxu0
  %v813 = vadd.f32 0.0, %v812
  %v814 = vpop.f32.mrb[0].mxu0
  %815 = vmatprep.mubr.f32.mxu0 0.0
  %816 = vmatmul.mubr.f32.gmra.mrb[0].mxu0 %v452
  %v817 = vpop.f32.mrb[0].mxu0
  %v818 = vadd.f32 0.0, %v817
  %v819 = vpop.f32.mrb[0].mxu0
  %820 = vmatprep.mubr.f32.mxu0 0.0
  %821 = vmatmul.mubr.f32.gmra.mrb[0].mxu0 %v455
  %v822 = vpop.f32.mrb[0].mxu0
  %v823 = vadd.f32 0.0, %v822
  %v824 = vpop.f32.mrb[0].mxu0
  %825 = vmatprep.mubr.f32.mxu0 0.0
  %826 = vmatmul.mubr.f32.gmra.mrb[0].mxu0 %v458
  %v827 = vpop.f32.mrb[0].mxu0
  %v828 = vadd.f32 0.0, %v827
  %v829 = vpop.f32.mrb[0].mxu0
  %830 = vmatprep.mubr.f32.mxu0 0.0
  %831 = vmatmul.mubr.f32.gmra.mrb[0].mxu0 %v461
  %v832 = vpop.f32.mrb[0].mxu0
  %v833 = vadd.f32 0.0, %v832
  %v834 = vpop.f32.mrb[0].mxu0
  %835 = vmatprep.mubr.f32.mxu0 0.0
  %836 = vmatmul.mubr.f32.gmra.mrb[0].mxu0 %v464
  %v837 = vpop.f32.mrb[0].mxu0
  %v838 = vadd.f32 0.0, %v837
  %v839 = vpop.f32.mrb[0].mxu0
  %840 = vmatprep.mubr.f32.mxu0 0.0
  %841 = vmatmul.mubr.f32.gmra.mrb[0].mxu0 %v467
  %v842 = vpop.f32.mrb[0].mxu0
  %v843 = vadd.f32 0.0, %v842
  %v844 = vpop.f32.mrb[0].mxu0
  %845 = vmatprep.mubr.f32.mxu0 0.0
  %846 = vmatmul.mubr.f32.gmra.mrb[0].mxu0 %v470
  %v847 = vpop.f32.mrb[0].mxu0
  %v848 = vadd.f32 0.0, %v847
  %v849 = vpop.f32.mrb[0].mxu0
  %850 = vmatprep.mubr.f32.mxu0 0.0
  %851 = vmatmul.mubr.f32.gmra.mrb[0].mxu0 %v473
  %v852 = vpop.f32.mrb[0].mxu0
  %v853 = vadd.f32 0.0, %v852
  %v854 = vpop.f32.mrb[0].mxu0
  %855 = vmatprep.mubr.f32.mxu0 0.0
  %856 = vmatmul.mubr.f32.gmra.mrb[0].mxu0 %v476
  %v857 = vpop.f32.mrb[0].mxu0
  %v858 = vadd.f32 0.0, %v857
  %v859 = vpop.f32.mrb[0].mxu0
  %860 = vmatprep.mubr.f32.mxu0 0.0
  %861 = vmatmul.mubr.f32.gmra.mrb[0].mxu0 %v479
  %v862 = vpop.f32.mrb[0].mxu0
  %v863 = vadd.f32 0.0, %v862
  %v864 = vpop.f32.mrb[0].mxu0
  %865 = vdwg.mxu0
  %vm866 = vcmask 31744
  %867 = vst.msk [vmem:[%s4] sm:$0xff] %vm866, %v548
  %868 = vst.msk [vmem:[%s4 + $0x8] sm:$0xff] %vm866, %v553
  %869 = vst.msk [vmem:[%s4 + $0x10] sm:$0xff] %vm866, %v558
  %870 = vst.msk [vmem:[%s4 + $0x18] sm:$0xff] %vm866, %v563
  %871 = vst.msk [vmem:[%s4 + $0x20] sm:$0xff] %vm866, %v568
  %872 = vst.msk [vmem:[%s4 + $0x28] sm:$0xff] %vm866, %v573
  %873 = vst.msk [vmem:[%s4 + $0x30] sm:$0xff] %vm866, %v578
  %874 = vst.msk [vmem:[%s4 + $0x38] sm:$0xff] %vm866, %v583
  %875 = vst.msk [vmem:[%s4 + $0x40] sm:$0xff] %vm866, %v588
  %876 = vst.msk [vmem:[%s4 + $0x48] sm:$0xff] %vm866, %v593
  %877 = vst.msk [vmem:[%s4 + $0x50] sm:$0xff] %vm866, %v598
  %878 = vst.msk [vmem:[%s4 + $0x58] sm:$0xff] %vm866, %v603
  %879 = vst.msk [vmem:[%s4 + $0x60] sm:$0xff] %vm866, %v608
  %880 = vst.msk [vmem:[%s4 + $0x68] sm:$0xff] %vm866, %v613
  %881 = vst.msk [vmem:[%s4 + $0x70] sm:$0xff] %vm866, %v618
  %882 = vst.msk [vmem:[%s4 + $0x78] sm:$0xff] %vm866, %v623
  %883 = vst.msk [vmem:[%s4 + $0x80] sm:$0xff] %vm866, %v628
  %884 = vst.msk [vmem:[%s4 + $0x88] sm:$0xff] %vm866, %v633
  %885 = vst.msk [vmem:[%s4 + $0x90] sm:$0xff] %vm866, %v638
  %886 = vst.msk [vmem:[%s4 + $0x98] sm:$0xff] %vm866, %v643
  %887 = vst.msk [vmem:[%s4 + $0xa0] sm:$0xff] %vm866, %v648
  %888 = vst.msk [vmem:[%s4 + $0xa8] sm:$0xff] %vm866, %v653
  %889 = vst.msk [vmem:[%s4 + $0xb0] sm:$0xff] %vm866, %v658
  %890 = vst.msk [vmem:[%s4 + $0xb8] sm:$0xff] %vm866, %v663
  %891 = vst.msk [vmem:[%s4 + $0xc0] sm:$0xff] %vm866, %v668
  %892 = vst.msk [vmem:[%s4 + $0xc8] sm:$0xff] %vm866, %v673
  %893 = vst.msk [vmem:[%s4 + $0xd0] sm:$0xff] %vm866, %v678
  %894 = vst.msk [vmem:[%s4 + $0xd8] sm:$0xff] %vm866, %v683
  %895 = vst.msk [vmem:[%s4 + $0xe0] sm:$0xff] %vm866, %v688
  %896 = vst.msk [vmem:[%s4 + $0xe8] sm:$0xff] %vm866, %v693
  %897 = vst.msk [vmem:[%s4 + $0xf0] sm:$0xff] %vm866, %v698
  %898 = vst.msk [vmem:[%s4 + $0xf8] sm:$0xff] %vm866, %v703
  %899 = vst.msk [vmem:[%s4 + $0x100] sm:$0xff] %vm866, %v708
  %900 = vst.msk [vmem:[%s4 + $0x108] sm:$0xff] %vm866, %v713
  %901 = vst.msk [vmem:[%s4 + $0x110] sm:$0xff] %vm866, %v718
  %902 = vst.msk [vmem:[%s4 + $0x118] sm:$0xff] %vm866, %v723
  %903 = vst.msk [vmem:[%s4 + $0x120] sm:$0xff] %vm866, %v728
  %904 = vst.msk [vmem:[%s4 + $0x128] sm:$0xff] %vm866, %v733
  %905 = vst.msk [vmem:[%s4 + $0x130] sm:$0xff] %vm866, %v738
  %906 = vst.msk [vmem:[%s4 + $0x138] sm:$0xff] %vm866, %v743
  %907 = vst.msk [vmem:[%s4 + $0x140] sm:$0xff] %vm866, %v748
  %908 = vst.msk [vmem:[%s4 + $0x148] sm:$0xff] %vm866, %v753
  %909 = vst.msk [vmem:[%s4 + $0x150] sm:$0xff] %vm866, %v758
  %910 = vst.msk [vmem:[%s4 + $0x158] sm:$0xff] %vm866, %v763
  %911 = vst.msk [vmem:[%s4 + $0x160] sm:$0xff] %vm866, %v768
  %912 = vst.msk [vmem:[%s4 + $0x168] sm:$0xff] %vm866, %v773
  %913 = vst.msk [vmem:[%s4 + $0x170] sm:$0xff] %vm866, %v778
  %914 = vst.msk [vmem:[%s4 + $0x178] sm:$0xff] %vm866, %v783
  %915 = vst.msk [vmem:[%s4 + $0x180] sm:$0xff] %vm866, %v788
  %916 = vst.msk [vmem:[%s4 + $0x188] sm:$0xff] %vm866, %v793
  %917 = vst.msk [vmem:[%s4 + $0x190] sm:$0xff] %vm866, %v798
  %918 = vst.msk [vmem:[%s4 + $0x198] sm:$0xff] %vm866, %v803
  %919 = vst.msk [vmem:[%s4 + $0x1a0] sm:$0xff] %vm866, %v808
  %920 = vst.msk [vmem:[%s4 + $0x1a8] sm:$0xff] %vm866, %v813
  %921 = vst.msk [vmem:[%s4 + $0x1b0] sm:$0xff] %vm866, %v818
  %922 = vst.msk [vmem:[%s4 + $0x1b8] sm:$0xff] %vm866, %v823
  %923 = vst.msk [vmem:[%s4 + $0x1c0] sm:$0xff] %vm866, %v828
  %924 = vst.msk [vmem:[%s4 + $0x1c8] sm:$0xff] %vm866, %v833
  %925 = vst.msk [vmem:[%s4 + $0x1d0] sm:$0xff] %vm866, %v838
  %926 = vst.msk [vmem:[%s4 + $0x1d8] sm:$0xff] %vm866, %v843
  %927 = vst.msk [vmem:[%s4 + $0x1e0] sm:$0xff] %vm866, %v848
  %928 = vst.msk [vmem:[%s4 + $0x1e8] sm:$0xff] %vm866, %v853
  %929 = vst.msk [vmem:[%s4 + $0x1f0] sm:$0xff] %vm866, %v858
  %930 = vst.msk [vmem:[%s4 + $0x1f8] sm:$0xff] %vm866, %v863
  // Predicated region
  $region18: #{identity_block.6} parent=0 // pred_check
    _
  $region19: #{identity_block.6} parent=0 // pred_check_branch
    %932 = sbr.rel (0) target = $region21
  $region20: #{identity_block.6} parent=0 // pred_region
    _
  $region21: #{identity_block.6} parent=0 // pred_fallthru
    _
  // Predicated region
  $region22: #{identity_block.6} parent=0 // pred_check
    _
  $region23: #{identity_block.6} parent=0 // pred_check_branch
    %934 = sbr.rel (0) target = $region25
  $region24: #{identity_block.6} parent=0 // pred_region
    _
  $region25: #{identity_block.6} parent=0 // pred_fallthru
    _

// kernel: identity_block.7
$region0: #{identity_block.7}
  #allocation0 [shape = 'u32[]', space=smem, size = 0x4, offset = 0x4, fixed_abs, tag = 'smem constant byte address 0x4 - core index']
  #allocation1 [shape = 'u32[144,128]{1,0:T(1,128)}', space=vmem, size = 0x12000, scoped, tag = 'internal scratch']
  %s0 = inlined_call_operand.vmem [shape: f32[512,4], index: 0, kind: input, shape index: {}]
  %s1 = inlined_call_operand.vmem [shape: f32[1,4], index: 1, kind: input, shape index: {}]
  %s2 = inlined_call_operand.vmem [shape: f32[1,4], index: 2, kind: input, shape index: {}]
  %s3 = inlined_call_operand.vmem [shape: f32[512,4], index: 3, kind: input, shape index: {}]
  %s4 = inlined_call_operand.vmem [shape: f32[512,4], index: 4, kind: output, shape index: {}]
  %s5 = sld [smem:[#allocation0]]
  $region26: #{identity_block.7} parent=0
    _
  %s7 = ssub.s32 1, %s5
  %s8 = scalar_select 0, %s7, %s5
  // Predicated region
  $region2: #{identity_block.7} parent=0 // pred_check
    _
  $region3: #{identity_block.7} parent=0 // pred_check_branch
    %10 = sbr.rel (0) target = $region5
  $region4: #{identity_block.7} parent=0 // pred_region
    _
  $region5: #{identity_block.7} parent=0 // pred_fallthru
    _
  // Predicated region
  $region6: #{identity_block.7} parent=0 // pred_check
    _
  $region7: #{identity_block.7} parent=0 // pred_check_branch
    %12 = sbr.rel (0) target = $region9
  $region8: #{identity_block.7} parent=0 // pred_region
    _
  $region9: #{identity_block.7} parent=0 // pred_fallthru
    _
  // Predicated region
  $region10: #{identity_block.7} parent=0 // pred_check
    _
  $region11: #{identity_block.7} parent=0 // pred_check_branch
    %14 = sbr.rel (0) target = $region13
  $region12: #{identity_block.7} parent=0 // pred_region
    _
  $region13: #{identity_block.7} parent=0 // pred_fallthru
    _
  // Predicated region
  $region14: #{identity_block.7} parent=0 // pred_check
    _
  $region15: #{identity_block.7} parent=0 // pred_check_branch
    %16 = sbr.rel (0) target = $region17
  $region16: #{identity_block.7} parent=0 // pred_region
    _
  $region17: #{identity_block.7} parent=0 // pred_fallthru
    _
  %v17 = vld [vmem:[%s0] sm:$0xff]
  %v18 = vld [vmem:[%s0 + $0x8] sm:$0xff]
  %v19 = vld [vmem:[%s0 + $0x10] sm:$0xff]
  %v20 = vld [vmem:[%s0 + $0x18] sm:$0xff]
  %v21 = vld [vmem:[%s0 + $0x20] sm:$0xff]
  %v22 = vld [vmem:[%s0 + $0x28] sm:$0xff]
  %v23 = vld [vmem:[%s0 + $0x30] sm:$0xff]
  %v24 = vld [vmem:[%s0 + $0x38] sm:$0xff]
  %v25 = vld [vmem:[%s0 + $0x40] sm:$0xff]
  %v26 = vld [vmem:[%s0 + $0x48] sm:$0xff]
  %v27 = vld [vmem:[%s0 + $0x50] sm:$0xff]
  %v28 = vld [vmem:[%s0 + $0x58] sm:$0xff]
  %v29 = vld [vmem:[%s0 + $0x60] sm:$0xff]
  %v30 = vld [vmem:[%s0 + $0x68] sm:$0xff]
  %v31 = vld [vmem:[%s0 + $0x70] sm:$0xff]
  %v32 = vld [vmem:[%s0 + $0x78] sm:$0xff]
  %v33 = vld [vmem:[%s0 + $0x80] sm:$0xff]
  %v34 = vld [vmem:[%s0 + $0x88] sm:$0xff]
  %v35 = vld [vmem:[%s0 + $0x90] sm:$0xff]
  %v36 = vld [vmem:[%s0 + $0x98] sm:$0xff]
  %v37 = vld [vmem:[%s0 + $0xa0] sm:$0xff]
  %v38 = vld [vmem:[%s0 + $0xa8] sm:$0xff]
  %v39 = vld [vmem:[%s0 + $0xb0] sm:$0xff]
  %v40 = vld [vmem:[%s0 + $0xb8] sm:$0xff]
  %v41 = vld [vmem:[%s0 + $0xc0] sm:$0xff]
  %v42 = vld [vmem:[%s0 + $0xc8] sm:$0xff]
  %v43 = vld [vmem:[%s0 + $0xd0] sm:$0xff]
  %v44 = vld [vmem:[%s0 + $0xd8] sm:$0xff]
  %v45 = vld [vmem:[%s0 + $0xe0] sm:$0xff]
  %v46 = vld [vmem:[%s0 + $0xe8] sm:$0xff]
  %v47 = vld [vmem:[%s0 + $0xf0] sm:$0xff]
  %v48 = vld [vmem:[%s0 + $0xf8] sm:$0xff]
  %v49 = vld [vmem:[%s0 + $0x100] sm:$0xff]
  %v50 = vld [vmem:[%s0 + $0x108] sm:$0xff]
  %v51 = vld [vmem:[%s0 + $0x110] sm:$0xff]
  %v52 = vld [vmem:[%s0 + $0x118] sm:$0xff]
  %v53 = vld [vmem:[%s0 + $0x120] sm:$0xff]
  %v54 = vld [vmem:[%s0 + $0x128] sm:$0xff]
  %v55 = vld [vmem:[%s0 + $0x130] sm:$0xff]
  %v56 = vld [vmem:[%s0 + $0x138] sm:$0xff]
  %v57 = vld [vmem:[%s0 + $0x140] sm:$0xff]
  %v58 = vld [vmem:[%s0 + $0x148] sm:$0xff]
  %v59 = vld [vmem:[%s0 + $0x150] sm:$0xff]
  %v60 = vld [vmem:[%s0 + $0x158] sm:$0xff]
  %v61 = vld [vmem:[%s0 + $0x160] sm:$0xff]
  %v62 = vld [vmem:[%s0 + $0x168] sm:$0xff]
  %v63 = vld [vmem:[%s0 + $0x170] sm:$0xff]
  %v64 = vld [vmem:[%s0 + $0x178] sm:$0xff]
  %v65 = vld [vmem:[%s0 + $0x180] sm:$0xff]
  %v66 = vld [vmem:[%s0 + $0x188] sm:$0xff]
  %v67 = vld [vmem:[%s0 + $0x190] sm:$0xff]
  %v68 = vld [vmem:[%s0 + $0x198] sm:$0xff]
  %v69 = vld [vmem:[%s0 + $0x1a0] sm:$0xff]
  %v70 = vld [vmem:[%s0 + $0x1a8] sm:$0xff]
  %v71 = vld [vmem:[%s0 + $0x1b0] sm:$0xff]
  %v72 = vld [vmem:[%s0 + $0x1b8] sm:$0xff]
  %v73 = vld [vmem:[%s0 + $0x1c0] sm:$0xff]
  %v74 = vld [vmem:[%s0 + $0x1c8] sm:$0xff]
  %v75 = vld [vmem:[%s0 + $0x1d0] sm:$0xff]
  %v76 = vld [vmem:[%s0 + $0x1d8] sm:$0xff]
  %v77 = vld [vmem:[%s0 + $0x1e0] sm:$0xff]
  %v78 = vld [vmem:[%s0 + $0x1e8] sm:$0xff]
  %v79 = vld [vmem:[%s0 + $0x1f0] sm:$0xff]
  %v80 = vld [vmem:[%s0 + $0x1f8] sm:$0xff]
  %v81 = vld [vmem:[%s1] sm:$0x1]
  %v83 = vlaneseq
  %v84 = vshrl.u32 %v83, 7
  %v85 = vsub.s32 0, %v84
  %v86 = vrot.slane %v81, %v85
  %v88 = vmul.f32 %v17, %v86
  %v89 = vmul.f32 %v18, %v86
  %v90 = vmul.f32 %v19, %v86
  %v91 = vmul.f32 %v20, %v86
  %v92 = vmul.f32 %v21, %v86
  %v93 = vmul.f32 %v22, %v86
  %v94 = vmul.f32 %v23, %v86
  %v95 = vmul.f32 %v24, %v86
  %v96 = vmul.f32 %v25, %v86
  %v97 = vmul.f32 %v26, %v86
  %v98 = vmul.f32 %v27, %v86
  %v99 = vmul.f32 %v28, %v86
  %v100 = vmul.f32 %v29, %v86
  %v101 = vmul.f32 %v30, %v86
  %v102 = vmul.f32 %v31, %v86
  %v103 = vmul.f32 %v32, %v86
  %v104 = vmul.f32 %v33, %v86
  %v105 = vmul.f32 %v34, %v86
  %v106 = vmul.f32 %v35, %v86
  %v107 = vmul.f32 %v36, %v86
  %v108 = vmul.f32 %v37, %v86
  %v109 = vmul.f32 %v38, %v86
  %v110 = vmul.f32 %v39, %v86
  %v111 = vmul.f32 %v40, %v86
  %v112 = vmul.f32 %v41, %v86
  %v113 = vmul.f32 %v42, %v86
  %v114 = vmul.f32 %v43, %v86
  %v115 = vmul.f32 %v44, %v86
  %v116 = vmul.f32 %v45, %v86
  %v117 = vmul.f32 %v46, %v86
  %v118 = vmul.f32 %v47, %v86
  %v119 = vmul.f32 %v48, %v86
  %v120 = vmul.f32 %v49, %v86
  %v121 = vmul.f32 %v50, %v86
  %v122 = vmul.f32 %v51, %v86
  %v123 = vmul.f32 %v52, %v86
  %v124 = vmul.f32 %v53, %v86
  %v125 = vmul.f32 %v54, %v86
  %v126 = vmul.f32 %v55, %v86
  %v127 = vmul.f32 %v56, %v86
  %v128 = vmul.f32 %v57, %v86
  %v129 = vmul.f32 %v58, %v86
  %v130 = vmul.f32 %v59, %v86
  %v131 = vmul.f32 %v60, %v86
  %v132 = vmul.f32 %v61, %v86
  %v133 = vmul.f32 %v62, %v86
  %v134 = vmul.f32 %v63, %v86
  %v135 = vmul.f32 %v64, %v86
  %v136 = vmul.f32 %v65, %v86
  %v137 = vmul.f32 %v66, %v86
  %v138 = vmul.f32 %v67, %v86
  %v139 = vmul.f32 %v68, %v86
  %v140 = vmul.f32 %v69, %v86
  %v141 = vmul.f32 %v70, %v86
  %v142 = vmul.f32 %v71, %v86
  %v143 = vmul.f32 %v72, %v86
  %v144 = vmul.f32 %v73, %v86
  %v145 = vmul.f32 %v74, %v86
  %v146 = vmul.f32 %v75, %v86
  %v147 = vmul.f32 %v76, %v86
  %v148 = vmul.f32 %v77, %v86
  %v149 = vmul.f32 %v78, %v86
  %v150 = vmul.f32 %v79, %v86
  %v151 = vmul.f32 %v80, %v86
  %v152 = vld [vmem:[%s2] sm:$0x1]
  %v154 = vlaneseq
  %v155 = vshrl.u32 %v154, 7
  %v156 = vsub.s32 0, %v155
  %v157 = vrot.slane %v152, %v156
  %v159 = vadd.f32 %v88, %v157
  %v160 = vadd.f32 %v89, %v157
  %v161 = vadd.f32 %v90, %v157
  %v162 = vadd.f32 %v91, %v157
  %v163 = vadd.f32 %v92, %v157
  %v164 = vadd.f32 %v93, %v157
  %v165 = vadd.f32 %v94, %v157
  %v166 = vadd.f32 %v95, %v157
  %v167 = vadd.f32 %v96, %v157
  %v168 = vadd.f32 %v97, %v157
  %v169 = vadd.f32 %v98, %v157
  %v170 = vadd.f32 %v99, %v157
  %v171 = vadd.f32 %v100, %v157
  %v172 = vadd.f32 %v101, %v157
  %v173 = vadd.f32 %v102, %v157
  %v174 = vadd.f32 %v103, %v157
  %v175 = vadd.f32 %v104, %v157
  %v176 = vadd.f32 %v105, %v157
  %v177 = vadd.f32 %v106, %v157
  %v178 = vadd.f32 %v107, %v157
  %v179 = vadd.f32 %v108, %v157
  %v180 = vadd.f32 %v109, %v157
  %v181 = vadd.f32 %v110, %v157
  %v182 = vadd.f32 %v111, %v157
  %v183 = vadd.f32 %v112, %v157
  %v184 = vadd.f32 %v113, %v157
  %v185 = vadd.f32 %v114, %v157
  %v186 = vadd.f32 %v115, %v157
  %v187 = vadd.f32 %v116, %v157
  %v188 = vadd.f32 %v117, %v157
  %v189 = vadd.f32 %v118, %v157
  %v190 = vadd.f32 %v119, %v157
  %v191 = vadd.f32 %v120, %v157
  %v192 = vadd.f32 %v121, %v157
  %v193 = vadd.f32 %v122, %v157
  %v194 = vadd.f32 %v123, %v157
  %v195 = vadd.f32 %v124, %v157
  %v196 = vadd.f32 %v125, %v157
  %v197 = vadd.f32 %v126, %v157
  %v198 = vadd.f32 %v127, %v157
  %v199 = vadd.f32 %v128, %v157
  %v200 = vadd.f32 %v129, %v157
  %v201 = vadd.f32 %v130, %v157
  %v202 = vadd.f32 %v131, %v157
  %v203 = vadd.f32 %v132, %v157
  %v204 = vadd.f32 %v133, %v157
  %v205 = vadd.f32 %v134, %v157
  %v206 = vadd.f32 %v135, %v157
  %v207 = vadd.f32 %v136, %v157
  %v208 = vadd.f32 %v137, %v157
  %v209 = vadd.f32 %v138, %v157
  %v210 = vadd.f32 %v139, %v157
  %v211 = vadd.f32 %v140, %v157
  %v212 = vadd.f32 %v141, %v157
  %v213 = vadd.f32 %v142, %v157
  %v214 = vadd.f32 %v143, %v157
  %v215 = vadd.f32 %v144, %v157
  %v216 = vadd.f32 %v145, %v157
  %v217 = vadd.f32 %v146, %v157
  %v218 = vadd.f32 %v147, %v157
  %v219 = vadd.f32 %v148, %v157
  %v220 = vadd.f32 %v149, %v157
  %v221 = vadd.f32 %v150, %v157
  %v222 = vadd.f32 %v151, %v157
  %v223 = vld [vmem:[%s3] sm:$0xff]
  %v224 = vld [vmem:[%s3 + $0x8] sm:$0xff]
  %v225 = vld [vmem:[%s3 + $0x10] sm:$0xff]
  %v226 = vld [vmem:[%s3 + $0x18] sm:$0xff]
  %v227 = vld [vmem:[%s3 + $0x20] sm:$0xff]
  %v228 = vld [vmem:[%s3 + $0x28] sm:$0xff]
  %v229 = vld [vmem:[%s3 + $0x30] sm:$0xff]
  %v230 = vld [vmem:[%s3 + $0x38] sm:$0xff]
  %v231 = vld [vmem:[%s3 + $0x40] sm:$0xff]
  %v232 = vld [vmem:[%s3 + $0x48] sm:$0xff]
  %v233 = vld [vmem:[%s3 + $0x50] sm:$0xff]
  %v234 = vld [vmem:[%s3 + $0x58] sm:$0xff]
  %v235 = vld [vmem:[%s3 + $0x60] sm:$0xff]
  %v236 = vld [vmem:[%s3 + $0x68] sm:$0xff]
  %v237 = vld [vmem:[%s3 + $0x70] sm:$0xff]
  %v238 = vld [vmem:[%s3 + $0x78] sm:$0xff]
  %v239 = vld [vmem:[%s3 + $0x80] sm:$0xff]
  %v240 = vld [vmem:[%s3 + $0x88] sm:$0xff]
  %v241 = vld [vmem:[%s3 + $0x90] sm:$0xff]
  %v242 = vld [vmem:[%s3 + $0x98] sm:$0xff]
  %v243 = vld [vmem:[%s3 + $0xa0] sm:$0xff]
  %v244 = vld [vmem:[%s3 + $0xa8] sm:$0xff]
  %v245 = vld [vmem:[%s3 + $0xb0] sm:$0xff]
  %v246 = vld [vmem:[%s3 + $0xb8] sm:$0xff]
  %v247 = vld [vmem:[%s3 + $0xc0] sm:$0xff]
  %v248 = vld [vmem:[%s3 + $0xc8] sm:$0xff]
  %v249 = vld [vmem:[%s3 + $0xd0] sm:$0xff]
  %v250 = vld [vmem:[%s3 + $0xd8] sm:$0xff]
  %v251 = vld [vmem:[%s3 + $0xe0] sm:$0xff]
  %v252 = vld [vmem:[%s3 + $0xe8] sm:$0xff]
  %v253 = vld [vmem:[%s3 + $0xf0] sm:$0xff]
  %v254 = vld [vmem:[%s3 + $0xf8] sm:$0xff]
  %v255 = vld [vmem:[%s3 + $0x100] sm:$0xff]
  %v256 = vld [vmem:[%s3 + $0x108] sm:$0xff]
  %v257 = vld [vmem:[%s3 + $0x110] sm:$0xff]
  %v258 = vld [vmem:[%s3 + $0x118] sm:$0xff]
  %v259 = vld [vmem:[%s3 + $0x120] sm:$0xff]
  %v260 = vld [vmem:[%s3 + $0x128] sm:$0xff]
  %v261 = vld [vmem:[%s3 + $0x130] sm:$0xff]
  %v262 = vld [vmem:[%s3 + $0x138] sm:$0xff]
  %v263 = vld [vmem:[%s3 + $0x140] sm:$0xff]
  %v264 = vld [vmem:[%s3 + $0x148] sm:$0xff]
  %v265 = vld [vmem:[%s3 + $0x150] sm:$0xff]
  %v266 = vld [vmem:[%s3 + $0x158] sm:$0xff]
  %v267 = vld [vmem:[%s3 + $0x160] sm:$0xff]
  %v268 = vld [vmem:[%s3 + $0x168] sm:$0xff]
  %v269 = vld [vmem:[%s3 + $0x170] sm:$0xff]
  %v270 = vld [vmem:[%s3 + $0x178] sm:$0xff]
  %v271 = vld [vmem:[%s3 + $0x180] sm:$0xff]
  %v272 = vld [vmem:[%s3 + $0x188] sm:$0xff]
  %v273 = vld [vmem:[%s3 + $0x190] sm:$0xff]
  %v274 = vld [vmem:[%s3 + $0x198] sm:$0xff]
  %v275 = vld [vmem:[%s3 + $0x1a0] sm:$0xff]
  %v276 = vld [vmem:[%s3 + $0x1a8] sm:$0xff]
  %v277 = vld [vmem:[%s3 + $0x1b0] sm:$0xff]
  %v278 = vld [vmem:[%s3 + $0x1b8] sm:$0xff]
  %v279 = vld [vmem:[%s3 + $0x1c0] sm:$0xff]
  %v280 = vld [vmem:[%s3 + $0x1c8] sm:$0xff]
  %v281 = vld [vmem:[%s3 + $0x1d0] sm:$0xff]
  %v282 = vld [vmem:[%s3 + $0x1d8] sm:$0xff]
  %v283 = vld [vmem:[%s3 + $0x1e0] sm:$0xff]
  %v284 = vld [vmem:[%s3 + $0x1e8] sm:$0xff]
  %v285 = vld [vmem:[%s3 + $0x1f0] sm:$0xff]
  %v286 = vld [vmem:[%s3 + $0x1f8] sm:$0xff]
  %v287 = vadd.f32 %v159, %v223
  %v288 = vadd.f32 %v160, %v224
  %v289 = vadd.f32 %v161, %v225
  %v290 = vadd.f32 %v162, %v226
  %v291 = vadd.f32 %v163, %v227
  %v292 = vadd.f32 %v164, %v228
  %v293 = vadd.f32 %v165, %v229
  %v294 = vadd.f32 %v166, %v230
  %v295 = vadd.f32 %v167, %v231
  %v296 = vadd.f32 %v168, %v232
  %v297 = vadd.f32 %v169, %v233
  %v298 = vadd.f32 %v170, %v234
  %v299 = vadd.f32 %v171, %v235
  %v300 = vadd.f32 %v172, %v236
  %v301 = vadd.f32 %v173, %v237
  %v302 = vadd.f32 %v174, %v238
  %v303 = vadd.f32 %v175, %v239
  %v304 = vadd.f32 %v176, %v240
  %v305 = vadd.f32 %v177, %v241
  %v306 = vadd.f32 %v178, %v242
  %v307 = vadd.f32 %v179, %v243
  %v308 = vadd.f32 %v180, %v244
  %v309 = vadd.f32 %v181, %v245
  %v310 = vadd.f32 %v182, %v246
  %v311 = vadd.f32 %v183, %v247
  %v312 = vadd.f32 %v184, %v248
  %v313 = vadd.f32 %v185, %v249
  %v314 = vadd.f32 %v186, %v250
  %v315 = vadd.f32 %v187, %v251
  %v316 = vadd.f32 %v188, %v252
  %v317 = vadd.f32 %v189, %v253
  %v318 = vadd.f32 %v190, %v254
  %v319 = vadd.f32 %v191, %v255
  %v320 = vadd.f32 %v192, %v256
  %v321 = vadd.f32 %v193, %v257
  %v322 = vadd.f32 %v194, %v258
  %v323 = vadd.f32 %v195, %v259
  %v324 = vadd.f32 %v196, %v260
  %v325 = vadd.f32 %v197, %v261
  %v326 = vadd.f32 %v198, %v262
  %v327 = vadd.f32 %v199, %v263
  %v328 = vadd.f32 %v200, %v264
  %v329 = vadd.f32 %v201, %v265
  %v330 = vadd.f32 %v202, %v266
  %v331 = vadd.f32 %v203, %v267
  %v332 = vadd.f32 %v204, %v268
  %v333 = vadd.f32 %v205, %v269
  %v334 = vadd.f32 %v206, %v270
  %v335 = vadd.f32 %v207, %v271
  %v336 = vadd.f32 %v208, %v272
  %v337 = vadd.f32 %v209, %v273
  %v338 = vadd.f32 %v210, %v274
  %v339 = vadd.f32 %v211, %v275
  %v340 = vadd.f32 %v212, %v276
  %v341 = vadd.f32 %v213, %v277
  %v342 = vadd.f32 %v214, %v278
  %v343 = vadd.f32 %v215, %v279
  %v344 = vadd.f32 %v216, %v280
  %v345 = vadd.f32 %v217, %v281
  %v346 = vadd.f32 %v218, %v282
  %v347 = vadd.f32 %v219, %v283
  %v348 = vadd.f32 %v220, %v284
  %v349 = vadd.f32 %v221, %v285
  %v350 = vadd.f32 %v222, %v286
  %v351 = vmax.f32 %v287, 0.0
  %v352 = vmax.f32 %v288, 0.0
  %v353 = vmax.f32 %v289, 0.0
  %v354 = vmax.f32 %v290, 0.0
  %v355 = vmax.f32 %v291, 0.0
  %v356 = vmax.f32 %v292, 0.0
  %v357 = vmax.f32 %v293, 0.0
  %v358 = vmax.f32 %v294, 0.0
  %v359 = vmax.f32 %v295, 0.0
  %v360 = vmax.f32 %v296, 0.0
  %v361 = vmax.f32 %v297, 0.0
  %v362 = vmax.f32 %v298, 0.0
  %v363 = vmax.f32 %v299, 0.0
  %v364 = vmax.f32 %v300, 0.0
  %v365 = vmax.f32 %v301, 0.0
  %v366 = vmax.f32 %v302, 0.0
  %v367 = vmax.f32 %v303, 0.0
  %v368 = vmax.f32 %v304, 0.0
  %v369 = vmax.f32 %v305, 0.0
  %v370 = vmax.f32 %v306, 0.0
  %v371 = vmax.f32 %v307, 0.0
  %v372 = vmax.f32 %v308, 0.0
  %v373 = vmax.f32 %v309, 0.0
  %v374 = vmax.f32 %v310, 0.0
  %v375 = vmax.f32 %v311, 0.0
  %v376 = vmax.f32 %v312, 0.0
  %v377 = vmax.f32 %v313, 0.0
  %v378 = vmax.f32 %v314, 0.0
  %v379 = vmax.f32 %v315, 0.0
  %v380 = vmax.f32 %v316, 0.0
  %v381 = vmax.f32 %v317, 0.0
  %v382 = vmax.f32 %v318, 0.0
  %v383 = vmax.f32 %v319, 0.0
  %v384 = vmax.f32 %v320, 0.0
  %v385 = vmax.f32 %v321, 0.0
  %v386 = vmax.f32 %v322, 0.0
  %v387 = vmax.f32 %v323, 0.0
  %v388 = vmax.f32 %v324, 0.0
  %v389 = vmax.f32 %v325, 0.0
  %v390 = vmax.f32 %v326, 0.0
  %v391 = vmax.f32 %v327, 0.0
  %v392 = vmax.f32 %v328, 0.0
  %v393 = vmax.f32 %v329, 0.0
  %v394 = vmax.f32 %v330, 0.0
  %v395 = vmax.f32 %v331, 0.0
  %v396 = vmax.f32 %v332, 0.0
  %v397 = vmax.f32 %v333, 0.0
  %v398 = vmax.f32 %v334, 0.0
  %v399 = vmax.f32 %v335, 0.0
  %v400 = vmax.f32 %v336, 0.0
  %v401 = vmax.f32 %v337, 0.0
  %v402 = vmax.f32 %v338, 0.0
  %v403 = vmax.f32 %v339, 0.0
  %v404 = vmax.f32 %v340, 0.0
  %v405 = vmax.f32 %v341, 0.0
  %v406 = vmax.f32 %v342, 0.0
  %v407 = vmax.f32 %v343, 0.0
  %v408 = vmax.f32 %v344, 0.0
  %v409 = vmax.f32 %v345, 0.0
  %v410 = vmax.f32 %v346, 0.0
  %v411 = vmax.f32 %v347, 0.0
  %v412 = vmax.f32 %v348, 0.0
  %v413 = vmax.f32 %v349, 0.0
  %v414 = vmax.f32 %v350, 0.0
  %vm415 = vcmask 31744
  %416 = vst.msk [vmem:[%s4] sm:$0xff] %vm415, %v351
  %417 = vst.msk [vmem:[%s4 + $0x8] sm:$0xff] %vm415, %v352
  %418 = vst.msk [vmem:[%s4 + $0x10] sm:$0xff] %vm415, %v353
  %419 = vst.msk [vmem:[%s4 + $0x18] sm:$0xff] %vm415, %v354
  %420 = vst.msk [vmem:[%s4 + $0x20] sm:$0xff] %vm415, %v355
  %421 = vst.msk [vmem:[%s4 + $0x28] sm:$0xff] %vm415, %v356
  %422 = vst.msk [vmem:[%s4 + $0x30] sm:$0xff] %vm415, %v357
  %423 = vst.msk [vmem:[%s4 + $0x38] sm:$0xff] %vm415, %v358
  %424 = vst.msk [vmem:[%s4 + $0x40] sm:$0xff] %vm415, %v359
  %425 = vst.msk [vmem:[%s4 + $0x48] sm:$0xff] %vm415, %v360
  %426 = vst.msk [vmem:[%s4 + $0x50] sm:$0xff] %vm415, %v361
  %427 = vst.msk [vmem:[%s4 + $0x58] sm:$0xff] %vm415, %v362
  %428 = vst.msk [vmem:[%s4 + $0x60] sm:$0xff] %vm415, %v363
  %429 = vst.msk [vmem:[%s4 + $0x68] sm:$0xff] %vm415, %v364
  %430 = vst.msk [vmem:[%s4 + $0x70] sm:$0xff] %vm415, %v365
  %431 = vst.msk [vmem:[%s4 + $0x78] sm:$0xff] %vm415, %v366
  %432 = vst.msk [vmem:[%s4 + $0x80] sm:$0xff] %vm415, %v367
  %433 = vst.msk [vmem:[%s4 + $0x88] sm:$0xff] %vm415, %v368
  %434 = vst.msk [vmem:[%s4 + $0x90] sm:$0xff] %vm415, %v369
  %435 = vst.msk [vmem:[%s4 + $0x98] sm:$0xff] %vm415, %v370
  %436 = vst.msk [vmem:[%s4 + $0xa0] sm:$0xff] %vm415, %v371
  %437 = vst.msk [vmem:[%s4 + $0xa8] sm:$0xff] %vm415, %v372
  %438 = vst.msk [vmem:[%s4 + $0xb0] sm:$0xff] %vm415, %v373
  %439 = vst.msk [vmem:[%s4 + $0xb8] sm:$0xff] %vm415, %v374
  %440 = vst.msk [vmem:[%s4 + $0xc0] sm:$0xff] %vm415, %v375
  %441 = vst.msk [vmem:[%s4 + $0xc8] sm:$0xff] %vm415, %v376
  %442 = vst.msk [vmem:[%s4 + $0xd0] sm:$0xff] %vm415, %v377
  %443 = vst.msk [vmem:[%s4 + $0xd8] sm:$0xff] %vm415, %v378
  %444 = vst.msk [vmem:[%s4 + $0xe0] sm:$0xff] %vm415, %v379
  %445 = vst.msk [vmem:[%s4 + $0xe8] sm:$0xff] %vm415, %v380
  %446 = vst.msk [vmem:[%s4 + $0xf0] sm:$0xff] %vm415, %v381
  %447 = vst.msk [vmem:[%s4 + $0xf8] sm:$0xff] %vm415, %v382
  %448 = vst.msk [vmem:[%s4 + $0x100] sm:$0xff] %vm415, %v383
  %449 = vst.msk [vmem:[%s4 + $0x108] sm:$0xff] %vm415, %v384
  %450 = vst.msk [vmem:[%s4 + $0x110] sm:$0xff] %vm415, %v385
  %451 = vst.msk [vmem:[%s4 + $0x118] sm:$0xff] %vm415, %v386
  %452 = vst.msk [vmem:[%s4 + $0x120] sm:$0xff] %vm415, %v387
  %453 = vst.msk [vmem:[%s4 + $0x128] sm:$0xff] %vm415, %v388
  %454 = vst.msk [vmem:[%s4 + $0x130] sm:$0xff] %vm415, %v389
  %455 = vst.msk [vmem:[%s4 + $0x138] sm:$0xff] %vm415, %v390
  %456 = vst.msk [vmem:[%s4 + $0x140] sm:$0xff] %vm415, %v391
  %457 = vst.msk [vmem:[%s4 + $0x148] sm:$0xff] %vm415, %v392
  %458 = vst.msk [vmem:[%s4 + $0x150] sm:$0xff] %vm415, %v393
  %459 = vst.msk [vmem:[%s4 + $0x158] sm:$0xff] %vm415, %v394
  %460 = vst.msk [vmem:[%s4 + $0x160] sm:$0xff] %vm415, %v395
  %461 = vst.msk [vmem:[%s4 + $0x168] sm:$0xff] %vm415, %v396
  %462 = vst.msk [vmem:[%s4 + $0x170] sm:$0xff] %vm415, %v397
  %463 = vst.msk [vmem:[%s4 + $0x178] sm:$0xff] %vm415, %v398
  %464 = vst.msk [vmem:[%s4 + $0x180] sm:$0xff] %vm415, %v399
  %465 = vst.msk [vmem:[%s4 + $0x188] sm:$0xff] %vm415, %v400
  %466 = vst.msk [vmem:[%s4 + $0x190] sm:$0xff] %vm415, %v401
  %467 = vst.msk [vmem:[%s4 + $0x198] sm:$0xff] %vm415, %v402
  %468 = vst.msk [vmem:[%s4 + $0x1a0] sm:$0xff] %vm415, %v403
  %469 = vst.msk [vmem:[%s4 + $0x1a8] sm:$0xff] %vm415, %v404
  %470 = vst.msk [vmem:[%s4 + $0x1b0] sm:$0xff] %vm415, %v405
  %471 = vst.msk [vmem:[%s4 + $0x1b8] sm:$0xff] %vm415, %v406
  %472 = vst.msk [vmem:[%s4 + $0x1c0] sm:$0xff] %vm415, %v407
  %473 = vst.msk [vmem:[%s4 + $0x1c8] sm:$0xff] %vm415, %v408
  %474 = vst.msk [vmem:[%s4 + $0x1d0] sm:$0xff] %vm415, %v409
  %475 = vst.msk [vmem:[%s4 + $0x1d8] sm:$0xff] %vm415, %v410
  %476 = vst.msk [vmem:[%s4 + $0x1e0] sm:$0xff] %vm415, %v411
  %477 = vst.msk [vmem:[%s4 + $0x1e8] sm:$0xff] %vm415, %v412
  %478 = vst.msk [vmem:[%s4 + $0x1f0] sm:$0xff] %vm415, %v413
  %479 = vst.msk [vmem:[%s4 + $0x1f8] sm:$0xff] %vm415, %v414
  // Predicated region
  $region18: #{identity_block.7} parent=0 // pred_check
    _
  $region19: #{identity_block.7} parent=0 // pred_check_branch
    %481 = sbr.rel (0) target = $region21
  $region20: #{identity_block.7} parent=0 // pred_region
    _
  $region21: #{identity_block.7} parent=0 // pred_fallthru
    _
  // Predicated region
  $region22: #{identity_block.7} parent=0 // pred_check
    _
  $region23: #{identity_block.7} parent=0 // pred_check_branch
    %483 = sbr.rel (0) target = $region25
  $region24: #{identity_block.7} parent=0 // pred_region
    _
  $region25: #{identity_block.7} parent=0 // pred_fallthru
    _

// kernel: identity_block.5
$region0: #{identity_block.5}
  #allocation0 [shape = 'u32[]', space=smem, size = 0x4, offset = 0x4, fixed_abs, tag = 'smem constant byte address 0x4 - core index']
  #allocation1 [shape = 'u32[144,128]{1,0:T(1,128)}', space=vmem, size = 0x12000, scoped, tag = 'internal scratch']
  #allocation2 [shape = 'f32[332,8]{1,0:T(8,128)}', space=vmem, size = 0x2a000, scoped, tag = 'scratch operand']
  #allocation3 [shape = 'f32[288,72]{1,0:T(8,128)}', space=vmem, size = 0x24000, scoped, tag = 'scratch operand']
  %s0 = inlined_call_operand.vmem [shape: f32[2,16,16,8], index: 0, kind: input, shape index: {}]
  %s1 = inlined_call_operand.vmem [shape: f32[1,8], index: 1, kind: input, shape index: {}]
  %s2 = inlined_call_operand.vmem [shape: f32[1,8], index: 2, kind: input, shape index: {}]
  %s3 = inlined_call_operand.vmem [shape: f32[72,8], index: 3, kind: input, shape index: {}]
  %s4 = inlined_call_operand.vmem [shape: f32[2,16,16,8], index: 4, kind: output, shape index: {}]
  %s5 = sld [smem:[#allocation0]]
  $region49: #{identity_block.5} parent=0
    _
  %s7 = ssub.s32 1, %s5
  %s8 = scalar_select 0, %s7, %s5
  loop: start=0, step=1, limit=4
  $region2: #{identity_block.5} parent=0 // loop_pre_header
    _
  $region3: #{identity_block.5} parent=0 // loop_header
    %s10 = sphi 0, %s14
    %p11 = scmp.ge.s32.totalorder %s10, 4
    %s20 = sphi 0, %s22
    %s23 = sphi 0, %s20
    %s24 = sphi 0, %s23
    %s40 = sphi 0, %s24
    %s44 = sphi 0, %s44
    %s46 = sphi 0, %s44
    %s47 = sphi 0, %s46
    %s61 = sphi 0, %s47
    %s65 = sphi 0, %s65
    %s67 = sphi 0, %s65
    %s68 = sphi 0, %s67
    %s82 = sphi 0, %s68
    %s86 = sphi 0, %s86
    %s88 = sphi 0, %s86
    %s89 = sphi 0, %s88
    %s103 = sphi 0, %s89
    %s109 = sphi 0, %s111
    %s112 = sphi 0, %s109
    %s113 = sphi 0, %s112
    %s129 = sphi 0, %s113
  $region4: #{identity_block.5} parent=0 // loop_header_branch
    %13 = sbr.rel (%p11) target = $region8
  $region5: #{identity_block.5} parent=0 // loop_body
    %s15 = ssub.s32 %s10, 1
    %s16 = ssub.s32 %s10, 2
    %s17 = sadd.s32 %s10, 1
    %s18 = ssub.s32 %s10, %s17
    %p19 = scmp.eq.s32.totalorder %s18, 0
    %s21 = sadd.s32 %s20, 1
    %s22 = scalar_select %p19, %s20, %s21
    %p25 = pneg %p19
    %p26 = scmp.eq.s32.totalorder %s10, 1
    %p27 = por %p25, %p26
    %p28 = scmp.ne.s32.totalorder %s20, %s23
    %p29 = scmp.eq.s32.totalorder %s10, 0
    %p30 = por %p28, %p29
    %p31 = scmp.ne.s32.totalorder %s20, %s23
    %p32 = scmp.eq.s32.totalorder %s15, 1
    %p33 = por %p31, %p32
    %p34 = scmp.ne.s32.totalorder %s23, %s24
    %p35 = scmp.eq.s32.totalorder %s15, 0
    %p36 = por %p34, %p35
    %p37 = scmp.ne.s32.totalorder %s23, %s24
    %p38 = scmp.eq.s32.totalorder %s16, 1
    %p39 = por %p37, %p38
    %p41 = scmp.ne.s32.totalorder %s24, %s40
    %p42 = scmp.eq.s32.totalorder %s16, 0
    %p43 = por %p41, %p42
    %s45 = sadd.s32 %s44, 1
    %p48 = scmp.eq.s32.totalorder %s10, 1
    %p49 = scmp.ne.s32.totalorder %s44, %s46
    %p50 = scmp.eq.s32.totalorder %s10, 0
    %p51 = por %p49, %p50
    %p52 = scmp.ne.s32.totalorder %s44, %s46
    %p53 = scmp.eq.s32.totalorder %s15, 1
    %p54 = por %p52, %p53
    %p55 = scmp.ne.s32.totalorder %s46, %s47
    %p56 = scmp.eq.s32.totalorder %s15, 0
    %p57 = por %p55, %p56
    %p58 = scmp.ne.s32.totalorder %s46, %s47
    %p59 = scmp.eq.s32.totalorder %s16, 1
    %p60 = por %p58, %p59
    %p62 = scmp.ne.s32.totalorder %s47, %s61
    %p63 = scmp.eq.s32.totalorder %s16, 0
    %p64 = por %p62, %p63
    %s66 = sadd.s32 %s65, 1
    %p69 = scmp.eq.s32.totalorder %s10, 1
    %p70 = scmp.ne.s32.totalorder %s65, %s67
    %p71 = scmp.eq.s32.totalorder %s10, 0
    %p72 = por %p70, %p71
    %p73 = scmp.ne.s32.totalorder %s65, %s67
    %p74 = scmp.eq.s32.totalorder %s15, 1
    %p75 = por %p73, %p74
    %p76 = scmp.ne.s32.totalorder %s67, %s68
    %p77 = scmp.eq.s32.totalorder %s15, 0
    %p78 = por %p76, %p77
    %p79 = scmp.ne.s32.totalorder %s67, %s68
    %p80 = scmp.eq.s32.totalorder %s16, 1
    %p81 = por %p79, %p80
    %p83 = scmp.ne.s32.totalorder %s68, %s82
    %p84 = scmp.eq.s32.totalorder %s16, 0
    %p85 = por %p83, %p84
    %s87 = sadd.s32 %s86, 1
    %p90 = scmp.eq.s32.totalorder %s10, 1
    %p91 = scmp.ne.s32.totalorder %s86, %s88
    %p92 = scmp.eq.s32.totalorder %s10, 0
    %p93 = por %p91, %p92
    %p94 = scmp.ne.s32.totalorder %s86, %s88
    %p95 = scmp.eq.s32.totalorder %s15, 1
    %p96 = por %p94, %p95
    %p97 = scmp.ne.s32.totalorder %s88, %s89
    %p98 = scmp.eq.s32.totalorder %s15, 0
    %p99 = por %p97, %p98
    %p100 = scmp.ne.s32.totalorder %s88, %s89
    %p101 = scmp.eq.s32.totalorder %s16, 1
    %p102 = por %p100, %p101
    %p104 = scmp.ne.s32.totalorder %s89, %s103
    %p105 = scmp.eq.s32.totalorder %s16, 0
    %p106 = por %p104, %p105
    %s107 = ssub.s32 %s10, %s17
    %p108 = scmp.eq.s32.totalorder %s107, 0
    %s110 = sadd.s32 %s109, 1
    %s111 = scalar_select %p108, %s109, %s110
    %p114 = pneg %p108
    %p115 = scmp.eq.s32.totalorder %s10, 1
    %p116 = por %p114, %p115
    %p117 = scmp.ne.s32.totalorder %s109, %s112
    %p118 = scmp.eq.s32.totalorder %s10, 0
    %p119 = por %p117, %p118
    %p120 = scmp.ne.s32.totalorder %s109, %s112
    %p121 = scmp.eq.s32.totalorder %s15, 1
    %p122 = por %p120, %p121
    %p123 = scmp.ne.s32.totalorder %s112, %s113
    %p124 = scmp.eq.s32.totalorder %s15, 0
    %p125 = por %p123, %p124
    %p126 = scmp.ne.s32.totalorder %s112, %s113
    %p127 = scmp.eq.s32.totalorder %s16, 1
    %p128 = por %p126, %p127
    %p130 = scmp.ne.s32.totalorder %s113, %s129
    %p131 = scmp.eq.s32.totalorder %s16, 0
    %p132 = por %p130, %p131
    %p133 = scmp.le.s32.totalorder 1, %s10
    %p134 = scmp.lt.s32.totalorder %s10, 3
    %p135 = pnand %p133, %p134
    %p136 = pneg %p135
    // Predicated region
    $region9: #{identity_block.5} parent=5 // pred_check
      _
    $region10: #{identity_block.5} parent=5 // pred_check_branch
      %138 = sbr.rel (%p135) target = $region12
    $region11: #{identity_block.5} parent=5 // pred_region
      %s139 = ssub.s32 %s10, 1
      // Predicated region
      $region13: #{identity_block.5} parent=11 // pred_check
        %p140 = pneg %p57
      $region14: #{identity_block.5} parent=11 // pred_check_branch
        %142 = sbr.rel (%p140) target = $region16
      $region15: #{identity_block.5} parent=11 // pred_region
        _
      $region16: #{identity_block.5} parent=11 // pred_fallthru
        _
      // Predicated region
      $region17: #{identity_block.5} parent=11 // pred_check
        %p143 = pneg %p78
      $region18: #{identity_block.5} parent=11 // pred_check_branch
        %145 = sbr.rel (%p143) target = $region20
      $region19: #{identity_block.5} parent=11 // pred_region
        _
      $region20: #{identity_block.5} parent=11 // pred_fallthru
        _
      // Predicated region
      $region21: #{identity_block.5} parent=11 // pred_check
        %p146 = pneg %p99
      $region22: #{identity_block.5} parent=11 // pred_check_branch
        %148 = sbr.rel (%p146) target = $region24
      $region23: #{identity_block.5} parent=11 // pred_region
        _
      $region24: #{identity_block.5} parent=11 // pred_fallthru
        _
    $region12: #{identity_block.5} parent=5 // pred_fallthru
      _
    %p149 = scmp.lt.s32.totalorder %s10, 2
    // Predicated region
    $region25: #{identity_block.5} parent=5 // pred_check
      %p150 = pneg %p149
    $region26: #{identity_block.5} parent=5 // pred_check_branch
      %152 = sbr.rel (%p150) target = $region28
    $region27: #{identity_block.5} parent=5 // pred_region
      // Predicated region
      $region29: #{identity_block.5} parent=27 // pred_check
        %p153 = pneg %p30
      $region30: #{identity_block.5} parent=27 // pred_check_branch
        %155 = sbr.rel (%p153) target = $region32
      $region31: #{identity_block.5} parent=27 // pred_region
        %p156 = scmp.lt.s32.totalorder %s10, 1
        %s157 = scalar_select %p156, %s10, 1
        %s158 = smul.addr %s157, 32
        %s159 = smul.addr %s158, 8
        %s160 = scalar_lea.vmem %s0, %s159
      $region32: #{identity_block.5} parent=27 // pred_fallthru
        _
    $region28: #{identity_block.5} parent=5 // pred_fallthru
      _
    %p161 = scmp.le.s32.totalorder 1, %s10
    %p162 = scmp.lt.s32.totalorder %s10, 3
    %p163 = pnand %p161, %p162
    %p164 = pneg %p163
    // Predicated region
    $region33: #{identity_block.5} parent=5 // pred_check
      _
    $region34: #{identity_block.5} parent=5 // pred_check_branch
      %166 = sbr.rel (%p163) target = $region36
    $region35: #{identity_block.5} parent=5 // pred_region
      %s167 = ssub.s32 %s10, 1
      %p168 = scmp.lt.s32.totalorder %s15, 1
      %s169 = scalar_select %p168, %s15, 1
      %s170 = smul.addr %s169, 32
      %s171 = smul.addr %s170, 8
      %s172 = scalar_lea.vmem %s0, %s171
      %p173 = pneg %p36
      %p174 = pneg %p33
      %p175 = pneg %p57
      %p176 = pneg %p54
      %p177 = pneg %p78
      %p178 = pneg %p75
      %p179 = pneg %p99
      %p180 = pneg %p96
      %p181 = pneg %p125
      %p182 = pneg %p122
      %p183 = scmp.lt.s32.totalorder %s15, 1
      %s184 = scalar_select %p183, %s15, 1
      %s185 = smul.addr %s184, 32
      %s186 = smul.addr %s185, 8
      %s187 = scalar_lea.vmem %s4, %s186
      %p188 = scmp.lt.s32.totalorder %s15, 1
      %s189 = scalar_select %p188, %s15, 1
      %s190 = smul.addr %s189, 32
      %s191 = smul.addr %s190, 8
      %s192 = scalar_lea.vmem %s0, %s191
      %p193 = scmp.lt.s32.totalorder %s15, 1
      %s194 = scalar_select %p193, %s15, 1
      %s195 = smul.addr %s194, 32
      %s196 = smul.addr %s195, 8
      %s197 = scalar_lea.vmem %s4, %s196
      %v198 = vld [vmem:[%s192] sm:$0xff]
      %v199 = vld [vmem:[%s192 + $0x8] sm:$0xff]
      %v200 = vld [vmem:[%s192 + $0x10] sm:$0xff]
      %v201 = vld [vmem:[%s192 + $0x18] sm:$0xff]
      %v202 = vld [vmem:[%s192 + $0x20] sm:$0xff]
      %v203 = vld [vmem:[%s192 + $0x28] sm:$0xff]
      %v204 = vld [vmem:[%s192 + $0x30] sm:$0xff]
      %v205 = vld [vmem:[%s192 + $0x38] sm:$0xff]
      %v206 = vld [vmem:[%s192 + $0x40] sm:$0xff]
      %v207 = vld [vmem:[%s192 + $0x48] sm:$0xff]
      %v208 = vld [vmem:[%s192 + $0x50] sm:$0xff]
      %v209 = vld [vmem:[%s192 + $0x58] sm:$0xff]
      %v210 = vld [vmem:[%s192 + $0x60] sm:$0xff]
      %v211 = vld [vmem:[%s192 + $0x68] sm:$0xff]
      %v212 = vld [vmem:[%s192 + $0x70] sm:$0xff]
      %v213 = vld [vmem:[%s192 + $0x78] sm:$0xff]
      %v214 = vld [vmem:[%s192 + $0x80] sm:$0xff]
      %v215 = vld [vmem:[%s192 + $0x88] sm:$0xff]
      %v216 = vld [vmem:[%s192 + $0x90] sm:$0xff]
      %v217 = vld [vmem:[%s192 + $0x98] sm:$0xff]
      %v218 = vld [vmem:[%s192 + $0xa0] sm:$0xff]
      %v219 = vld [vmem:[%s192 + $0xa8] sm:$0xff]
      %v220 = vld [vmem:[%s192 + $0xb0] sm:$0xff]
      %v221 = vld [vmem:[%s192 + $0xb8] sm:$0xff]
      %v222 = vld [vmem:[%s192 + $0xc0] sm:$0xff]
      %v223 = vld [vmem:[%s192 + $0xc8] sm:$0xff]
      %v224 = vld [vmem:[%s192 + $0xd0] sm:$0xff]
      %v225 = vld [vmem:[%s192 + $0xd8] sm:$0xff]
      %v226 = vld [vmem:[%s192 + $0xe0] sm:$0xff]
      %v227 = vld [vmem:[%s192 + $0xe8] sm:$0xff]
      %v228 = vld [vmem:[%s192 + $0xf0] sm:$0xff]
      %v229 = vld [vmem:[%s192 + $0xf8] sm:$0xff]
      %v230 = vld [vmem:[%s1] sm:$0x1]
      %v232 = vlaneseq
      %v233 = vshrl.u32 %v232, 7
      %v234 = vsub.s32 0, %v233
      %v235 = vrot.slane %v230, %v234
      %v237 = vmul.f32 %v198, %v235
      %v238 = vmul.f32 %v199, %v235
      %v239 = vmul.f32 %v200, %v235
      %v240 = vmul.f32 %v201, %v235
      %v241 = vmul.f32 %v202, %v235
      %v242 = vmul.f32 %v203, %v235
      %v243 = vmul.f32 %v204, %v235
      %v244 = vmul.f32 %v205, %v235
      %v245 = vmul.f32 %v206, %v235
      %v246 = vmul.f32 %v207, %v235
      %v247 = vmul.f32 %v208, %v235
      %v248 = vmul.f32 %v209, %v235
      %v249 = vmul.f32 %v210, %v235
      %v250 = vmul.f32 %v211, %v235
      %v251 = vmul.f32 %v212, %v235
      %v252 = vmul.f32 %v213, %v235
      %v253 = vmul.f32 %v214, %v235
      %v254 = vmul.f32 %v215, %v235
      %v255 = vmul.f32 %v216, %v235
      %v256 = vmul.f32 %v217, %v235
      %v257 = vmul.f32 %v218, %v235
      %v258 = vmul.f32 %v219, %v235
      %v259 = vmul.f32 %v220, %v235
      %v260 = vmul.f32 %v221, %v235
      %v261 = vmul.f32 %v222, %v235
      %v262 = vmul.f32 %v223, %v235
      %v263 = vmul.f32 %v224, %v235
      %v264 = vmul.f32 %v225, %v235
      %v265 = vmul.f32 %v226, %v235
      %v266 = vmul.f32 %v227, %v235
      %v267 = vmul.f32 %v228, %v235
      %v268 = vmul.f32 %v229, %v235
      %v269 = vld [vmem:[%s2] sm:$0x1]
      %v271 = vlaneseq
      %v272 = vshrl.u32 %v271, 7
      %v273 = vsub.s32 0, %v272
      %v274 = vrot.slane %v269, %v273
      %v276 = vadd.f32 %v237, %v274
      %v277 = vadd.f32 %v238, %v274
      %v278 = vadd.f32 %v239, %v274
      %v279 = vadd.f32 %v240, %v274
      %v280 = vadd.f32 %v241, %v274
      %v281 = vadd.f32 %v242, %v274
      %v282 = vadd.f32 %v243, %v274
      %v283 = vadd.f32 %v244, %v274
      %v284 = vadd.f32 %v245, %v274
      %v285 = vadd.f32 %v246, %v274
      %v286 = vadd.f32 %v247, %v274
      %v287 = vadd.f32 %v248, %v274
      %v288 = vadd.f32 %v249, %v274
      %v289 = vadd.f32 %v250, %v274
      %v290 = vadd.f32 %v251, %v274
      %v291 = vadd.f32 %v252, %v274
      %v292 = vadd.f32 %v253, %v274
      %v293 = vadd.f32 %v254, %v274
      %v294 = vadd.f32 %v255, %v274
      %v295 = vadd.f32 %v256, %v274
      %v296 = vadd.f32 %v257, %v274
      %v297 = vadd.f32 %v258, %v274
      %v298 = vadd.f32 %v259, %v274
      %v299 = vadd.f32 %v260, %v274
      %v300 = vadd.f32 %v261, %v274
      %v301 = vadd.f32 %v262, %v274
      %v302 = vadd.f32 %v263, %v274
      %v303 = vadd.f32 %v264, %v274
      %v304 = vadd.f32 %v265, %v274
      %v305 = vadd.f32 %v266, %v274
      %v306 = vadd.f32 %v267, %v274
      %v307 = vadd.f32 %v268, %v274
      %v308 = vmax.f32 %v276, 0.0
      %v309 = vmax.f32 %v277, 0.0
      %v310 = vmax.f32 %v278, 0.0
      %v311 = vmax.f32 %v279, 0.0
      %v312 = vmax.f32 %v280, 0.0
      %v313 = vmax.f32 %v281, 0.0
      %v314 = vmax.f32 %v282, 0.0
      %v315 = vmax.f32 %v283, 0.0
      %v316 = vmax.f32 %v284, 0.0
      %v317 = vmax.f32 %v285, 0.0
      %v318 = vmax.f32 %v286, 0.0
      %v319 = vmax.f32 %v287, 0.0
      %v320 = vmax.f32 %v288, 0.0
      %v321 = vmax.f32 %v289, 0.0
      %v322 = vmax.f32 %v290, 0.0
      %v323 = vmax.f32 %v291, 0.0
      %v324 = vmax.f32 %v292, 0.0
      %v325 = vmax.f32 %v293, 0.0
      %v326 = vmax.f32 %v294, 0.0
      %v327 = vmax.f32 %v295, 0.0
      %v328 = vmax.f32 %v296, 0.0
      %v329 = vmax.f32 %v297, 0.0
      %v330 = vmax.f32 %v298, 0.0
      %v331 = vmax.f32 %v299, 0.0
      %v332 = vmax.f32 %v300, 0.0
      %v333 = vmax.f32 %v301, 0.0
      %v334 = vmax.f32 %v302, 0.0
      %v335 = vmax.f32 %v303, 0.0
      %v336 = vmax.f32 %v304, 0.0
      %v337 = vmax.f32 %v305, 0.0
      %v338 = vmax.f32 %v306, 0.0
      %v339 = vmax.f32 %v307, 0.0
      %vm340 = vcmask 64512
      %341 = vst.msk [vmem:[#allocation2] sm:$0xff] %vm340, 0.0
      %342 = vst.msk [vmem:[#allocation2 + $0x8] sm:$0xff] %vm340, 0.0
      %vm343 = vcmask 59392
      %344 = vst.msk [vmem:[#allocation2 + $0x10] sm:$0x7] %vm343, 0.0
      %345 = vst.msk [vmem:[#allocation2 + $0x13] sm:$0xff] %vm340, %v308
      %346 = vst.msk [vmem:[#allocation2 + $0x1b] sm:$0xff] %vm340, %v309
      %vm347 = vcmask 58368
      %348 = vst.msk [vmem:[#allocation2 + $0x23] sm:$0x3] %vm347, 0.0
      %349 = vst.msk [vmem:[#allocation2 + $0x25] sm:$0xff] %vm340, %v310
      %350 = vst.msk [vmem:[#allocation2 + $0x2d] sm:$0xff] %vm340, %v311
      %351 = vst.msk [vmem:[#allocation2 + $0x35] sm:$0x3] %vm347, 0.0
      %352 = vst.msk [vmem:[#allocation2 + $0x37] sm:$0xff] %vm340, %v312
      %353 = vst.msk [vmem:[#allocation2 + $0x3f] sm:$0xff] %vm340, %v313
      %354 = vst.msk [vmem:[#allocation2 + $0x47] sm:$0x3] %vm347, 0.0
      %355 = vst.msk [vmem:[#allocation2 + $0x49] sm:$0xff] %vm340, %v314
      %356 = vst.msk [vmem:[#allocation2 + $0x51] sm:$0xff] %vm340, %v315
      %357 = vst.msk [vmem:[#allocation2 + $0x59] sm:$0x3] %vm347, 0.0
      %358 = vst.msk [vmem:[#allocation2 + $0x5b] sm:$0xff] %vm340, %v316
      %359 = vst.msk [vmem:[#allocation2 + $0x63] sm:$0xff] %vm340, %v317
      %360 = vst.msk [vmem:[#allocation2 + $0x6b] sm:$0x3] %vm347, 0.0
      %361 = vst.msk [vmem:[#allocation2 + $0x6d] sm:$0xff] %vm340, %v318
      %362 = vst.msk [vmem:[#allocation2 + $0x75] sm:$0xff] %vm340, %v319
      %363 = vst.msk [vmem:[#allocation2 + $0x7d] sm:$0x3] %vm347, 0.0
      %364 = vst.msk [vmem:[#allocation2 + $0x7f] sm:$0xff] %vm340, %v320
      %365 = vst.msk [vmem:[#allocation2 + $0x87] sm:$0xff] %vm340, %v321
      %366 = vst.msk [vmem:[#allocation2 + $0x8f] sm:$0x3] %vm347, 0.0
      %367 = vst.msk [vmem:[#allocation2 + $0x91] sm:$0xff] %vm340, %v322
      %368 = vst.msk [vmem:[#allocation2 + $0x99] sm:$0xff] %vm340, %v323
      %369 = vst.msk [vmem:[#allocation2 + $0xa1] sm:$0x3] %vm347, 0.0
      %370 = vst.msk [vmem:[#allocation2 + $0xa3] sm:$0xff] %vm340, %v324
      %371 = vst.msk [vmem:[#allocation2 + $0xab] sm:$0xff] %vm340, %v325
      %372 = vst.msk [vmem:[#allocation2 + $0xb3] sm:$0x3] %vm347, 0.0
      %373 = vst.msk [vmem:[#allocation2 + $0xb5] sm:$0xff] %vm340, %v326
      %374 = vst.msk [vmem:[#allocation2 + $0xbd] sm:$0xff] %vm340, %v327
      %375 = vst.msk [vmem:[#allocation2 + $0xc5] sm:$0x3] %vm347, 0.0
      %376 = vst.msk [vmem:[#allocation2 + $0xc7] sm:$0xff] %vm340, %v328
      %377 = vst.msk [vmem:[#allocation2 + $0xcf] sm:$0xff] %vm340, %v329
      %378 = vst.msk [vmem:[#allocation2 + $0xd7] sm:$0x3] %vm347, 0.0
      %379 = vst.msk [vmem:[#allocation2 + $0xd9] sm:$0xff] %vm340, %v330
      %380 = vst.msk [vmem:[#allocation2 + $0xe1] sm:$0xff] %vm340, %v331
      %381 = vst.msk [vmem:[#allocation2 + $0xe9] sm:$0x3] %vm347, 0.0
      %382 = vst.msk [vmem:[#allocation2 + $0xeb] sm:$0xff] %vm340, %v332
      %383 = vst.msk [vmem:[#allocation2 + $0xf3] sm:$0xff] %vm340, %v333
      %384 = vst.msk [vmem:[#allocation2 + $0xfb] sm:$0x3] %vm347, 0.0
      %385 = vst.msk [vmem:[#allocation2 + $0xfd] sm:$0xff] %vm340, %v334
      %386 = vst.msk [vmem:[#allocation2 + $0x105] sm:$0xff] %vm340, %v335
      %387 = vst.msk [vmem:[#allocation2 + $0x10d] sm:$0x3] %vm347, 0.0
      %388 = vst.msk [vmem:[#allocation2 + $0x10f] sm:$0xff] %vm340, %v336
      %389 = vst.msk [vmem:[#allocation2 + $0x117] sm:$0xff] %vm340, %v337
      %390 = vst.msk [vmem:[#allocation2 + $0x11f] sm:$0x3] %vm347, 0.0
      %391 = vst.msk [vmem:[#allocation2 + $0x121] sm:$0xff] %vm340, %v338
      %392 = vst.msk [vmem:[#allocation2 + $0x129] sm:$0xff] %vm340, %v339
      %393 = vst.msk [vmem:[#allocation2 + $0x131] sm:$0xff] %vm340, 0.0
      %394 = vst.msk [vmem:[#allocation2 + $0x139] sm:$0xff] %vm340, 0.0
      %395 = vst.msk [vmem:[#allocation2 + $0x141] sm:$0xff] %vm340, 0.0
      %396 = vst.msk [vmem:[#allocation2 + $0x149] sm:$0x7] %vm343, 0.0
      %v397 = vld [vmem:[#allocation2] sm:$0xff]
      %v398 = vld [vmem:[#allocation2 + $0x8] sm:$0xff]
      %v399 = vld [vmem:[#allocation2 + $0x10] sm:$0xff]
      %v400 = vld [vmem:[#allocation2 + $0x18] sm:$0xff]
      %v401 = vld [vmem:[#allocation2 + $0x20] sm:$0xff]
      %v402 = vld [vmem:[#allocation2 + $0x28] sm:$0xff]
      %v403 = vld [vmem:[#allocation2 + $0x30] sm:$0xff]
      %v404 = vld [vmem:[#allocation2 + $0x38] sm:$0xff]
      %v405 = vld [vmem:[#allocation2 + $0x40] sm:$0xff]
      %v406 = vld [vmem:[#allocation2 + $0x48] sm:$0xff]
      %v407 = vld [vmem:[#allocation2 + $0x50] sm:$0xff]
      %v408 = vld [vmem:[#allocation2 + $0x58] sm:$0xff]
      %v409 = vld [vmem:[#allocation2 + $0x60] sm:$0xff]
      %v410 = vld [vmem:[#allocation2 + $0x68] sm:$0xff]
      %v411 = vld [vmem:[#allocation2 + $0x70] sm:$0xff]
      %v412 = vld [vmem:[#allocation2 + $0x78] sm:$0xff]
      %v413 = vld [vmem:[#allocation2 + $0x80] sm:$0xff]
      %v414 = vld [vmem:[#allocation2 + $0x88] sm:$0xff]
      %v415 = vld [vmem:[#allocation2 + $0x90] sm:$0xff]
      %v416 = vld [vmem:[#allocation2 + $0x98] sm:$0xff]
      %v417 = vld [vmem:[#allocation2 + $0xa0] sm:$0xff]
      %v418 = vld [vmem:[#allocation2 + $0xa8] sm:$0xff]
      %v419 = vld [vmem:[#allocation2 + $0xb0] sm:$0xff]
      %v420 = vld [vmem:[#allocation2 + $0xb8] sm:$0xff]
      %v421 = vld [vmem:[#allocation2 + $0xc0] sm:$0xff]
      %v422 = vld [vmem:[#allocation2 + $0xc8] sm:$0xff]
      %v423 = vld [vmem:[#allocation2 + $0xd0] sm:$0xff]
      %v424 = vld [vmem:[#allocation2 + $0xd8] sm:$0xff]
      %v425 = vld [vmem:[#allocation2 + $0xe0] sm:$0xff]
      %v426 = vld [vmem:[#allocation2 + $0xe8] sm:$0xff]
      %v427 = vld [vmem:[#allocation2 + $0xf0] sm:$0xff]
      %v428 = vld [vmem:[#allocation2 + $0xf8] sm:$0xff]
      %v429 = vld [vmem:[#allocation2 + $0x100] sm:$0xff]
      %v430 = vld [vmem:[#allocation2 + $0x108] sm:$0xff]
      %v431 = vld [vmem:[#allocation2 + $0x110] sm:$0xff]
      %v432 = vld [vmem:[#allocation2 + $0x118] sm:$0xff]
      %433 = vst.msk [vmem:[#allocation3] sm:$0xff] %vm340, %v397
      %434 = vst.msk [vmem:[#allocation3 + $0x8] sm:$0xff] %vm340, %v398
      %435 = vst.msk [vmem:[#allocation3 + $0x10] sm:$0xff] %vm340, %v399
      %436 = vst.msk [vmem:[#allocation3 + $0x18] sm:$0xff] %vm340, %v400
      %437 = vst.msk [vmem:[#allocation3 + $0x20] sm:$0xff] %vm340, %v401
      %438 = vst.msk [vmem:[#allocation3 + $0x28] sm:$0xff] %vm340, %v402
      %439 = vst.msk [vmem:[#allocation3 + $0x30] sm:$0xff] %vm340, %v403
      %440 = vst.msk [vmem:[#allocation3 + $0x38] sm:$0xff] %vm340, %v404
      %441 = vst.msk [vmem:[#allocation3 + $0x40] sm:$0xff] %vm340, %v405
      %442 = vst.msk [vmem:[#allocation3 + $0x48] sm:$0xff] %vm340, %v406
      %443 = vst.msk [vmem:[#allocation3 + $0x50] sm:$0xff] %vm340, %v407
      %444 = vst.msk [vmem:[#allocation3 + $0x58] sm:$0xff] %vm340, %v408
      %445 = vst.msk [vmem:[#allocation3 + $0x60] sm:$0xff] %vm340, %v409
      %446 = vst.msk [vmem:[#allocation3 + $0x68] sm:$0xff] %vm340, %v410
      %447 = vst.msk [vmem:[#allocation3 + $0x70] sm:$0xff] %vm340, %v411
      %448 = vst.msk [vmem:[#allocation3 + $0x78] sm:$0xff] %vm340, %v412
      %449 = vst.msk [vmem:[#allocation3 + $0x80] sm:$0xff] %vm340, %v413
      %450 = vst.msk [vmem:[#allocation3 + $0x88] sm:$0xff] %vm340, %v414
      %451 = vst.msk [vmem:[#allocation3 + $0x90] sm:$0xff] %vm340, %v415
      %452 = vst.msk [vmem:[#allocation3 + $0x98] sm:$0xff] %vm340, %v416
      %453 = vst.msk [vmem:[#allocation3 + $0xa0] sm:$0xff] %vm340, %v417
      %454 = vst.msk [vmem:[#allocation3 + $0xa8] sm:$0xff] %vm340, %v418
      %455 = vst.msk [vmem:[#allocation3 + $0xb0] sm:$0xff] %vm340, %v419
      %456 = vst.msk [vmem:[#allocation3 + $0xb8] sm:$0xff] %vm340, %v420
      %457 = vst.msk [vmem:[#allocation3 + $0xc0] sm:$0xff] %vm340, %v421
      %458 = vst.msk [vmem:[#allocation3 + $0xc8] sm:$0xff] %vm340, %v422
      %459 = vst.msk [vmem:[#allocation3 + $0xd0] sm:$0xff] %vm340, %v423
      %460 = vst.msk [vmem:[#allocation3 + $0xd8] sm:$0xff] %vm340, %v424
      %461 = vst.msk [vmem:[#allocation3 + $0xe0] sm:$0xff] %vm340, %v425
      %462 = vst.msk [vmem:[#allocation3 + $0xe8] sm:$0xff] %vm340, %v426
      %463 = vst.msk [vmem:[#allocation3 + $0xf0] sm:$0xff] %vm340, %v427
      %464 = vst.msk [vmem:[#allocation3 + $0xf8] sm:$0xff] %vm340, %v428
      %465 = vst.msk [vmem:[#allocation3 + $0x100] sm:$0xff] %vm340, %v429
      %466 = vst.msk [vmem:[#allocation3 + $0x108] sm:$0xff] %vm340, %v430
      %467 = vst.msk [vmem:[#allocation3 + $0x110] sm:$0xff] %vm340, %v431
      %468 = vst.msk [vmem:[#allocation3 + $0x118] sm:$0xff] %vm340, %v432
      %v469 = vld [vmem:[#allocation2 + $0x1] sm:$0xff]
      %v470 = vld [vmem:[#allocation2 + $0x9] sm:$0xff]
      %v471 = vld [vmem:[#allocation2 + $0x11] sm:$0xff]
      %v472 = vld [vmem:[#allocation2 + $0x19] sm:$0xff]
      %v473 = vld [vmem:[#allocation2 + $0x21] sm:$0xff]
      %v474 = vld [vmem:[#allocation2 + $0x29] sm:$0xff]
      %v475 = vld [vmem:[#allocation2 + $0x31] sm:$0xff]
      %v476 = vld [vmem:[#allocation2 + $0x39] sm:$0xff]
      %v477 = vld [vmem:[#allocation2 + $0x41] sm:$0xff]
      %v478 = vld [vmem:[#allocation2 + $0x49] sm:$0xff]
      %v479 = vld [vmem:[#allocation2 + $0x51] sm:$0xff]
      %v480 = vld [vmem:[#allocation2 + $0x59] sm:$0xff]
      %v481 = vld [vmem:[#allocation2 + $0x61] sm:$0xff]
      %v482 = vld [vmem:[#allocation2 + $0x69] sm:$0xff]
      %v483 = vld [vmem:[#allocation2 + $0x71] sm:$0xff]
      %v484 = vld [vmem:[#allocation2 + $0x79] sm:$0xff]
      %v485 = vld [vmem:[#allocation2 + $0x81] sm:$0xff]
      %v486 = vld [vmem:[#allocation2 + $0x89] sm:$0xff]
      %v487 = vld [vmem:[#allocation2 + $0x91] sm:$0xff]
      %v488 = vld [vmem:[#allocation2 + $0x99] sm:$0xff]
      %v489 = vld [vmem:[#allocation2 + $0xa1] sm:$0xff]
      %v490 = vld [vmem:[#allocation2 + $0xa9] sm:$0xff]
      %v491 = vld [vmem:[#allocation2 + $0xb1] sm:$0xff]
      %v492 = vld [vmem:[#allocation2 + $0xb9] sm:$0xff]
      %v493 = vld [vmem:[#allocation2 + $0xc1] sm:$0xff]
      %v494 = vld [vmem:[#allocation2 + $0xc9] sm:$0xff]
      %v495 = vld [vmem:[#allocation2 + $0xd1] sm:$0xff]
      %v496 = vld [vmem:[#allocation2 + $0xd9] sm:$0xff]
      %v497 = vld [vmem:[#allocation2 + $0xe1] sm:$0xff]
      %v498 = vld [vmem:[#allocation2 + $0xe9] sm:$0xff]
      %v499 = vld [vmem:[#allocation2 + $0xf1] sm:$0xff]
      %v500 = vld [vmem:[#allocation2 + $0xf9] sm:$0xff]
      %v501 = vld [vmem:[#allocation2 + $0x101] sm:$0xff]
      %v502 = vld [vmem:[#allocation2 + $0x109] sm:$0xff]
      %v503 = vld [vmem:[#allocation2 + $0x111] sm:$0xff]
      %v504 = vld [vmem:[#allocation2 + $0x119] sm:$0xff]
      %541 = vrot.lane.b32.xlu0 %v469, 8
      %v542 = vpop.permute.xlu0 %541
      %543 = vrot.lane.b32.xlu0 %v470, 8
      %v544 = vpop.permute.xlu0 %543
      %545 = vrot.lane.b32.xlu0 %v471, 8
      %v546 = vpop.permute.xlu0 %545
      %547 = vrot.lane.b32.xlu0 %v472, 8
      %v548 = vpop.permute.xlu0 %547
      %549 = vrot.lane.b32.xlu0 %v473, 8
      %v550 = vpop.permute.xlu0 %549
      %551 = vrot.lane.b32.xlu0 %v474, 8
      %v552 = vpop.permute.xlu0 %551
      %553 = vrot.lane.b32.xlu0 %v475, 8
      %v554 = vpop.permute.xlu0 %553
      %555 = vrot.lane.b32.xlu0 %v476, 8
      %v556 = vpop.permute.xlu0 %555
      %557 = vrot.lane.b32.xlu0 %v477, 8
      %v558 = vpop.permute.xlu0 %557
      %559 = vrot.lane.b32.xlu0 %v478, 8
      %v560 = vpop.permute.xlu0 %559
      %561 = vrot.lane.b32.xlu0 %v479, 8
      %v562 = vpop.permute.xlu0 %561
      %563 = vrot.lane.b32.xlu0 %v480, 8
      %v564 = vpop.permute.xlu0 %563
      %565 = vrot.lane.b32.xlu0 %v481, 8
      %v566 = vpop.permute.xlu0 %565
      %567 = vrot.lane.b32.xlu0 %v482, 8
      %v568 = vpop.permute.xlu0 %567
      %569 = vrot.lane.b32.xlu0 %v483, 8
      %v570 = vpop.permute.xlu0 %569
      %571 = vrot.lane.b32.xlu0 %v484, 8
      %v572 = vpop.permute.xlu0 %571
      %573 = vrot.lane.b32.xlu0 %v485, 8
      %v574 = vpop.permute.xlu0 %573
      %575 = vrot.lane.b32.xlu0 %v486, 8
      %v576 = vpop.permute.xlu0 %575
      %577 = vrot.lane.b32.xlu0 %v487, 8
      %v578 = vpop.permute.xlu0 %577
      %579 = vrot.lane.b32.xlu0 %v488, 8
      %v580 = vpop.permute.xlu0 %579
      %581 = vrot.lane.b32.xlu0 %v489, 8
      %v582 = vpop.permute.xlu0 %581
      %583 = vrot.lane.b32.xlu0 %v490, 8
      %v584 = vpop.permute.xlu0 %583
      %585 = vrot.lane.b32.xlu0 %v491, 8
      %v586 = vpop.permute.xlu0 %585
      %587 = vrot.lane.b32.xlu0 %v492, 8
      %v588 = vpop.permute.xlu0 %587
      %589 = vrot.lane.b32.xlu0 %v493, 8
      %v590 = vpop.permute.xlu0 %589
      %591 = vrot.lane.b32.xlu0 %v494, 8
      %v592 = vpop.permute.xlu0 %591
      %593 = vrot.lane.b32.xlu0 %v495, 8
      %v594 = vpop.permute.xlu0 %593
      %595 = vrot.lane.b32.xlu0 %v496, 8
      %v596 = vpop.permute.xlu0 %595
      %597 = vrot.lane.b32.xlu0 %v497, 8
      %v598 = vpop.permute.xlu0 %597
      %599 = vrot.lane.b32.xlu0 %v498, 8
      %v600 = vpop.permute.xlu0 %599
      %601 = vrot.lane.b32.xlu0 %v499, 8
      %v602 = vpop.permute.xlu0 %601
      %603 = vrot.lane.b32.xlu0 %v500, 8
      %v604 = vpop.permute.xlu0 %603
      %605 = vrot.lane.b32.xlu0 %v501, 8
      %v606 = vpop.permute.xlu0 %605
      %607 = vrot.lane.b32.xlu0 %v502, 8
      %v608 = vpop.permute.xlu0 %607
      %609 = vrot.lane.b32.xlu0 %v503, 8
      %v610 = vpop.permute.xlu0 %609
      %611 = vrot.lane.b32.xlu0 %v504, 8
      %v612 = vpop.permute.xlu0 %611
      %vm649 = vcmask 130112
      %650 = vst.msk [vmem:[#allocation3] sm:$0xff] %vm649, %v542
      %651 = vst.msk [vmem:[#allocation3 + $0x8] sm:$0xff] %vm649, %v544
      %652 = vst.msk [vmem:[#allocation3 + $0x10] sm:$0xff] %vm649, %v546
      %653 = vst.msk [vmem:[#allocation3 + $0x18] sm:$0xff] %vm649, %v548
      %654 = vst.msk [vmem:[#allocation3 + $0x20] sm:$0xff] %vm649, %v550
      %655 = vst.msk [vmem:[#allocation3 + $0x28] sm:$0xff] %vm649, %v552
      %656 = vst.msk [vmem:[#allocation3 + $0x30] sm:$0xff] %vm649, %v554
      %657 = vst.msk [vmem:[#allocation3 + $0x38] sm:$0xff] %vm649, %v556
      %658 = vst.msk [vmem:[#allocation3 + $0x40] sm:$0xff] %vm649, %v558
      %659 = vst.msk [vmem:[#allocation3 + $0x48] sm:$0xff] %vm649, %v560
      %660 = vst.msk [vmem:[#allocation3 + $0x50] sm:$0xff] %vm649, %v562
      %661 = vst.msk [vmem:[#allocation3 + $0x58] sm:$0xff] %vm649, %v564
      %662 = vst.msk [vmem:[#allocation3 + $0x60] sm:$0xff] %vm649, %v566
      %663 = vst.msk [vmem:[#allocation3 + $0x68] sm:$0xff] %vm649, %v568
      %664 = vst.msk [vmem:[#allocation3 + $0x70] sm:$0xff] %vm649, %v570
      %665 = vst.msk [vmem:[#allocation3 + $0x78] sm:$0xff] %vm649, %v572
      %666 = vst.msk [vmem:[#allocation3 + $0x80] sm:$0xff] %vm649, %v574
      %667 = vst.msk [vmem:[#allocation3 + $0x88] sm:$0xff] %vm649, %v576
      %668 = vst.msk [vmem:[#allocation3 + $0x90] sm:$0xff] %vm649, %v578
      %669 = vst.msk [vmem:[#allocation3 + $0x98] sm:$0xff] %vm649, %v580
      %670 = vst.msk [vmem:[#allocation3 + $0xa0] sm:$0xff] %vm649, %v582
      %671 = vst.msk [vmem:[#allocation3 + $0xa8] sm:$0xff] %vm649, %v584
      %672 = vst.msk [vmem:[#allocation3 + $0xb0] sm:$0xff] %vm649, %v586
      %673 = vst.msk [vmem:[#allocation3 + $0xb8] sm:$0xff] %vm649, %v588
      %674 = vst.msk [vmem:[#allocation3 + $0xc0] sm:$0xff] %vm649, %v590
      %675 = vst.msk [vmem:[#allocation3 + $0xc8] sm:$0xff] %vm649, %v592
      %676 = vst.msk [vmem:[#allocation3 + $0xd0] sm:$0xff] %vm649, %v594
      %677 = vst.msk [vmem:[#allocation3 + $0xd8] sm:$0xff] %vm649, %v596
      %678 = vst.msk [vmem:[#allocation3 + $0xe0] sm:$0xff] %vm649, %v598
      %679 = vst.msk [vmem:[#allocation3 + $0xe8] sm:$0xff] %vm649, %v600
      %680 = vst.msk [vmem:[#allocation3 + $0xf0] sm:$0xff] %vm649, %v602
      %681 = vst.msk [vmem:[#allocation3 + $0xf8] sm:$0xff] %vm649, %v604
      %682 = vst.msk [vmem:[#allocation3 + $0x100] sm:$0xff] %vm649, %v606
      %683 = vst.msk [vmem:[#allocation3 + $0x108] sm:$0xff] %vm649, %v608
      %684 = vst.msk [vmem:[#allocation3 + $0x110] sm:$0xff] %vm649, %v610
      %685 = vst.msk [vmem:[#allocation3 + $0x118] sm:$0xff] %vm649, %v612
      %v686 = vld [vmem:[#allocation2 + $0x2] sm:$0xff]
      %v687 = vld [vmem:[#allocation2 + $0xa] sm:$0xff]
      %v688 = vld [vmem:[#allocation2 + $0x12] sm:$0xff]
      %v689 = vld [vmem:[#allocation2 + $0x1a] sm:$0xff]
      %v690 = vld [vmem:[#allocation2 + $0x22] sm:$0xff]
      %v691 = vld [vmem:[#allocation2 + $0x2a] sm:$0xff]
      %v692 = vld [vmem:[#allocation2 + $0x32] sm:$0xff]
      %v693 = vld [vmem:[#allocation2 + $0x3a] sm:$0xff]
      %v694 = vld [vmem:[#allocation2 + $0x42] sm:$0xff]
      %v695 = vld [vmem:[#allocation2 + $0x4a] sm:$0xff]
      %v696 = vld [vmem:[#allocation2 + $0x52] sm:$0xff]
      %v697 = vld [vmem:[#allocation2 + $0x5a] sm:$0xff]
      %v698 = vld [vmem:[#allocation2 + $0x62] sm:$0xff]
      %v699 = vld [vmem:[#allocation2 + $0x6a] sm:$0xff]
      %v700 = vld [vmem:[#allocation2 + $0x72] sm:$0xff]
      %v701 = vld [vmem:[#allocation2 + $0x7a] sm:$0xff]
      %v702 = vld [vmem:[#allocation2 + $0x82] sm:$0xff]
      %v703 = vld [vmem:[#allocation2 + $0x8a] sm:$0xff]
      %v704 = vld [vmem:[#allocation2 + $0x92] sm:$0xff]
      %v705 = vld [vmem:[#allocation2 + $0x9a] sm:$0xff]
      %v706 = vld [vmem:[#allocation2 + $0xa2] sm:$0xff]
      %v707 = vld [vmem:[#allocation2 + $0xaa] sm:$0xff]
      %v708 = vld [vmem:[#allocation2 + $0xb2] sm:$0xff]
      %v709 = vld [vmem:[#allocation2 + $0xba] sm:$0xff]
      %v710 = vld [vmem:[#allocation2 + $0xc2] sm:$0xff]
      %v711 = vld [vmem:[#allocation2 + $0xca] sm:$0xff]
      %v712 = vld [vmem:[#allocation2 + $0xd2] sm:$0xff]
      %v713 = vld [vmem:[#allocation2 + $0xda] sm:$0xff]
      %v714 = vld [vmem:[#allocation2 + $0xe2] sm:$0xff]
      %v715 = vld [vmem:[#allocation2 + $0xea] sm:$0xff]
      %v716 = vld [vmem:[#allocation2 + $0xf2] sm:$0xff]
      %v717 = vld [vmem:[#allocation2 + $0xfa] sm:$0xff]
      %v718 = vld [vmem:[#allocation2 + $0x102] sm:$0xff]
      %v719 = vld [vmem:[#allocation2 + $0x10a] sm:$0xff]
      %v720 = vld [vmem:[#allocation2 + $0x112] sm:$0xff]
      %v721 = vld [vmem:[#allocation2 + $0x11a] sm:$0xff]
      %758 = vrot.lane.b32.xlu0 %v686, 16
      %v759 = vpop.permute.xlu0 %758
      %760 = vrot.lane.b32.xlu0 %v687, 16
      %v761 = vpop.permute.xlu0 %760
      %762 = vrot.lane.b32.xlu0 %v688, 16
      %v763 = vpop.permute.xlu0 %762
      %764 = vrot.lane.b32.xlu0 %v689, 16
      %v765 = vpop.permute.xlu0 %764
      %766 = vrot.lane.b32.xlu0 %v690, 16
      %v767 = vpop.permute.xlu0 %766
      %768 = vrot.lane.b32.xlu0 %v691, 16
      %v769 = vpop.permute.xlu0 %768
      %770 = vrot.lane.b32.xlu0 %v692, 16
      %v771 = vpop.permute.xlu0 %770
      %772 = vrot.lane.b32.xlu0 %v693, 16
      %v773 = vpop.permute.xlu0 %772
      %774 = vrot.lane.b32.xlu0 %v694, 16
      %v775 = vpop.permute.xlu0 %774
      %776 = vrot.lane.b32.xlu0 %v695, 16
      %v777 = vpop.permute.xlu0 %776
      %778 = vrot.lane.b32.xlu0 %v696, 16
      %v779 = vpop.permute.xlu0 %778
      %780 = vrot.lane.b32.xlu0 %v697, 16
      %v781 = vpop.permute.xlu0 %780
      %782 = vrot.lane.b32.xlu0 %v698, 16
      %v783 = vpop.permute.xlu0 %782
      %784 = vrot.lane.b32.xlu0 %v699, 16
      %v785 = vpop.permute.xlu0 %784
      %786 = vrot.lane.b32.xlu0 %v700, 16
      %v787 = vpop.permute.xlu0 %786
      %788 = vrot.lane.b32.xlu0 %v701, 16
      %v789 = vpop.permute.xlu0 %788
      %790 = vrot.lane.b32.xlu0 %v702, 16
      %v791 = vpop.permute.xlu0 %790
      %792 = vrot.lane.b32.xlu0 %v703, 16
      %v793 = vpop.permute.xlu0 %792
      %794 = vrot.lane.b32.xlu0 %v704, 16
      %v795 = vpop.permute.xlu0 %794
      %796 = vrot.lane.b32.xlu0 %v705, 16
      %v797 = vpop.permute.xlu0 %796
      %798 = vrot.lane.b32.xlu0 %v706, 16
      %v799 = vpop.permute.xlu0 %798
      %800 = vrot.lane.b32.xlu0 %v707, 16
      %v801 = vpop.permute.xlu0 %800
      %802 = vrot.lane.b32.xlu0 %v708, 16
      %v803 = vpop.permute.xlu0 %802
      %804 = vrot.lane.b32.xlu0 %v709, 16
      %v805 = vpop.permute.xlu0 %804
      %806 = vrot.lane.b32.xlu0 %v710, 16
      %v807 = vpop.permute.xlu0 %806
      %808 = vrot.lane.b32.xlu0 %v711, 16
      %v809 = vpop.permute.xlu0 %808
      %810 = vrot.lane.b32.xlu0 %v712, 16
      %v811 = vpop.permute.xlu0 %810
      %812 = vrot.lane.b32.xlu0 %v713, 16
      %v813 = vpop.permute.xlu0 %812
      %814 = vrot.lane.b32.xlu0 %v714, 16
      %v815 = vpop.permute.xlu0 %814
      %816 = vrot.lane.b32.xlu0 %v715, 16
      %v817 = vpop.permute.xlu0 %816
      %818 = vrot.lane.b32.xlu0 %v716, 16
      %v819 = vpop.permute.xlu0 %818
      %820 = vrot.lane.b32.xlu0 %v717, 16
      %v821 = vpop.permute.xlu0 %820
      %822 = vrot.lane.b32.xlu0 %v718, 16
      %v823 = vpop.permute.xlu0 %822
      %824 = vrot.lane.b32.xlu0 %v719, 16
      %v825 = vpop.permute.xlu0 %824
      %826 = vrot.lane.b32.xlu0 %v720, 16
      %v827 = vpop.permute.xlu0 %826
      %828 = vrot.lane.b32.xlu0 %v721, 16
      %v829 = vpop.permute.xlu0 %828
      %vm866 = vcmask 195712
      %867 = vst.msk [vmem:[#allocation3] sm:$0xff] %vm866, %v759
      %868 = vst.msk [vmem:[#allocation3 + $0x8] sm:$0xff] %vm866, %v761
      %869 = vst.msk [vmem:[#allocation3 + $0x10] sm:$0xff] %vm866, %v763
      %870 = vst.msk [vmem:[#allocation3 + $0x18] sm:$0xff] %vm866, %v765
      %871 = vst.msk [vmem:[#allocation3 + $0x20] sm:$0xff] %vm866, %v767
      %872 = vst.msk [vmem:[#allocation3 + $0x28] sm:$0xff] %vm866, %v769
      %873 = vst.msk [vmem:[#allocation3 + $0x30] sm:$0xff] %vm866, %v771
      %874 = vst.msk [vmem:[#allocation3 + $0x38] sm:$0xff] %vm866, %v773
      %875 = vst.msk [vmem:[#allocation3 + $0x40] sm:$0xff] %vm866, %v775
      %876 = vst.msk [vmem:[#allocation3 + $0x48] sm:$0xff] %vm866, %v777
      %877 = vst.msk [vmem:[#allocation3 + $0x50] sm:$0xff] %vm866, %v779
      %878 = vst.msk [vmem:[#allocation3 + $0x58] sm:$0xff] %vm866, %v781
      %879 = vst.msk [vmem:[#allocation3 + $0x60] sm:$0xff] %vm866, %v783
      %880 = vst.msk [vmem:[#allocation3 + $0x68] sm:$0xff] %vm866, %v785
      %881 = vst.msk [vmem:[#allocation3 + $0x70] sm:$0xff] %vm866, %v787
      %882 = vst.msk [vmem:[#allocation3 + $0x78] sm:$0xff] %vm866, %v789
      %883 = vst.msk [vmem:[#allocation3 + $0x80] sm:$0xff] %vm866, %v791
      %884 = vst.msk [vmem:[#allocation3 + $0x88] sm:$0xff] %vm866, %v793
      %885 = vst.msk [vmem:[#allocation3 + $0x90] sm:$0xff] %vm866, %v795
      %886 = vst.msk [vmem:[#allocation3 + $0x98] sm:$0xff] %vm866, %v797
      %887 = vst.msk [vmem:[#allocation3 + $0xa0] sm:$0xff] %vm866, %v799
      %888 = vst.msk [vmem:[#allocation3 + $0xa8] sm:$0xff] %vm866, %v801
      %889 = vst.msk [vmem:[#allocation3 + $0xb0] sm:$0xff] %vm866, %v803
      %890 = vst.msk [vmem:[#allocation3 + $0xb8] sm:$0xff] %vm866, %v805
      %891 = vst.msk [vmem:[#allocation3 + $0xc0] sm:$0xff] %vm866, %v807
      %892 = vst.msk [vmem:[#allocation3 + $0xc8] sm:$0xff] %vm866, %v809
      %893 = vst.msk [vmem:[#allocation3 + $0xd0] sm:$0xff] %vm866, %v811
      %894 = vst.msk [vmem:[#allocation3 + $0xd8] sm:$0xff] %vm866, %v813
      %895 = vst.msk [vmem:[#allocation3 + $0xe0] sm:$0xff] %vm866, %v815
      %896 = vst.msk [vmem:[#allocation3 + $0xe8] sm:$0xff] %vm866, %v817
      %897 = vst.msk [vmem:[#allocation3 + $0xf0] sm:$0xff] %vm866, %v819
      %898 = vst.msk [vmem:[#allocation3 + $0xf8] sm:$0xff] %vm866, %v821
      %899 = vst.msk [vmem:[#allocation3 + $0x100] sm:$0xff] %vm866, %v823
      %900 = vst.msk [vmem:[#allocation3 + $0x108] sm:$0xff] %vm866, %v825
      %901 = vst.msk [vmem:[#allocation3 + $0x110] sm:$0xff] %vm866, %v827
      %902 = vst.msk [vmem:[#allocation3 + $0x118] sm:$0xff] %vm866, %v829
      %v903 = vld [vmem:[#allocation2 + $0x12] sm:$0xff]
      %v904 = vld [vmem:[#allocation2 + $0x1a] sm:$0xff]
      %v905 = vld [vmem:[#allocation2 + $0x22] sm:$0xff]
      %v906 = vld [vmem:[#allocation2 + $0x2a] sm:$0xff]
      %v907 = vld [vmem:[#allocation2 + $0x32] sm:$0xff]
      %v908 = vld [vmem:[#allocation2 + $0x3a] sm:$0xff]
      %v909 = vld [vmem:[#allocation2 + $0x42] sm:$0xff]
      %v910 = vld [vmem:[#allocation2 + $0x4a] sm:$0xff]
      %v911 = vld [vmem:[#allocation2 + $0x52] sm:$0xff]
      %v912 = vld [vmem:[#allocation2 + $0x5a] sm:$0xff]
      %v913 = vld [vmem:[#allocation2 + $0x62] sm:$0xff]
      %v914 = vld [vmem:[#allocation2 + $0x6a] sm:$0xff]
      %v915 = vld [vmem:[#allocation2 + $0x72] sm:$0xff]
      %v916 = vld [vmem:[#allocation2 + $0x7a] sm:$0xff]
      %v917 = vld [vmem:[#allocation2 + $0x82] sm:$0xff]
      %v918 = vld [vmem:[#allocation2 + $0x8a] sm:$0xff]
      %v919 = vld [vmem:[#allocation2 + $0x92] sm:$0xff]
      %v920 = vld [vmem:[#allocation2 + $0x9a] sm:$0xff]
      %v921 = vld [vmem:[#allocation2 + $0xa2] sm:$0xff]
      %v922 = vld [vmem:[#allocation2 + $0xaa] sm:$0xff]
      %v923 = vld [vmem:[#allocation2 + $0xb2] sm:$0xff]
      %v924 = vld [vmem:[#allocation2 + $0xba] sm:$0xff]
      %v925 = vld [vmem:[#allocation2 + $0xc2] sm:$0xff]
      %v926 = vld [vmem:[#allocation2 + $0xca] sm:$0xff]
      %v927 = vld [vmem:[#allocation2 + $0xd2] sm:$0xff]
      %v928 = vld [vmem:[#allocation2 + $0xda] sm:$0xff]
      %v929 = vld [vmem:[#allocation2 + $0xe2] sm:$0xff]
      %v930 = vld [vmem:[#allocation2 + $0xea] sm:$0xff]
      %v931 = vld [vmem:[#allocation2 + $0xf2] sm:$0xff]
      %v932 = vld [vmem:[#allocation2 + $0xfa] sm:$0xff]
      %v933 = vld [vmem:[#allocation2 + $0x102] sm:$0xff]
      %v934 = vld [vmem:[#allocation2 + $0x10a] sm:$0xff]
      %v935 = vld [vmem:[#allocation2 + $0x112] sm:$0xff]
      %v936 = vld [vmem:[#allocation2 + $0x11a] sm:$0xff]
      %v937 = vld [vmem:[#allocation2 + $0x122] sm:$0xff]
      %v938 = vld [vmem:[#allocation2 + $0x12a] sm:$0xff]
      %975 = vrot.lane.b32.xlu0 %v903, 24
      %v976 = vpop.permute.xlu0 %975
      %977 = vrot.lane.b32.xlu0 %v904, 24
      %v978 = vpop.permute.xlu0 %977
      %979 = vrot.lane.b32.xlu0 %v905, 24
      %v980 = vpop.permute.xlu0 %979
      %981 = vrot.lane.b32.xlu0 %v906, 24
      %v982 = vpop.permute.xlu0 %981
      %983 = vrot.lane.b32.xlu0 %v907, 24
      %v984 = vpop.permute.xlu0 %983
      %985 = vrot.lane.b32.xlu0 %v908, 24
      %v986 = vpop.permute.xlu0 %985
      %987 = vrot.lane.b32.xlu0 %v909, 24
      %v988 = vpop.permute.xlu0 %987
      %989 = vrot.lane.b32.xlu0 %v910, 24
      %v990 = vpop.permute.xlu0 %989
      %991 = vrot.lane.b32.xlu0 %v911, 24
      %v992 = vpop.permute.xlu0 %991
      %993 = vrot.lane.b32.xlu0 %v912, 24
      %v994 = vpop.permute.xlu0 %993
      %995 = vrot.lane.b32.xlu0 %v913, 24
      %v996 = vpop.permute.xlu0 %995
      %997 = vrot.lane.b32.xlu0 %v914, 24
      %v998 = vpop.permute.xlu0 %997
      %999 = vrot.lane.b32.xlu0 %v915, 24
      %v1000 = vpop.permute.xlu0 %999
      %1001 = vrot.lane.b32.xlu0 %v916, 24
      %v1002 = vpop.permute.xlu0 %1001
      %1003 = vrot.lane.b32.xlu0 %v917, 24
      %v1004 = vpop.permute.xlu0 %1003
      %1005 = vrot.lane.b32.xlu0 %v918, 24
      %v1006 = vpop.permute.xlu0 %1005
      %1007 = vrot.lane.b32.xlu0 %v919, 24
      %v1008 = vpop.permute.xlu0 %1007
      %1009 = vrot.lane.b32.xlu0 %v920, 24
      %v1010 = vpop.permute.xlu0 %1009
      %1011 = vrot.lane.b32.xlu0 %v921, 24
      %v1012 = vpop.permute.xlu0 %1011
      %1013 = vrot.lane.b32.xlu0 %v922, 24
      %v1014 = vpop.permute.xlu0 %1013
      %1015 = vrot.lane.b32.xlu0 %v923, 24
      %v1016 = vpop.permute.xlu0 %1015
      %1017 = vrot.lane.b32.xlu0 %v924, 24
      %v1018 = vpop.permute.xlu0 %1017
      %1019 = vrot.lane.b32.xlu0 %v925, 24
      %v1020 = vpop.permute.xlu0 %1019
      %1021 = vrot.lane.b32.xlu0 %v926, 24
      %v1022 = vpop.permute.xlu0 %1021
      %1023 = vrot.lane.b32.xlu0 %v927, 24
      %v1024 = vpop.permute.xlu0 %1023
      %1025 = vrot.lane.b32.xlu0 %v928, 24
      %v1026 = vpop.permute.xlu0 %1025
      %1027 = vrot.lane.b32.xlu0 %v929, 24
      %v1028 = vpop.permute.xlu0 %1027
      %1029 = vrot.lane.b32.xlu0 %v930, 24
      %v1030 = vpop.permute.xlu0 %1029
      %1031 = vrot.lane.b32.xlu0 %v931, 24
      %v1032 = vpop.permute.xlu0 %1031
      %1033 = vrot.lane.b32.xlu0 %v932, 24
      %v1034 = vpop.permute.xlu0 %1033
      %1035 = vrot.lane.b32.xlu0 %v933, 24
      %v1036 = vpop.permute.xlu0 %1035
      %1037 = vrot.lane.b32.xlu0 %v934, 24
      %v1038 = vpop.permute.xlu0 %1037
      %1039 = vrot.lane.b32.xlu0 %v935, 24
      %v1040 = vpop.permute.xlu0 %1039
      %1041 = vrot.lane.b32.xlu0 %v936, 24
      %v1042 = vpop.permute.xlu0 %1041
      %1043 = vrot.lane.b32.xlu0 %v937, 24
      %v1044 = vpop.permute.xlu0 %1043
      %1045 = vrot.lane.b32.xlu0 %v938, 24
      %v1046 = vpop.permute.xlu0 %1045
      %vm1083 = vcmask 261312
      %1084 = vst.msk [vmem:[#allocation3] sm:$0xff] %vm1083, %v976
      %1085 = vst.msk [vmem:[#allocation3 + $0x8] sm:$0xff] %vm1083, %v978
      %1086 = vst.msk [vmem:[#allocation3 + $0x10] sm:$0xff] %vm1083, %v980
      %1087 = vst.msk [vmem:[#allocation3 + $0x18] sm:$0xff] %vm1083, %v982
      %1088 = vst.msk [vmem:[#allocation3 + $0x20] sm:$0xff] %vm1083, %v984
      %1089 = vst.msk [vmem:[#allocation3 + $0x28] sm:$0xff] %vm1083, %v986
      %1090 = vst.msk [vmem:[#allocation3 + $0x30] sm:$0xff] %vm1083, %v988
      %1091 = vst.msk [vmem:[#allocation3 + $0x38] sm:$0xff] %vm1083, %v990
      %1092 = vst.msk [vmem:[#allocation3 + $0x40] sm:$0xff] %vm1083, %v992
      %1093 = vst.msk [vmem:[#allocation3 + $0x48] sm:$0xff] %vm1083, %v994
      %1094 = vst.msk [vmem:[#allocation3 + $0x50] sm:$0xff] %vm1083, %v996
      %1095 = vst.msk [vmem:[#allocation3 + $0x58] sm:$0xff] %vm1083, %v998
      %1096 = vst.msk [vmem:[#allocation3 + $0x60] sm:$0xff] %vm1083, %v1000
      %1097 = vst.msk [vmem:[#allocation3 + $0x68] sm:$0xff] %vm1083, %v1002
      %1098 = vst.msk [vmem:[#allocation3 + $0x70] sm:$0xff] %vm1083, %v1004
      %1099 = vst.msk [vmem:[#allocation3 + $0x78] sm:$0xff] %vm1083, %v1006
      %1100 = vst.msk [vmem:[#allocation3 + $0x80] sm:$0xff] %vm1083, %v1008
      %1101 = vst.msk [vmem:[#allocation3 + $0x88] sm:$0xff] %vm1083, %v1010
      %1102 = vst.msk [vmem:[#allocation3 + $0x90] sm:$0xff] %vm1083, %v1012
      %1103 = vst.msk [vmem:[#allocation3 + $0x98] sm:$0xff] %vm1083, %v1014
      %1104 = vst.msk [vmem:[#allocation3 + $0xa0] sm:$0xff] %vm1083, %v1016
      %1105 = vst.msk [vmem:[#allocation3 + $0xa8] sm:$0xff] %vm1083, %v1018
      %1106 = vst.msk [vmem:[#allocation3 + $0xb0] sm:$0xff] %vm1083, %v1020
      %1107 = vst.msk [vmem:[#allocation3 + $0xb8] sm:$0xff] %vm1083, %v1022
      %1108 = vst.msk [vmem:[#allocation3 + $0xc0] sm:$0xff] %vm1083, %v1024
      %1109 = vst.msk [vmem:[#allocation3 + $0xc8] sm:$0xff] %vm1083, %v1026
      %1110 = vst.msk [vmem:[#allocation3 + $0xd0] sm:$0xff] %vm1083, %v1028
      %1111 = vst.msk [vmem:[#allocation3 + $0xd8] sm:$0xff] %vm1083, %v1030
      %1112 = vst.msk [vmem:[#allocation3 + $0xe0] sm:$0xff] %vm1083, %v1032
      %1113 = vst.msk [vmem:[#allocation3 + $0xe8] sm:$0xff] %vm1083, %v1034
      %1114 = vst.msk [vmem:[#allocation3 + $0xf0] sm:$0xff] %vm1083, %v1036
      %1115 = vst.msk [vmem:[#allocation3 + $0xf8] sm:$0xff] %vm1083, %v1038
      %1116 = vst.msk [vmem:[#allocation3 + $0x100] sm:$0xff] %vm1083, %v1040
      %1117 = vst.msk [vmem:[#allocation3 + $0x108] sm:$0xff] %vm1083, %v1042
      %1118 = vst.msk [vmem:[#allocation3 + $0x110] sm:$0xff] %vm1083, %v1044
      %1119 = vst.msk [vmem:[#allocation3 + $0x118] sm:$0xff] %vm1083, %v1046
      %v1120 = vld [vmem:[#allocation2 + $0x13] sm:$0xff]
      %v1121 = vld [vmem:[#allocation2 + $0x1b] sm:$0xff]
      %v1122 = vld [vmem:[#allocation2 + $0x23] sm:$0xff]
      %v1123 = vld [vmem:[#allocation2 + $0x2b] sm:$0xff]
      %v1124 = vld [vmem:[#allocation2 + $0x33] sm:$0xff]
      %v1125 = vld [vmem:[#allocation2 + $0x3b] sm:$0xff]
      %v1126 = vld [vmem:[#allocation2 + $0x43] sm:$0xff]
      %v1127 = vld [vmem:[#allocation2 + $0x4b] sm:$0xff]
      %v1128 = vld [vmem:[#allocation2 + $0x53] sm:$0xff]
      %v1129 = vld [vmem:[#allocation2 + $0x5b] sm:$0xff]
      %v1130 = vld [vmem:[#allocation2 + $0x63] sm:$0xff]
      %v1131 = vld [vmem:[#allocation2 + $0x6b] sm:$0xff]
      %v1132 = vld [vmem:[#allocation2 + $0x73] sm:$0xff]
      %v1133 = vld [vmem:[#allocation2 + $0x7b] sm:$0xff]
      %v1134 = vld [vmem:[#allocation2 + $0x83] sm:$0xff]
      %v1135 = vld [vmem:[#allocation2 + $0x8b] sm:$0xff]
      %v1136 = vld [vmem:[#allocation2 + $0x93] sm:$0xff]
      %v1137 = vld [vmem:[#allocation2 + $0x9b] sm:$0xff]
      %v1138 = vld [vmem:[#allocation2 + $0xa3] sm:$0xff]
      %v1139 = vld [vmem:[#allocation2 + $0xab] sm:$0xff]
      %v1140 = vld [vmem:[#allocation2 + $0xb3] sm:$0xff]
      %v1141 = vld [vmem:[#allocation2 + $0xbb] sm:$0xff]
      %v1142 = vld [vmem:[#allocation2 + $0xc3] sm:$0xff]
      %v1143 = vld [vmem:[#allocation2 + $0xcb] sm:$0xff]
      %v1144 = vld [vmem:[#allocation2 + $0xd3] sm:$0xff]
      %v1145 = vld [vmem:[#allocation2 + $0xdb] sm:$0xff]
      %v1146 = vld [vmem:[#allocation2 + $0xe3] sm:$0xff]
      %v1147 = vld [vmem:[#allocation2 + $0xeb] sm:$0xff]
      %v1148 = vld [vmem:[#allocation2 + $0xf3] sm:$0xff]
      %v1149 = vld [vmem:[#allocation2 + $0xfb] sm:$0xff]
      %v1150 = vld [vmem:[#allocation2 + $0x103] sm:$0xff]
      %v1151 = vld [vmem:[#allocation2 + $0x10b] sm:$0xff]
      %v1152 = vld [vmem:[#allocation2 + $0x113] sm:$0xff]
      %v1153 = vld [vmem:[#allocation2 + $0x11b] sm:$0xff]
      %v1154 = vld [vmem:[#allocation2 + $0x123] sm:$0xff]
      %v1155 = vld [vmem:[#allocation2 + $0x12b] sm:$0xff]
      %1192 = vrot.lane.b32.xlu0 %v1120, 32
      %v1193 = vpop.permute.xlu0 %1192
      %1194 = vrot.lane.b32.xlu0 %v1121, 32
      %v1195 = vpop.permute.xlu0 %1194
      %1196 = vrot.lane.b32.xlu0 %v1122, 32
      %v1197 = vpop.permute.xlu0 %1196
      %1198 = vrot.lane.b32.xlu0 %v1123, 32
      %v1199 = vpop.permute.xlu0 %1198
      %1200 = vrot.lane.b32.xlu0 %v1124, 32
      %v1201 = vpop.permute.xlu0 %1200
      %1202 = vrot.lane.b32.xlu0 %v1125, 32
      %v1203 = vpop.permute.xlu0 %1202
      %1204 = vrot.lane.b32.xlu0 %v1126, 32
      %v1205 = vpop.permute.xlu0 %1204
      %1206 = vrot.lane.b32.xlu0 %v1127, 32
      %v1207 = vpop.permute.xlu0 %1206
      %1208 = vrot.lane.b32.xlu0 %v1128, 32
      %v1209 = vpop.permute.xlu0 %1208
      %1210 = vrot.lane.b32.xlu0 %v1129, 32
      %v1211 = vpop.permute.xlu0 %1210
      %1212 = vrot.lane.b32.xlu0 %v1130, 32
      %v1213 = vpop.permute.xlu0 %1212
      %1214 = vrot.lane.b32.xlu0 %v1131, 32
      %v1215 = vpop.permute.xlu0 %1214
      %1216 = vrot.lane.b32.xlu0 %v1132, 32
      %v1217 = vpop.permute.xlu0 %1216
      %1218 = vrot.lane.b32.xlu0 %v1133, 32
      %v1219 = vpop.permute.xlu0 %1218
      %1220 = vrot.lane.b32.xlu0 %v1134, 32
      %v1221 = vpop.permute.xlu0 %1220
      %1222 = vrot.lane.b32.xlu0 %v1135, 32
      %v1223 = vpop.permute.xlu0 %1222
      %1224 = vrot.lane.b32.xlu0 %v1136, 32
      %v1225 = vpop.permute.xlu0 %1224
      %1226 = vrot.lane.b32.xlu0 %v1137, 32
      %v1227 = vpop.permute.xlu0 %1226
      %1228 = vrot.lane.b32.xlu0 %v1138, 32
      %v1229 = vpop.permute.xlu0 %1228
      %1230 = vrot.lane.b32.xlu0 %v1139, 32
      %v1231 = vpop.permute.xlu0 %1230
      %1232 = vrot.lane.b32.xlu0 %v1140, 32
      %v1233 = vpop.permute.xlu0 %1232
      %1234 = vrot.lane.b32.xlu0 %v1141, 32
      %v1235 = vpop.permute.xlu0 %1234
      %1236 = vrot.lane.b32.xlu0 %v1142, 32
      %v1237 = vpop.permute.xlu0 %1236
      %1238 = vrot.lane.b32.xlu0 %v1143, 32
      %v1239 = vpop.permute.xlu0 %1238
      %1240 = vrot.lane.b32.xlu0 %v1144, 32
      %v1241 = vpop.permute.xlu0 %1240
      %1242 = vrot.lane.b32.xlu0 %v1145, 32
      %v1243 = vpop.permute.xlu0 %1242
      %1244 = vrot.lane.b32.xlu0 %v1146, 32
      %v1245 = vpop.permute.xlu0 %1244
      %1246 = vrot.lane.b32.xlu0 %v1147, 32
      %v1247 = vpop.permute.xlu0 %1246
      %1248 = vrot.lane.b32.xlu0 %v1148, 32
      %v1249 = vpop.permute.xlu0 %1248
      %1250 = vrot.lane.b32.xlu0 %v1149, 32
      %v1251 = vpop.permute.xlu0 %1250
      %1252 = vrot.lane.b32.xlu0 %v1150, 32
      %v1253 = vpop.permute.xlu0 %1252
      %1254 = vrot.lane.b32.xlu0 %v1151, 32
      %v1255 = vpop.permute.xlu0 %1254
      %1256 = vrot.lane.b32.xlu0 %v1152, 32
      %v1257 = vpop.permute.xlu0 %1256
      %1258 = vrot.lane.b32.xlu0 %v1153, 32
      %v1259 = vpop.permute.xlu0 %1258
      %1260 = vrot.lane.b32.xlu0 %v1154, 32
      %v1261 = vpop.permute.xlu0 %1260
      %1262 = vrot.lane.b32.xlu0 %v1155, 32
      %v1263 = vpop.permute.xlu0 %1262
      %vm1300 = vcmask 326912
      %1301 = vst.msk [vmem:[#allocation3] sm:$0xff] %vm1300, %v1193
      %1302 = vst.msk [vmem:[#allocation3 + $0x8] sm:$0xff] %vm1300, %v1195
      %1303 = vst.msk [vmem:[#allocation3 + $0x10] sm:$0xff] %vm1300, %v1197
      %1304 = vst.msk [vmem:[#allocation3 + $0x18] sm:$0xff] %vm1300, %v1199
      %1305 = vst.msk [vmem:[#allocation3 + $0x20] sm:$0xff] %vm1300, %v1201
      %1306 = vst.msk [vmem:[#allocation3 + $0x28] sm:$0xff] %vm1300, %v1203
      %1307 = vst.msk [vmem:[#allocation3 + $0x30] sm:$0xff] %vm1300, %v1205
      %1308 = vst.msk [vmem:[#allocation3 + $0x38] sm:$0xff] %vm1300, %v1207
      %1309 = vst.msk [vmem:[#allocation3 + $0x40] sm:$0xff] %vm1300, %v1209
      %1310 = vst.msk [vmem:[#allocation3 + $0x48] sm:$0xff] %vm1300, %v1211
      %1311 = vst.msk [vmem:[#allocation3 + $0x50] sm:$0xff] %vm1300, %v1213
      %1312 = vst.msk [vmem:[#allocation3 + $0x58] sm:$0xff] %vm1300, %v1215
      %1313 = vst.msk [vmem:[#allocation3 + $0x60] sm:$0xff] %vm1300, %v1217
      %1314 = vst.msk [vmem:[#allocation3 + $0x68] sm:$0xff] %vm1300, %v1219
      %1315 = vst.msk [vmem:[#allocation3 + $0x70] sm:$0xff] %vm1300, %v1221
      %1316 = vst.msk [vmem:[#allocation3 + $0x78] sm:$0xff] %vm1300, %v1223
      %1317 = vst.msk [vmem:[#allocation3 + $0x80] sm:$0xff] %vm1300, %v1225
      %1318 = vst.msk [vmem:[#allocation3 + $0x88] sm:$0xff] %vm1300, %v1227
      %1319 = vst.msk [vmem:[#allocation3 + $0x90] sm:$0xff] %vm1300, %v1229
      %1320 = vst.msk [vmem:[#allocation3 + $0x98] sm:$0xff] %vm1300, %v1231
      %1321 = vst.msk [vmem:[#allocation3 + $0xa0] sm:$0xff] %vm1300, %v1233
      %1322 = vst.msk [vmem:[#allocation3 + $0xa8] sm:$0xff] %vm1300, %v1235
      %1323 = vst.msk [vmem:[#allocation3 + $0xb0] sm:$0xff] %vm1300, %v1237
      %1324 = vst.msk [vmem:[#allocation3 + $0xb8] sm:$0xff] %vm1300, %v1239
      %1325 = vst.msk [vmem:[#allocation3 + $0xc0] sm:$0xff] %vm1300, %v1241
      %1326 = vst.msk [vmem:[#allocation3 + $0xc8] sm:$0xff] %vm1300, %v1243
      %1327 = vst.msk [vmem:[#allocation3 + $0xd0] sm:$0xff] %vm1300, %v1245
      %1328 = vst.msk [vmem:[#allocation3 + $0xd8] sm:$0xff] %vm1300, %v1247
      %1329 = vst.msk [vmem:[#allocation3 + $0xe0] sm:$0xff] %vm1300, %v1249
      %1330 = vst.msk [vmem:[#allocation3 + $0xe8] sm:$0xff] %vm1300, %v1251
      %1331 = vst.msk [vmem:[#allocation3 + $0xf0] sm:$0xff] %vm1300, %v1253
      %1332 = vst.msk [vmem:[#allocation3 + $0xf8] sm:$0xff] %vm1300, %v1255
      %1333 = vst.msk [vmem:[#allocation3 + $0x100] sm:$0xff] %vm1300, %v1257
      %1334 = vst.msk [vmem:[#allocation3 + $0x108] sm:$0xff] %vm1300, %v1259
      %1335 = vst.msk [vmem:[#allocation3 + $0x110] sm:$0xff] %vm1300, %v1261
      %1336 = vst.msk [vmem:[#allocation3 + $0x118] sm:$0xff] %vm1300, %v1263
      %v1337 = vld [vmem:[#allocation2 + $0x14] sm:$0xff]
      %v1338 = vld [vmem:[#allocation2 + $0x1c] sm:$0xff]
      %v1339 = vld [vmem:[#allocation2 + $0x24] sm:$0xff]
      %v1340 = vld [vmem:[#allocation2 + $0x2c] sm:$0xff]
      %v1341 = vld [vmem:[#allocation2 + $0x34] sm:$0xff]
      %v1342 = vld [vmem:[#allocation2 + $0x3c] sm:$0xff]
      %v1343 = vld [vmem:[#allocation2 + $0x44] sm:$0xff]
      %v1344 = vld [vmem:[#allocation2 + $0x4c] sm:$0xff]
      %v1345 = vld [vmem:[#allocation2 + $0x54] sm:$0xff]
      %v1346 = vld [vmem:[#allocation2 + $0x5c] sm:$0xff]
      %v1347 = vld [vmem:[#allocation2 + $0x64] sm:$0xff]
      %v1348 = vld [vmem:[#allocation2 + $0x6c] sm:$0xff]
      %v1349 = vld [vmem:[#allocation2 + $0x74] sm:$0xff]
      %v1350 = vld [vmem:[#allocation2 + $0x7c] sm:$0xff]
      %v1351 = vld [vmem:[#allocation2 + $0x84] sm:$0xff]
      %v1352 = vld [vmem:[#allocation2 + $0x8c] sm:$0xff]
      %v1353 = vld [vmem:[#allocation2 + $0x94] sm:$0xff]
      %v1354 = vld [vmem:[#allocation2 + $0x9c] sm:$0xff]
      %v1355 = vld [vmem:[#allocation2 + $0xa4] sm:$0xff]
      %v1356 = vld [vmem:[#allocation2 + $0xac] sm:$0xff]
      %v1357 = vld [vmem:[#allocation2 + $0xb4] sm:$0xff]
      %v1358 = vld [vmem:[#allocation2 + $0xbc] sm:$0xff]
      %v1359 = vld [vmem:[#allocation2 + $0xc4] sm:$0xff]
      %v1360 = vld [vmem:[#allocation2 + $0xcc] sm:$0xff]
      %v1361 = vld [vmem:[#allocation2 + $0xd4] sm:$0xff]
      %v1362 = vld [vmem:[#allocation2 + $0xdc] sm:$0xff]
      %v1363 = vld [vmem:[#allocation2 + $0xe4] sm:$0xff]
      %v1364 = vld [vmem:[#allocation2 + $0xec] sm:$0xff]
      %v1365 = vld [vmem:[#allocation2 + $0xf4] sm:$0xff]
      %v1366 = vld [vmem:[#allocation2 + $0xfc] sm:$0xff]
      %v1367 = vld [vmem:[#allocation2 + $0x104] sm:$0xff]
      %v1368 = vld [vmem:[#allocation2 + $0x10c] sm:$0xff]
      %v1369 = vld [vmem:[#allocation2 + $0x114] sm:$0xff]
      %v1370 = vld [vmem:[#allocation2 + $0x11c] sm:$0xff]
      %v1371 = vld [vmem:[#allocation2 + $0x124] sm:$0xff]
      %v1372 = vld [vmem:[#allocation2 + $0x12c] sm:$0xff]
      %1409 = vrot.lane.b32.xlu0 %v1337, 40
      %v1410 = vpop.permute.xlu0 %1409
      %1411 = vrot.lane.b32.xlu0 %v1338, 40
      %v1412 = vpop.permute.xlu0 %1411
      %1413 = vrot.lane.b32.xlu0 %v1339, 40
      %v1414 = vpop.permute.xlu0 %1413
      %1415 = vrot.lane.b32.xlu0 %v1340, 40
      %v1416 = vpop.permute.xlu0 %1415
      %1417 = vrot.lane.b32.xlu0 %v1341, 40
      %v1418 = vpop.permute.xlu0 %1417
      %1419 = vrot.lane.b32.xlu0 %v1342, 40
      %v1420 = vpop.permute.xlu0 %1419
      %1421 = vrot.lane.b32.xlu0 %v1343, 40
      %v1422 = vpop.permute.xlu0 %1421
      %1423 = vrot.lane.b32.xlu0 %v1344, 40
      %v1424 = vpop.permute.xlu0 %1423
      %1425 = vrot.lane.b32.xlu0 %v1345, 40
      %v1426 = vpop.permute.xlu0 %1425
      %1427 = vrot.lane.b32.xlu0 %v1346, 40
      %v1428 = vpop.permute.xlu0 %1427
      %1429 = vrot.lane.b32.xlu0 %v1347, 40
      %v1430 = vpop.permute.xlu0 %1429
      %1431 = vrot.lane.b32.xlu0 %v1348, 40
      %v1432 = vpop.permute.xlu0 %1431
      %1433 = vrot.lane.b32.xlu0 %v1349, 40
      %v1434 = vpop.permute.xlu0 %1433
      %1435 = vrot.lane.b32.xlu0 %v1350, 40
      %v1436 = vpop.permute.xlu0 %1435
      %1437 = vrot.lane.b32.xlu0 %v1351, 40
      %v1438 = vpop.permute.xlu0 %1437
      %1439 = vrot.lane.b32.xlu0 %v1352, 40
      %v1440 = vpop.permute.xlu0 %1439
      %1441 = vrot.lane.b32.xlu0 %v1353, 40
      %v1442 = vpop.permute.xlu0 %1441
      %1443 = vrot.lane.b32.xlu0 %v1354, 40
      %v1444 = vpop.permute.xlu0 %1443
      %1445 = vrot.lane.b32.xlu0 %v1355, 40
      %v1446 = vpop.permute.xlu0 %1445
      %1447 = vrot.lane.b32.xlu0 %v1356, 40
      %v1448 = vpop.permute.xlu0 %1447
      %1449 = vrot.lane.b32.xlu0 %v1357, 40
      %v1450 = vpop.permute.xlu0 %1449
      %1451 = vrot.lane.b32.xlu0 %v1358, 40
      %v1452 = vpop.permute.xlu0 %1451
      %1453 = vrot.lane.b32.xlu0 %v1359, 40
      %v1454 = vpop.permute.xlu0 %1453
      %1455 = vrot.lane.b32.xlu0 %v1360, 40
      %v1456 = vpop.permute.xlu0 %1455
      %1457 = vrot.lane.b32.xlu0 %v1361, 40
      %v1458 = vpop.permute.xlu0 %1457
      %1459 = vrot.lane.b32.xlu0 %v1362, 40
      %v1460 = vpop.permute.xlu0 %1459
      %1461 = vrot.lane.b32.xlu0 %v1363, 40
      %v1462 = vpop.permute.xlu0 %1461
      %1463 = vrot.lane.b32.xlu0 %v1364, 40
      %v1464 = vpop.permute.xlu0 %1463
      %1465 = vrot.lane.b32.xlu0 %v1365, 40
      %v1466 = vpop.permute.xlu0 %1465
      %1467 = vrot.lane.b32.xlu0 %v1366, 40
      %v1468 = vpop.permute.xlu0 %1467
      %1469 = vrot.lane.b32.xlu0 %v1367, 40
      %v1470 = vpop.permute.xlu0 %1469
      %1471 = vrot.lane.b32.xlu0 %v1368, 40
      %v1472 = vpop.permute.xlu0 %1471
      %1473 = vrot.lane.b32.xlu0 %v1369, 40
      %v1474 = vpop.permute.xlu0 %1473
      %1475 = vrot.lane.b32.xlu0 %v1370, 40
      %v1476 = vpop.permute.xlu0 %1475
      %1477 = vrot.lane.b32.xlu0 %v1371, 40
      %v1478 = vpop.permute.xlu0 %1477
      %1479 = vrot.lane.b32.xlu0 %v1372, 40
      %v1480 = vpop.permute.xlu0 %1479
      %vm1517 = vcmask 392512
      %1518 = vst.msk [vmem:[#allocation3] sm:$0xff] %vm1517, %v1410
      %1519 = vst.msk [vmem:[#allocation3 + $0x8] sm:$0xff] %vm1517, %v1412
      %1520 = vst.msk [vmem:[#allocation3 + $0x10] sm:$0xff] %vm1517, %v1414
      %1521 = vst.msk [vmem:[#allocation3 + $0x18] sm:$0xff] %vm1517, %v1416
      %1522 = vst.msk [vmem:[#allocation3 + $0x20] sm:$0xff] %vm1517, %v1418
      %1523 = vst.msk [vmem:[#allocation3 + $0x28] sm:$0xff] %vm1517, %v1420
      %1524 = vst.msk [vmem:[#allocation3 + $0x30] sm:$0xff] %vm1517, %v1422
      %1525 = vst.msk [vmem:[#allocation3 + $0x38] sm:$0xff] %vm1517, %v1424
      %1526 = vst.msk [vmem:[#allocation3 + $0x40] sm:$0xff] %vm1517, %v1426
      %1527 = vst.msk [vmem:[#allocation3 + $0x48] sm:$0xff] %vm1517, %v1428
      %1528 = vst.msk [vmem:[#allocation3 + $0x50] sm:$0xff] %vm1517, %v1430
      %1529 = vst.msk [vmem:[#allocation3 + $0x58] sm:$0xff] %vm1517, %v1432
      %1530 = vst.msk [vmem:[#allocation3 + $0x60] sm:$0xff] %vm1517, %v1434
      %1531 = vst.msk [vmem:[#allocation3 + $0x68] sm:$0xff] %vm1517, %v1436
      %1532 = vst.msk [vmem:[#allocation3 + $0x70] sm:$0xff] %vm1517, %v1438
      %1533 = vst.msk [vmem:[#allocation3 + $0x78] sm:$0xff] %vm1517, %v1440
      %1534 = vst.msk [vmem:[#allocation3 + $0x80] sm:$0xff] %vm1517, %v1442
      %1535 = vst.msk [vmem:[#allocation3 + $0x88] sm:$0xff] %vm1517, %v1444
      %1536 = vst.msk [vmem:[#allocation3 + $0x90] sm:$0xff] %vm1517, %v1446
      %1537 = vst.msk [vmem:[#allocation3 + $0x98] sm:$0xff] %vm1517, %v1448
      %1538 = vst.msk [vmem:[#allocation3 + $0xa0] sm:$0xff] %vm1517, %v1450
      %1539 = vst.msk [vmem:[#allocation3 + $0xa8] sm:$0xff] %vm1517, %v1452
      %1540 = vst.msk [vmem:[#allocation3 + $0xb0] sm:$0xff] %vm1517, %v1454
      %1541 = vst.msk [vmem:[#allocation3 + $0xb8] sm:$0xff] %vm1517, %v1456
      %1542 = vst.msk [vmem:[#allocation3 + $0xc0] sm:$0xff] %vm1517, %v1458
      %1543 = vst.msk [vmem:[#allocation3 + $0xc8] sm:$0xff] %vm1517, %v1460
      %1544 = vst.msk [vmem:[#allocation3 + $0xd0] sm:$0xff] %vm1517, %v1462
      %1545 = vst.msk [vmem:[#allocation3 + $0xd8] sm:$0xff] %vm1517, %v1464
      %1546 = vst.msk [vmem:[#allocation3 + $0xe0] sm:$0xff] %vm1517, %v1466
      %1547 = vst.msk [vmem:[#allocation3 + $0xe8] sm:$0xff] %vm1517, %v1468
      %1548 = vst.msk [vmem:[#allocation3 + $0xf0] sm:$0xff] %vm1517, %v1470
      %1549 = vst.msk [vmem:[#allocation3 + $0xf8] sm:$0xff] %vm1517, %v1472
      %1550 = vst.msk [vmem:[#allocation3 + $0x100] sm:$0xff] %vm1517, %v1474
      %1551 = vst.msk [vmem:[#allocation3 + $0x108] sm:$0xff] %vm1517, %v1476
      %1552 = vst.msk [vmem:[#allocation3 + $0x110] sm:$0xff] %vm1517, %v1478
      %1553 = vst.msk [vmem:[#allocation3 + $0x118] sm:$0xff] %vm1517, %v1480
      %v1554 = vld [vmem:[#allocation2 + $0x24] sm:$0xff]
      %v1555 = vld [vmem:[#allocation2 + $0x2c] sm:$0xff]
      %v1556 = vld [vmem:[#allocation2 + $0x34] sm:$0xff]
      %v1557 = vld [vmem:[#allocation2 + $0x3c] sm:$0xff]
      %v1558 = vld [vmem:[#allocation2 + $0x44] sm:$0xff]
      %v1559 = vld [vmem:[#allocation2 + $0x4c] sm:$0xff]
      %v1560 = vld [vmem:[#allocation2 + $0x54] sm:$0xff]
      %v1561 = vld [vmem:[#allocation2 + $0x5c] sm:$0xff]
      %v1562 = vld [vmem:[#allocation2 + $0x64] sm:$0xff]
      %v1563 = vld [vmem:[#allocation2 + $0x6c] sm:$0xff]
      %v1564 = vld [vmem:[#allocation2 + $0x74] sm:$0xff]
      %v1565 = vld [vmem:[#allocation2 + $0x7c] sm:$0xff]
      %v1566 = vld [vmem:[#allocation2 + $0x84] sm:$0xff]
      %v1567 = vld [vmem:[#allocation2 + $0x8c] sm:$0xff]
      %v1568 = vld [vmem:[#allocation2 + $0x94] sm:$0xff]
      %v1569 = vld [vmem:[#allocation2 + $0x9c] sm:$0xff]
      %v1570 = vld [vmem:[#allocation2 + $0xa4] sm:$0xff]
      %v1571 = vld [vmem:[#allocation2 + $0xac] sm:$0xff]
      %v1572 = vld [vmem:[#allocation2 + $0xb4] sm:$0xff]
      %v1573 = vld [vmem:[#allocation2 + $0xbc] sm:$0xff]
      %v1574 = vld [vmem:[#allocation2 + $0xc4] sm:$0xff]
      %v1575 = vld [vmem:[#allocation2 + $0xcc] sm:$0xff]
      %v1576 = vld [vmem:[#allocation2 + $0xd4] sm:$0xff]
      %v1577 = vld [vmem:[#allocation2 + $0xdc] sm:$0xff]
      %v1578 = vld [vmem:[#allocation2 + $0xe4] sm:$0xff]
      %v1579 = vld [vmem:[#allocation2 + $0xec] sm:$0xff]
      %v1580 = vld [vmem:[#allocation2 + $0xf4] sm:$0xff]
      %v1581 = vld [vmem:[#allocation2 + $0xfc] sm:$0xff]
      %v1582 = vld [vmem:[#allocation2 + $0x104] sm:$0xff]
      %v1583 = vld [vmem:[#allocation2 + $0x10c] sm:$0xff]
      %v1584 = vld [vmem:[#allocation2 + $0x114] sm:$0xff]
      %v1585 = vld [vmem:[#allocation2 + $0x11c] sm:$0xff]
      %v1586 = vld [vmem:[#allocation2 + $0x124] sm:$0xff]
      %v1587 = vld [vmem:[#allocation2 + $0x12c] sm:$0xff]
      %v1588 = vld [vmem:[#allocation2 + $0x134] sm:$0xff]
      %v1589 = vld [vmem:[#allocation2 + $0x13c] sm:$0xff]
      %1626 = vrot.lane.b32.xlu0 %v1554, 48
      %v1627 = vpop.permute.xlu0 %1626
      %1628 = vrot.lane.b32.xlu0 %v1555, 48
      %v1629 = vpop.permute.xlu0 %1628
      %1630 = vrot.lane.b32.xlu0 %v1556, 48
      %v1631 = vpop.permute.xlu0 %1630
      %1632 = vrot.lane.b32.xlu0 %v1557, 48
      %v1633 = vpop.permute.xlu0 %1632
      %1634 = vrot.lane.b32.xlu0 %v1558, 48
      %v1635 = vpop.permute.xlu0 %1634
      %1636 = vrot.lane.b32.xlu0 %v1559, 48
      %v1637 = vpop.permute.xlu0 %1636
      %1638 = vrot.lane.b32.xlu0 %v1560, 48
      %v1639 = vpop.permute.xlu0 %1638
      %1640 = vrot.lane.b32.xlu0 %v1561, 48
      %v1641 = vpop.permute.xlu0 %1640
      %1642 = vrot.lane.b32.xlu0 %v1562, 48
      %v1643 = vpop.permute.xlu0 %1642
      %1644 = vrot.lane.b32.xlu0 %v1563, 48
      %v1645 = vpop.permute.xlu0 %1644
      %1646 = vrot.lane.b32.xlu0 %v1564, 48
      %v1647 = vpop.permute.xlu0 %1646
      %1648 = vrot.lane.b32.xlu0 %v1565, 48
      %v1649 = vpop.permute.xlu0 %1648
      %1650 = vrot.lane.b32.xlu0 %v1566, 48
      %v1651 = vpop.permute.xlu0 %1650
      %1652 = vrot.lane.b32.xlu0 %v1567, 48
      %v1653 = vpop.permute.xlu0 %1652
      %1654 = vrot.lane.b32.xlu0 %v1568, 48
      %v1655 = vpop.permute.xlu0 %1654
      %1656 = vrot.lane.b32.xlu0 %v1569, 48
      %v1657 = vpop.permute.xlu0 %1656
      %1658 = vrot.lane.b32.xlu0 %v1570, 48
      %v1659 = vpop.permute.xlu0 %1658
      %1660 = vrot.lane.b32.xlu0 %v1571, 48
      %v1661 = vpop.permute.xlu0 %1660
      %1662 = vrot.lane.b32.xlu0 %v1572, 48
      %v1663 = vpop.permute.xlu0 %1662
      %1664 = vrot.lane.b32.xlu0 %v1573, 48
      %v1665 = vpop.permute.xlu0 %1664
      %1666 = vrot.lane.b32.xlu0 %v1574, 48
      %v1667 = vpop.permute.xlu0 %1666
      %1668 = vrot.lane.b32.xlu0 %v1575, 48
      %v1669 = vpop.permute.xlu0 %1668
      %1670 = vrot.lane.b32.xlu0 %v1576, 48
      %v1671 = vpop.permute.xlu0 %1670
      %1672 = vrot.lane.b32.xlu0 %v1577, 48
      %v1673 = vpop.permute.xlu0 %1672
      %1674 = vrot.lane.b32.xlu0 %v1578, 48
      %v1675 = vpop.permute.xlu0 %1674
      %1676 = vrot.lane.b32.xlu0 %v1579, 48
      %v1677 = vpop.permute.xlu0 %1676
      %1678 = vrot.lane.b32.xlu0 %v1580, 48
      %v1679 = vpop.permute.xlu0 %1678
      %1680 = vrot.lane.b32.xlu0 %v1581, 48
      %v1681 = vpop.permute.xlu0 %1680
      %1682 = vrot.lane.b32.xlu0 %v1582, 48
      %v1683 = vpop.permute.xlu0 %1682
      %1684 = vrot.lane.b32.xlu0 %v1583, 48
      %v1685 = vpop.permute.xlu0 %1684
      %1686 = vrot.lane.b32.xlu0 %v1584, 48
      %v1687 = vpop.permute.xlu0 %1686
      %1688 = vrot.lane.b32.xlu0 %v1585, 48
      %v1689 = vpop.permute.xlu0 %1688
      %1690 = vrot.lane.b32.xlu0 %v1586, 48
      %v1691 = vpop.permute.xlu0 %1690
      %1692 = vrot.lane.b32.xlu0 %v1587, 48
      %v1693 = vpop.permute.xlu0 %1692
      %1694 = vrot.lane.b32.xlu0 %v1588, 48
      %v1695 = vpop.permute.xlu0 %1694
      %1696 = vrot.lane.b32.xlu0 %v1589, 48
      %v1697 = vpop.permute.xlu0 %1696
      %vm1734 = vcmask 458112
      %1735 = vst.msk [vmem:[#allocation3] sm:$0xff] %vm1734, %v1627
      %1736 = vst.msk [vmem:[#allocation3 + $0x8] sm:$0xff] %vm1734, %v1629
      %1737 = vst.msk [vmem:[#allocation3 + $0x10] sm:$0xff] %vm1734, %v1631
      %1738 = vst.msk [vmem:[#allocation3 + $0x18] sm:$0xff] %vm1734, %v1633
      %1739 = vst.msk [vmem:[#allocation3 + $0x20] sm:$0xff] %vm1734, %v1635
      %1740 = vst.msk [vmem:[#allocation3 + $0x28] sm:$0xff] %vm1734, %v1637
      %1741 = vst.msk [vmem:[#allocation3 + $0x30] sm:$0xff] %vm1734, %v1639
      %1742 = vst.msk [vmem:[#allocation3 + $0x38] sm:$0xff] %vm1734, %v1641
      %1743 = vst.msk [vmem:[#allocation3 + $0x40] sm:$0xff] %vm1734, %v1643
      %1744 = vst.msk [vmem:[#allocation3 + $0x48] sm:$0xff] %vm1734, %v1645
      %1745 = vst.msk [vmem:[#allocation3 + $0x50] sm:$0xff] %vm1734, %v1647
      %1746 = vst.msk [vmem:[#allocation3 + $0x58] sm:$0xff] %vm1734, %v1649
      %1747 = vst.msk [vmem:[#allocation3 + $0x60] sm:$0xff] %vm1734, %v1651
      %1748 = vst.msk [vmem:[#allocation3 + $0x68] sm:$0xff] %vm1734, %v1653
      %1749 = vst.msk [vmem:[#allocation3 + $0x70] sm:$0xff] %vm1734, %v1655
      %1750 = vst.msk [vmem:[#allocation3 + $0x78] sm:$0xff] %vm1734, %v1657
      %1751 = vst.msk [vmem:[#allocation3 + $0x80] sm:$0xff] %vm1734, %v1659
      %1752 = vst.msk [vmem:[#allocation3 + $0x88] sm:$0xff] %vm1734, %v1661
      %1753 = vst.msk [vmem:[#allocation3 + $0x90] sm:$0xff] %vm1734, %v1663
      %1754 = vst.msk [vmem:[#allocation3 + $0x98] sm:$0xff] %vm1734, %v1665
      %1755 = vst.msk [vmem:[#allocation3 + $0xa0] sm:$0xff] %vm1734, %v1667
      %1756 = vst.msk [vmem:[#allocation3 + $0xa8] sm:$0xff] %vm1734, %v1669
      %1757 = vst.msk [vmem:[#allocation3 + $0xb0] sm:$0xff] %vm1734, %v1671
      %1758 = vst.msk [vmem:[#allocation3 + $0xb8] sm:$0xff] %vm1734, %v1673
      %1759 = vst.msk [vmem:[#allocation3 + $0xc0] sm:$0xff] %vm1734, %v1675
      %1760 = vst.msk [vmem:[#allocation3 + $0xc8] sm:$0xff] %vm1734, %v1677
      %1761 = vst.msk [vmem:[#allocation3 + $0xd0] sm:$0xff] %vm1734, %v1679
      %1762 = vst.msk [vmem:[#allocation3 + $0xd8] sm:$0xff] %vm1734, %v1681
      %1763 = vst.msk [vmem:[#allocation3 + $0xe0] sm:$0xff] %vm1734, %v1683
      %1764 = vst.msk [vmem:[#allocation3 + $0xe8] sm:$0xff] %vm1734, %v1685
      %1765 = vst.msk [vmem:[#allocation3 + $0xf0] sm:$0xff] %vm1734, %v1687
      %1766 = vst.msk [vmem:[#allocation3 + $0xf8] sm:$0xff] %vm1734, %v1689
      %1767 = vst.msk [vmem:[#allocation3 + $0x100] sm:$0xff] %vm1734, %v1691
      %1768 = vst.msk [vmem:[#allocation3 + $0x108] sm:$0xff] %vm1734, %v1693
      %1769 = vst.msk [vmem:[#allocation3 + $0x110] sm:$0xff] %vm1734, %v1695
      %1770 = vst.msk [vmem:[#allocation3 + $0x118] sm:$0xff] %vm1734, %v1697
      %v1771 = vld [vmem:[#allocation2 + $0x25] sm:$0xff]
      %v1772 = vld [vmem:[#allocation2 + $0x2d] sm:$0xff]
      %v1773 = vld [vmem:[#allocation2 + $0x35] sm:$0xff]
      %v1774 = vld [vmem:[#allocation2 + $0x3d] sm:$0xff]
      %v1775 = vld [vmem:[#allocation2 + $0x45] sm:$0xff]
      %v1776 = vld [vmem:[#allocation2 + $0x4d] sm:$0xff]
      %v1777 = vld [vmem:[#allocation2 + $0x55] sm:$0xff]
      %v1778 = vld [vmem:[#allocation2 + $0x5d] sm:$0xff]
      %v1779 = vld [vmem:[#allocation2 + $0x65] sm:$0xff]
      %v1780 = vld [vmem:[#allocation2 + $0x6d] sm:$0xff]
      %v1781 = vld [vmem:[#allocation2 + $0x75] sm:$0xff]
      %v1782 = vld [vmem:[#allocation2 + $0x7d] sm:$0xff]
      %v1783 = vld [vmem:[#allocation2 + $0x85] sm:$0xff]
      %v1784 = vld [vmem:[#allocation2 + $0x8d] sm:$0xff]
      %v1785 = vld [vmem:[#allocation2 + $0x95] sm:$0xff]
      %v1786 = vld [vmem:[#allocation2 + $0x9d] sm:$0xff]
      %v1787 = vld [vmem:[#allocation2 + $0xa5] sm:$0xff]
      %v1788 = vld [vmem:[#allocation2 + $0xad] sm:$0xff]
      %v1789 = vld [vmem:[#allocation2 + $0xb5] sm:$0xff]
      %v1790 = vld [vmem:[#allocation2 + $0xbd] sm:$0xff]
      %v1791 = vld [vmem:[#allocation2 + $0xc5] sm:$0xff]
      %v1792 = vld [vmem:[#allocation2 + $0xcd] sm:$0xff]
      %v1793 = vld [vmem:[#allocation2 + $0xd5] sm:$0xff]
      %v1794 = vld [vmem:[#allocation2 + $0xdd] sm:$0xff]
      %v1795 = vld [vmem:[#allocation2 + $0xe5] sm:$0xff]
      %v1796 = vld [vmem:[#allocation2 + $0xed] sm:$0xff]
      %v1797 = vld [vmem:[#allocation2 + $0xf5] sm:$0xff]
      %v1798 = vld [vmem:[#allocation2 + $0xfd] sm:$0xff]
      %v1799 = vld [vmem:[#allocation2 + $0x105] sm:$0xff]
      %v1800 = vld [vmem:[#allocation2 + $0x10d] sm:$0xff]
      %v1801 = vld [vmem:[#allocation2 + $0x115] sm:$0xff]
      %v1802 = vld [vmem:[#allocation2 + $0x11d] sm:$0xff]
      %v1803 = vld [vmem:[#allocation2 + $0x125] sm:$0xff]
      %v1804 = vld [vmem:[#allocation2 + $0x12d] sm:$0xff]
      %v1805 = vld [vmem:[#allocation2 + $0x135] sm:$0xff]
      %v1806 = vld [vmem:[#allocation2 + $0x13d] sm:$0xff]
      %1843 = vrot.lane.b32.xlu0 %v1771, 56
      %v1844 = vpop.permute.xlu0 %1843
      %1845 = vrot.lane.b32.xlu0 %v1772, 56
      %v1846 = vpop.permute.xlu0 %1845
      %1847 = vrot.lane.b32.xlu0 %v1773, 56
      %v1848 = vpop.permute.xlu0 %1847
      %1849 = vrot.lane.b32.xlu0 %v1774, 56
      %v1850 = vpop.permute.xlu0 %1849
      %1851 = vrot.lane.b32.xlu0 %v1775, 56
      %v1852 = vpop.permute.xlu0 %1851
      %1853 = vrot.lane.b32.xlu0 %v1776, 56
      %v1854 = vpop.permute.xlu0 %1853
      %1855 = vrot.lane.b32.xlu0 %v1777, 56
      %v1856 = vpop.permute.xlu0 %1855
      %1857 = vrot.lane.b32.xlu0 %v1778, 56
      %v1858 = vpop.permute.xlu0 %1857
      %1859 = vrot.lane.b32.xlu0 %v1779, 56
      %v1860 = vpop.permute.xlu0 %1859
      %1861 = vrot.lane.b32.xlu0 %v1780, 56
      %v1862 = vpop.permute.xlu0 %1861
      %1863 = vrot.lane.b32.xlu0 %v1781, 56
      %v1864 = vpop.permute.xlu0 %1863
      %1865 = vrot.lane.b32.xlu0 %v1782, 56
      %v1866 = vpop.permute.xlu0 %1865
      %1867 = vrot.lane.b32.xlu0 %v1783, 56
      %v1868 = vpop.permute.xlu0 %1867
      %1869 = vrot.lane.b32.xlu0 %v1784, 56
      %v1870 = vpop.permute.xlu0 %1869
      %1871 = vrot.lane.b32.xlu0 %v1785, 56
      %v1872 = vpop.permute.xlu0 %1871
      %1873 = vrot.lane.b32.xlu0 %v1786, 56
      %v1874 = vpop.permute.xlu0 %1873
      %1875 = vrot.lane.b32.xlu0 %v1787, 56
      %v1876 = vpop.permute.xlu0 %1875
      %1877 = vrot.lane.b32.xlu0 %v1788, 56
      %v1878 = vpop.permute.xlu0 %1877
      %1879 = vrot.lane.b32.xlu0 %v1789, 56
      %v1880 = vpop.permute.xlu0 %1879
      %1881 = vrot.lane.b32.xlu0 %v1790, 56
      %v1882 = vpop.permute.xlu0 %1881
      %1883 = vrot.lane.b32.xlu0 %v1791, 56
      %v1884 = vpop.permute.xlu0 %1883
      %1885 = vrot.lane.b32.xlu0 %v1792, 56
      %v1886 = vpop.permute.xlu0 %1885
      %1887 = vrot.lane.b32.xlu0 %v1793, 56
      %v1888 = vpop.permute.xlu0 %1887
      %1889 = vrot.lane.b32.xlu0 %v1794, 56
      %v1890 = vpop.permute.xlu0 %1889
      %1891 = vrot.lane.b32.xlu0 %v1795, 56
      %v1892 = vpop.permute.xlu0 %1891
      %1893 = vrot.lane.b32.xlu0 %v1796, 56
      %v1894 = vpop.permute.xlu0 %1893
      %1895 = vrot.lane.b32.xlu0 %v1797, 56
      %v1896 = vpop.permute.xlu0 %1895
      %1897 = vrot.lane.b32.xlu0 %v1798, 56
      %v1898 = vpop.permute.xlu0 %1897
      %1899 = vrot.lane.b32.xlu0 %v1799, 56
      %v1900 = vpop.permute.xlu0 %1899
      %1901 = vrot.lane.b32.xlu0 %v1800, 56
      %v1902 = vpop.permute.xlu0 %1901
      %1903 = vrot.lane.b32.xlu0 %v1801, 56
      %v1904 = vpop.permute.xlu0 %1903
      %1905 = vrot.lane.b32.xlu0 %v1802, 56
      %v1906 = vpop.permute.xlu0 %1905
      %1907 = vrot.lane.b32.xlu0 %v1803, 56
      %v1908 = vpop.permute.xlu0 %1907
      %1909 = vrot.lane.b32.xlu0 %v1804, 56
      %v1910 = vpop.permute.xlu0 %1909
      %1911 = vrot.lane.b32.xlu0 %v1805, 56
      %v1912 = vpop.permute.xlu0 %1911
      %1913 = vrot.lane.b32.xlu0 %v1806, 56
      %v1914 = vpop.permute.xlu0 %1913
      %vm1951 = vcmask 523712
      %1952 = vst.msk [vmem:[#allocation3] sm:$0xff] %vm1951, %v1844
      %1953 = vst.msk [vmem:[#allocation3 + $0x8] sm:$0xff] %vm1951, %v1846
      %1954 = vst.msk [vmem:[#allocation3 + $0x10] sm:$0xff] %vm1951, %v1848
      %1955 = vst.msk [vmem:[#allocation3 + $0x18] sm:$0xff] %vm1951, %v1850
      %1956 = vst.msk [vmem:[#allocation3 + $0x20] sm:$0xff] %vm1951, %v1852
      %1957 = vst.msk [vmem:[#allocation3 + $0x28] sm:$0xff] %vm1951, %v1854
      %1958 = vst.msk [vmem:[#allocation3 + $0x30] sm:$0xff] %vm1951, %v1856
      %1959 = vst.msk [vmem:[#allocation3 + $0x38] sm:$0xff] %vm1951, %v1858
      %1960 = vst.msk [vmem:[#allocation3 + $0x40] sm:$0xff] %vm1951, %v1860
      %1961 = vst.msk [vmem:[#allocation3 + $0x48] sm:$0xff] %vm1951, %v1862
      %1962 = vst.msk [vmem:[#allocation3 + $0x50] sm:$0xff] %vm1951, %v1864
      %1963 = vst.msk [vmem:[#allocation3 + $0x58] sm:$0xff] %vm1951, %v1866
      %1964 = vst.msk [vmem:[#allocation3 + $0x60] sm:$0xff] %vm1951, %v1868
      %1965 = vst.msk [vmem:[#allocation3 + $0x68] sm:$0xff] %vm1951, %v1870
      %1966 = vst.msk [vmem:[#allocation3 + $0x70] sm:$0xff] %vm1951, %v1872
      %1967 = vst.msk [vmem:[#allocation3 + $0x78] sm:$0xff] %vm1951, %v1874
      %1968 = vst.msk [vmem:[#allocation3 + $0x80] sm:$0xff] %vm1951, %v1876
      %1969 = vst.msk [vmem:[#allocation3 + $0x88] sm:$0xff] %vm1951, %v1878
      %1970 = vst.msk [vmem:[#allocation3 + $0x90] sm:$0xff] %vm1951, %v1880
      %1971 = vst.msk [vmem:[#allocation3 + $0x98] sm:$0xff] %vm1951, %v1882
      %1972 = vst.msk [vmem:[#allocation3 + $0xa0] sm:$0xff] %vm1951, %v1884
      %1973 = vst.msk [vmem:[#allocation3 + $0xa8] sm:$0xff] %vm1951, %v1886
      %1974 = vst.msk [vmem:[#allocation3 + $0xb0] sm:$0xff] %vm1951, %v1888
      %1975 = vst.msk [vmem:[#allocation3 + $0xb8] sm:$0xff] %vm1951, %v1890
      %1976 = vst.msk [vmem:[#allocation3 + $0xc0] sm:$0xff] %vm1951, %v1892
      %1977 = vst.msk [vmem:[#allocation3 + $0xc8] sm:$0xff] %vm1951, %v1894
      %1978 = vst.msk [vmem:[#allocation3 + $0xd0] sm:$0xff] %vm1951, %v1896
      %1979 = vst.msk [vmem:[#allocation3 + $0xd8] sm:$0xff] %vm1951, %v1898
      %1980 = vst.msk [vmem:[#allocation3 + $0xe0] sm:$0xff] %vm1951, %v1900
      %1981 = vst.msk [vmem:[#allocation3 + $0xe8] sm:$0xff] %vm1951, %v1902
      %1982 = vst.msk [vmem:[#allocation3 + $0xf0] sm:$0xff] %vm1951, %v1904
      %1983 = vst.msk [vmem:[#allocation3 + $0xf8] sm:$0xff] %vm1951, %v1906
      %1984 = vst.msk [vmem:[#allocation3 + $0x100] sm:$0xff] %vm1951, %v1908
      %1985 = vst.msk [vmem:[#allocation3 + $0x108] sm:$0xff] %vm1951, %v1910
      %1986 = vst.msk [vmem:[#allocation3 + $0x110] sm:$0xff] %vm1951, %v1912
      %1987 = vst.msk [vmem:[#allocation3 + $0x118] sm:$0xff] %vm1951, %v1914
      %v1988 = vld [vmem:[#allocation2 + $0x26] sm:$0xff]
      %v1989 = vld [vmem:[#allocation2 + $0x2e] sm:$0xff]
      %v1990 = vld [vmem:[#allocation2 + $0x36] sm:$0xff]
      %v1991 = vld [vmem:[#allocation2 + $0x3e] sm:$0xff]
      %v1992 = vld [vmem:[#allocation2 + $0x46] sm:$0xff]
      %v1993 = vld [vmem:[#allocation2 + $0x4e] sm:$0xff]
      %v1994 = vld [vmem:[#allocation2 + $0x56] sm:$0xff]
      %v1995 = vld [vmem:[#allocation2 + $0x5e] sm:$0xff]
      %v1996 = vld [vmem:[#allocation2 + $0x66] sm:$0xff]
      %v1997 = vld [vmem:[#allocation2 + $0x6e] sm:$0xff]
      %v1998 = vld [vmem:[#allocation2 + $0x76] sm:$0xff]
      %v1999 = vld [vmem:[#allocation2 + $0x7e] sm:$0xff]
      %v2000 = vld [vmem:[#allocation2 + $0x86] sm:$0xff]
      %v2001 = vld [vmem:[#allocation2 + $0x8e] sm:$0xff]
      %v2002 = vld [vmem:[#allocation2 + $0x96] sm:$0xff]
      %v2003 = vld [vmem:[#allocation2 + $0x9e] sm:$0xff]
      %v2004 = vld [vmem:[#allocation2 + $0xa6] sm:$0xff]
      %v2005 = vld [vmem:[#allocation2 + $0xae] sm:$0xff]
      %v2006 = vld [vmem:[#allocation2 + $0xb6] sm:$0xff]
      %v2007 = vld [vmem:[#allocation2 + $0xbe] sm:$0xff]
      %v2008 = vld [vmem:[#allocation2 + $0xc6] sm:$0xff]
      %v2009 = vld [vmem:[#allocation2 + $0xce] sm:$0xff]
      %v2010 = vld [vmem:[#allocation2 + $0xd6] sm:$0xff]
      %v2011 = vld [vmem:[#allocation2 + $0xde] sm:$0xff]
      %v2012 = vld [vmem:[#allocation2 + $0xe6] sm:$0xff]
      %v2013 = vld [vmem:[#allocation2 + $0xee] sm:$0xff]
      %v2014 = vld [vmem:[#allocation2 + $0xf6] sm:$0xff]
      %v2015 = vld [vmem:[#allocation2 + $0xfe] sm:$0xff]
      %v2016 = vld [vmem:[#allocation2 + $0x106] sm:$0xff]
      %v2017 = vld [vmem:[#allocation2 + $0x10e] sm:$0xff]
      %v2018 = vld [vmem:[#allocation2 + $0x116] sm:$0xff]
      %v2019 = vld [vmem:[#allocation2 + $0x11e] sm:$0xff]
      %v2020 = vld [vmem:[#allocation2 + $0x126] sm:$0xff]
      %v2021 = vld [vmem:[#allocation2 + $0x12e] sm:$0xff]
      %v2022 = vld [vmem:[#allocation2 + $0x136] sm:$0xff]
      %v2023 = vld [vmem:[#allocation2 + $0x13e] sm:$0xff]
      %2060 = vrot.lane.b32.xlu0 %v1988, 64
      %v2061 = vpop.permute.xlu0 %2060
      %2062 = vrot.lane.b32.xlu0 %v1989, 64
      %v2063 = vpop.permute.xlu0 %2062
      %2064 = vrot.lane.b32.xlu0 %v1990, 64
      %v2065 = vpop.permute.xlu0 %2064
      %2066 = vrot.lane.b32.xlu0 %v1991, 64
      %v2067 = vpop.permute.xlu0 %2066
      %2068 = vrot.lane.b32.xlu0 %v1992, 64
      %v2069 = vpop.permute.xlu0 %2068
      %2070 = vrot.lane.b32.xlu0 %v1993, 64
      %v2071 = vpop.permute.xlu0 %2070
      %2072 = vrot.lane.b32.xlu0 %v1994, 64
      %v2073 = vpop.permute.xlu0 %2072
      %2074 = vrot.lane.b32.xlu0 %v1995, 64
      %v2075 = vpop.permute.xlu0 %2074
      %2076 = vrot.lane.b32.xlu0 %v1996, 64
      %v2077 = vpop.permute.xlu0 %2076
      %2078 = vrot.lane.b32.xlu0 %v1997, 64
      %v2079 = vpop.permute.xlu0 %2078
      %2080 = vrot.lane.b32.xlu0 %v1998, 64
      %v2081 = vpop.permute.xlu0 %2080
      %2082 = vrot.lane.b32.xlu0 %v1999, 64
      %v2083 = vpop.permute.xlu0 %2082
      %2084 = vrot.lane.b32.xlu0 %v2000, 64
      %v2085 = vpop.permute.xlu0 %2084
      %2086 = vrot.lane.b32.xlu0 %v2001, 64
      %v2087 = vpop.permute.xlu0 %2086
      %2088 = vrot.lane.b32.xlu0 %v2002, 64
      %v2089 = vpop.permute.xlu0 %2088
      %2090 = vrot.lane.b32.xlu0 %v2003, 64
      %v2091 = vpop.permute.xlu0 %2090
      %2092 = vrot.lane.b32.xlu0 %v2004, 64
      %v2093 = vpop.permute.xlu0 %2092
      %2094 = vrot.lane.b32.xlu0 %v2005, 64
      %v2095 = vpop.permute.xlu0 %2094
      %2096 = vrot.lane.b32.xlu0 %v2006, 64
      %v2097 = vpop.permute.xlu0 %2096
      %2098 = vrot.lane.b32.xlu0 %v2007, 64
      %v2099 = vpop.permute.xlu0 %2098
      %2100 = vrot.lane.b32.xlu0 %v2008, 64
      %v2101 = vpop.permute.xlu0 %2100
      %2102 = vrot.lane.b32.xlu0 %v2009, 64
      %v2103 = vpop.permute.xlu0 %2102
      %2104 = vrot.lane.b32.xlu0 %v2010, 64
      %v2105 = vpop.permute.xlu0 %2104
      %2106 = vrot.lane.b32.xlu0 %v2011, 64
      %v2107 = vpop.permute.xlu0 %2106
      %2108 = vrot.lane.b32.xlu0 %v2012, 64
      %v2109 = vpop.permute.xlu0 %2108
      %2110 = vrot.lane.b32.xlu0 %v2013, 64
      %v2111 = vpop.permute.xlu0 %2110
      %2112 = vrot.lane.b32.xlu0 %v2014, 64
      %v2113 = vpop.permute.xlu0 %2112
      %2114 = vrot.lane.b32.xlu0 %v2015, 64
      %v2115 = vpop.permute.xlu0 %2114
      %2116 = vrot.lane.b32.xlu0 %v2016, 64
      %v2117 = vpop.permute.xlu0 %2116
      %2118 = vrot.lane.b32.xlu0 %v2017, 64
      %v2119 = vpop.permute.xlu0 %2118
      %2120 = vrot.lane.b32.xlu0 %v2018, 64
      %v2121 = vpop.permute.xlu0 %2120
      %2122 = vrot.lane.b32.xlu0 %v2019, 64
      %v2123 = vpop.permute.xlu0 %2122
      %2124 = vrot.lane.b32.xlu0 %v2020, 64
      %v2125 = vpop.permute.xlu0 %2124
      %2126 = vrot.lane.b32.xlu0 %v2021, 64
      %v2127 = vpop.permute.xlu0 %2126
      %2128 = vrot.lane.b32.xlu0 %v2022, 64
      %v2129 = vpop.permute.xlu0 %2128
      %2130 = vrot.lane.b32.xlu0 %v2023, 64
      %v2131 = vpop.permute.xlu0 %2130
      %vm2168 = vcmask 589312
      %2169 = vst.msk [vmem:[#allocation3] sm:$0xff] %vm2168, %v2061
      %2170 = vst.msk [vmem:[#allocation3 + $0x8] sm:$0xff] %vm2168, %v2063
      %2171 = vst.msk [vmem:[#allocation3 + $0x10] sm:$0xff] %vm2168, %v2065
      %2172 = vst.msk [vmem:[#allocation3 + $0x18] sm:$0xff] %vm2168, %v2067
      %2173 = vst.msk [vmem:[#allocation3 + $0x20] sm:$0xff] %vm2168, %v2069
      %2174 = vst.msk [vmem:[#allocation3 + $0x28] sm:$0xff] %vm2168, %v2071
      %2175 = vst.msk [vmem:[#allocation3 + $0x30] sm:$0xff] %vm2168, %v2073
      %2176 = vst.msk [vmem:[#allocation3 + $0x38] sm:$0xff] %vm2168, %v2075
      %2177 = vst.msk [vmem:[#allocation3 + $0x40] sm:$0xff] %vm2168, %v2077
      %2178 = vst.msk [vmem:[#allocation3 + $0x48] sm:$0xff] %vm2168, %v2079
      %2179 = vst.msk [vmem:[#allocation3 + $0x50] sm:$0xff] %vm2168, %v2081
      %2180 = vst.msk [vmem:[#allocation3 + $0x58] sm:$0xff] %vm2168, %v2083
      %2181 = vst.msk [vmem:[#allocation3 + $0x60] sm:$0xff] %vm2168, %v2085
      %2182 = vst.msk [vmem:[#allocation3 + $0x68] sm:$0xff] %vm2168, %v2087
      %2183 = vst.msk [vmem:[#allocation3 + $0x70] sm:$0xff] %vm2168, %v2089
      %2184 = vst.msk [vmem:[#allocation3 + $0x78] sm:$0xff] %vm2168, %v2091
      %2185 = vst.msk [vmem:[#allocation3 + $0x80] sm:$0xff] %vm2168, %v2093
      %2186 = vst.msk [vmem:[#allocation3 + $0x88] sm:$0xff] %vm2168, %v2095
      %2187 = vst.msk [vmem:[#allocation3 + $0x90] sm:$0xff] %vm2168, %v2097
      %2188 = vst.msk [vmem:[#allocation3 + $0x98] sm:$0xff] %vm2168, %v2099
      %2189 = vst.msk [vmem:[#allocation3 + $0xa0] sm:$0xff] %vm2168, %v2101
      %2190 = vst.msk [vmem:[#allocation3 + $0xa8] sm:$0xff] %vm2168, %v2103
      %2191 = vst.msk [vmem:[#allocation3 + $0xb0] sm:$0xff] %vm2168, %v2105
      %2192 = vst.msk [vmem:[#allocation3 + $0xb8] sm:$0xff] %vm2168, %v2107
      %2193 = vst.msk [vmem:[#allocation3 + $0xc0] sm:$0xff] %vm2168, %v2109
      %2194 = vst.msk [vmem:[#allocation3 + $0xc8] sm:$0xff] %vm2168, %v2111
      %2195 = vst.msk [vmem:[#allocation3 + $0xd0] sm:$0xff] %vm2168, %v2113
      %2196 = vst.msk [vmem:[#allocation3 + $0xd8] sm:$0xff] %vm2168, %v2115
      %2197 = vst.msk [vmem:[#allocation3 + $0xe0] sm:$0xff] %vm2168, %v2117
      %2198 = vst.msk [vmem:[#allocation3 + $0xe8] sm:$0xff] %vm2168, %v2119
      %2199 = vst.msk [vmem:[#allocation3 + $0xf0] sm:$0xff] %vm2168, %v2121
      %2200 = vst.msk [vmem:[#allocation3 + $0xf8] sm:$0xff] %vm2168, %v2123
      %2201 = vst.msk [vmem:[#allocation3 + $0x100] sm:$0xff] %vm2168, %v2125
      %2202 = vst.msk [vmem:[#allocation3 + $0x108] sm:$0xff] %vm2168, %v2127
      %2203 = vst.msk [vmem:[#allocation3 + $0x110] sm:$0xff] %vm2168, %v2129
      %2204 = vst.msk [vmem:[#allocation3 + $0x118] sm:$0xff] %vm2168, %v2131
      %v2205 = vld [vmem:[#allocation3] sm:$0xff]
      %v2206 = vld [vmem:[#allocation3 + $0x8] sm:$0xff]
      %v2207 = vld [vmem:[#allocation3 + $0x10] sm:$0xff]
      %v2208 = vld [vmem:[#allocation3 + $0x18] sm:$0xff]
      %v2209 = vld [vmem:[#allocation3 + $0x20] sm:$0xff]
      %v2210 = vld [vmem:[#allocation3 + $0x28] sm:$0xff]
      %v2211 = vld [vmem:[#allocation3 + $0x30] sm:$0xff]
      %v2212 = vld [vmem:[#allocation3 + $0x38] sm:$0xff]
      %v2213 = vld [vmem:[#allocation3 + $0x40] sm:$0xff]
      %v2214 = vld [vmem:[#allocation3 + $0x48] sm:$0xff]
      %v2215 = vld [vmem:[#allocation3 + $0x50] sm:$0xff]
      %v2216 = vld [vmem:[#allocation3 + $0x58] sm:$0xff]
      %v2217 = vld [vmem:[#allocation3 + $0x60] sm:$0xff]
      %v2218 = vld [vmem:[#allocation3 + $0x68] sm:$0xff]
      %v2219 = vld [vmem:[#allocation3 + $0x70] sm:$0xff]
      %v2220 = vld [vmem:[#allocation3 + $0x78] sm:$0xff]
      %v2221 = vld [vmem:[#allocation3 + $0x80] sm:$0xff]
      %v2222 = vld [vmem:[#allocation3 + $0x88] sm:$0xff]
      %v2223 = vld [vmem:[#allocation3 + $0x90] sm:$0xff]
      %v2224 = vld [vmem:[#allocation3 + $0x98] sm:$0xff]
      %v2225 = vld [vmem:[#allocation3 + $0xa0] sm:$0xff]
      %v2226 = vld [vmem:[#allocation3 + $0xa8] sm:$0xff]
      %v2227 = vld [vmem:[#allocation3 + $0xb0] sm:$0xff]
      %v2228 = vld [vmem:[#allocation3 + $0xb8] sm:$0xff]
      %v2229 = vld [vmem:[#allocation3 + $0xc0] sm:$0xff]
      %v2230 = vld [vmem:[#allocation3 + $0xc8] sm:$0xff]
      %v2231 = vld [vmem:[#allocation3 + $0xd0] sm:$0xff]
      %v2232 = vld [vmem:[#allocation3 + $0xd8] sm:$0xff]
      %v2233 = vld [vmem:[#allocation3 + $0xe0] sm:$0xff]
      %v2234 = vld [vmem:[#allocation3 + $0xe8] sm:$0xff]
      %v2235 = vld [vmem:[#allocation3 + $0xf0] sm:$0xff]
      %v2236 = vld [vmem:[#allocation3 + $0xf8] sm:$0xff]
      %v2237 = vld [vmem:[#allocation3 + $0x100] sm:$0xff]
      %v2238 = vld [vmem:[#allocation3 + $0x108] sm:$0xff]
      %v2239 = vld [vmem:[#allocation3 + $0x110] sm:$0xff]
      %v2240 = vld [vmem:[#allocation3 + $0x118] sm:$0xff]
      %v2241 = vld [vmem:[%s3] sm:$0xff]
      %v2242 = vld [vmem:[%s3 + $0x8] sm:$0xff]
      %v2243 = vld [vmem:[%s3 + $0x10] sm:$0xff]
      %v2244 = vld [vmem:[%s3 + $0x18] sm:$0xff]
      %v2245 = vld [vmem:[%s3 + $0x20] sm:$0xff]
      %v2246 = vld [vmem:[%s3 + $0x28] sm:$0xff]
      %v2247 = vld [vmem:[%s3 + $0x30] sm:$0xff]
      %v2248 = vld [vmem:[%s3 + $0x38] sm:$0xff]
      %v2249 = vld [vmem:[%s3 + $0x40] sm:$0xff]
      %vm2250 = vcmask 588800
      %v2252 = vsel %vm2250, %v2205, 0
      %v2255 = vsel %vm2250, %v2206, 0
      %v2258 = vsel %vm2250, %v2207, 0
      %v2261 = vsel %vm2250, %v2208, 0
      %v2264 = vsel %vm2250, %v2209, 0
      %v2267 = vsel %vm2250, %v2210, 0
      %v2270 = vsel %vm2250, %v2211, 0
      %v2273 = vsel %vm2250, %v2212, 0
      %v2276 = vsel %vm2250, %v2213, 0
      %v2279 = vsel %vm2250, %v2214, 0
      %v2282 = vsel %vm2250, %v2215, 0
      %v2285 = vsel %vm2250, %v2216, 0
      %v2288 = vsel %vm2250, %v2217, 0
      %v2291 = vsel %vm2250, %v2218, 0
      %v2294 = vsel %vm2250, %v2219, 0
      %v2297 = vsel %vm2250, %v2220, 0
      %v2300 = vsel %vm2250, %v2221, 0
      %v2303 = vsel %vm2250, %v2222, 0
      %v2306 = vsel %vm2250, %v2223, 0
      %v2309 = vsel %vm2250, %v2224, 0
      %v2312 = vsel %vm2250, %v2225, 0
      %v2315 = vsel %vm2250, %v2226, 0
      %v2318 = vsel %vm2250, %v2227, 0
      %v2321 = vsel %vm2250, %v2228, 0
      %v2324 = vsel %vm2250, %v2229, 0
      %v2327 = vsel %vm2250, %v2230, 0
      %v2330 = vsel %vm2250, %v2231, 0
      %v2333 = vsel %vm2250, %v2232, 0
      %v2336 = vsel %vm2250, %v2233, 0
      %v2339 = vsel %vm2250, %v2234, 0
      %v2342 = vsel %vm2250, %v2235, 0
      %v2345 = vsel %vm2250, %v2236, 0
      %v2348 = vsel %vm2250, %v2237, 0
      %v2351 = vsel %vm2250, %v2238, 0
      %v2354 = vsel %vm2250, %v2239, 0
      %v2357 = vsel %vm2250, %v2240, 0
      %2359 = vmatprep.subr.mxu0 0.0
      %2360 = vmatpush1.msra.mxu0 %v2241
      %2361 = vmatprep.subr.mxu0 0.0
      %2362 = vmatpush1.msra.mxu0 %v2242
      %2363 = vmatprep.subr.mxu0 0.0
      %2364 = vmatpush1.msra.mxu0 %v2243
      %2365 = vmatprep.subr.mxu0 0.0
      %2366 = vmatpush1.msra.mxu0 %v2244
      %2367 = vmatprep.subr.mxu0 0.0
      %2368 = vmatpush1.msra.mxu0 %v2245
      %2369 = vmatprep.subr.mxu0 0.0
      %2370 = vmatpush1.msra.mxu0 %v2246
      %2371 = vmatprep.subr.mxu0 0.0
      %2372 = vmatpush1.msra.mxu0 %v2247
      %2373 = vmatprep.subr.mxu0 0.0
      %2374 = vmatpush1.msra.mxu0 %v2248
      %2375 = vmatprep.subr.mxu0 0.0
      %2376 = vmatpush1.msra.mxu0 %v2249
      %2377 = vmatprep.subr.mxu0 0.0
      %2378 = vmatpush1.msra.mxu0 0.0
      %2379 = vmatprep.subr.mxu0 0.0
      %2380 = vmatpush1.msra.mxu0 0.0
      %2381 = vmatprep.subr.mxu0 0.0
      %2382 = vmatpush1.msra.mxu0 0.0
      %2383 = vmatprep.subr.mxu0 0.0
      %2384 = vmatpush1.msra.mxu0 0.0
      %2385 = vmatprep.subr.mxu0 0.0
      %2386 = vmatpush1.msra.mxu0 0.0
      %2387 = vmatprep.subr.mxu0 0.0
      %2388 = vmatpush1.msra.mxu0 0.0
      %2389 = vmatprep.subr.mxu0 0.0
      %2390 = vmatpush1.msra.mxu0 0.0
      %2391 = vmatprep.subr.mxu0 0.0
      %2392 = vmatpush1.msra.mxu0 0.0
      %2393 = vmatprep.subr.mxu0 0.0
      %2394 = vmatpush1.msra.mxu0 0.0
      %2395 = vmatprep.subr.mxu0 0.0
      %2396 = vmatpush1.msra.mxu0 0.0
      %2397 = vmatprep.subr.mxu0 0.0
      %2398 = vmatpush1.msra.mxu0 0.0
      %2399 = vmatprep.subr.mxu0 0.0
      %2400 = vmatpush1.msra.mxu0 0.0
      %2401 = vmatprep.subr.mxu0 0.0
      %2402 = vmatpush1.msra.mxu0 0.0
      %2403 = vmatprep.subr.mxu0 0.0
      %2404 = vmatpush1.msra.mxu0 0.0
      %2405 = vmatprep.subr.mxu0 0.0
      %2406 = vmatpush1.msra.mxu0 0.0
      %2407 = vmatprep.subr.mxu0 0.0
      %2408 = vmatpush1.msra.mxu0 0.0
      %2409 = vmatprep.subr.mxu0 0.0
      %2410 = vmatpush1.msra.mxu0 0.0
      %2411 = vmatprep.subr.mxu0 0.0
      %2412 = vmatpush1.msra.mxu0 0.0
      %2413 = vmatprep.subr.mxu0 0.0
      %2414 = vmatpush1.msra.mxu0 0.0
      %2415 = vmatprep.subr.mxu0 0.0
      %2416 = vmatpush1.msra.mxu0 0.0
      %2417 = vmatprep.subr.mxu0 0.0
      %2418 = vmatpush1.msra.mxu0 0.0
      %2419 = vmatprep.subr.mxu0 0.0
      %2420 = vmatpush1.msra.mxu0 0.0
      %2421 = vmatprep.subr.mxu0 0.0
      %2422 = vmatpush1.msra.mxu0 0.0
      %2423 = vmatprep.mubr.f32.mxu0 0.0
      %2424 = vmatmul.mubr.f32.gmra.mrb[0].mxu0 %v2252
      %v2425 = vpop.f32.mrb[0].mxu0
      %v2426 = vadd.f32 0.0, %v2425
      %v2427 = vpop.f32.mrb[0].mxu0
      %2428 = vmatprep.mubr.f32.mxu0 0.0
      %2429 = vmatmul.mubr.f32.gmra.mrb[0].mxu0 %v2255
      %v2430 = vpop.f32.mrb[0].mxu0
      %v2431 = vadd.f32 0.0, %v2430
      %v2432 = vpop.f32.mrb[0].mxu0
      %2433 = vmatprep.mubr.f32.mxu0 0.0
      %2434 = vmatmul.mubr.f32.gmra.mrb[0].mxu0 %v2258
      %v2435 = vpop.f32.mrb[0].mxu0
      %v2436 = vadd.f32 0.0, %v2435
      %v2437 = vpop.f32.mrb[0].mxu0
      %2438 = vmatprep.mubr.f32.mxu0 0.0
      %2439 = vmatmul.mubr.f32.gmra.mrb[0].mxu0 %v2261
      %v2440 = vpop.f32.mrb[0].mxu0
      %v2441 = vadd.f32 0.0, %v2440
      %v2442 = vpop.f32.mrb[0].mxu0
      %2443 = vmatprep.mubr.f32.mxu0 0.0
      %2444 = vmatmul.mubr.f32.gmra.mrb[0].mxu0 %v2264
      %v2445 = vpop.f32.mrb[0].mxu0
      %v2446 = vadd.f32 0.0, %v2445
      %v2447 = vpop.f32.mrb[0].mxu0
      %2448 = vmatprep.mubr.f32.mxu0 0.0
      %2449 = vmatmul.mubr.f32.gmra.mrb[0].mxu0 %v2267
      %v2450 = vpop.f32.mrb[0].mxu0
      %v2451 = vadd.f32 0.0, %v2450
      %v2452 = vpop.f32.mrb[0].mxu0
      %2453 = vmatprep.mubr.f32.mxu0 0.0
      %2454 = vmatmul.mubr.f32.gmra.mrb[0].mxu0 %v2270
      %v2455 = vpop.f32.mrb[0].mxu0
      %v2456 = vadd.f32 0.0, %v2455
      %v2457 = vpop.f32.mrb[0].mxu0
      %2458 = vmatprep.mubr.f32.mxu0 0.0
      %2459 = vmatmul.mubr.f32.gmra.mrb[0].mxu0 %v2273
      %v2460 = vpop.f32.mrb[0].mxu0
      %v2461 = vadd.f32 0.0, %v2460
      %v2462 = vpop.f32.mrb[0].mxu0
      %2463 = vmatprep.mubr.f32.mxu0 0.0
      %2464 = vmatmul.mubr.f32.gmra.mrb[0].mxu0 %v2276
      %v2465 = vpop.f32.mrb[0].mxu0
      %v2466 = vadd.f32 0.0, %v2465
      %v2467 = vpop.f32.mrb[0].mxu0
      %2468 = vmatprep.mubr.f32.mxu0 0.0
      %2469 = vmatmul.mubr.f32.gmra.mrb[0].mxu0 %v2279
      %v2470 = vpop.f32.mrb[0].mxu0
      %v2471 = vadd.f32 0.0, %v2470
      %v2472 = vpop.f32.mrb[0].mxu0
      %2473 = vmatprep.mubr.f32.mxu0 0.0
      %2474 = vmatmul.mubr.f32.gmra.mrb[0].mxu0 %v2282
      %v2475 = vpop.f32.mrb[0].mxu0
      %v2476 = vadd.f32 0.0, %v2475
      %v2477 = vpop.f32.mrb[0].mxu0
      %2478 = vmatprep.mubr.f32.mxu0 0.0
      %2479 = vmatmul.mubr.f32.gmra.mrb[0].mxu0 %v2285
      %v2480 = vpop.f32.mrb[0].mxu0
      %v2481 = vadd.f32 0.0, %v2480
      %v2482 = vpop.f32.mrb[0].mxu0
      %2483 = vmatprep.mubr.f32.mxu0 0.0
      %2484 = vmatmul.mubr.f32.gmra.mrb[0].mxu0 %v2288
      %v2485 = vpop.f32.mrb[0].mxu0
      %v2486 = vadd.f32 0.0, %v2485
      %v2487 = vpop.f32.mrb[0].mxu0
      %2488 = vmatprep.mubr.f32.mxu0 0.0
      %2489 = vmatmul.mubr.f32.gmra.mrb[0].mxu0 %v2291
      %v2490 = vpop.f32.mrb[0].mxu0
      %v2491 = vadd.f32 0.0, %v2490
      %v2492 = vpop.f32.mrb[0].mxu0
      %2493 = vmatprep.mubr.f32.mxu0 0.0
      %2494 = vmatmul.mubr.f32.gmra.mrb[0].mxu0 %v2294
      %v2495 = vpop.f32.mrb[0].mxu0
      %v2496 = vadd.f32 0.0, %v2495
      %v2497 = vpop.f32.mrb[0].mxu0
      %2498 = vmatprep.mubr.f32.mxu0 0.0
      %2499 = vmatmul.mubr.f32.gmra.mrb[0].mxu0 %v2297
      %v2500 = vpop.f32.mrb[0].mxu0
      %v2501 = vadd.f32 0.0, %v2500
      %v2502 = vpop.f32.mrb[0].mxu0
      %2503 = vmatprep.mubr.f32.mxu0 0.0
      %2504 = vmatmul.mubr.f32.gmra.mrb[0].mxu0 %v2300
      %v2505 = vpop.f32.mrb[0].mxu0
      %v2506 = vadd.f32 0.0, %v2505
      %v2507 = vpop.f32.mrb[0].mxu0
      %2508 = vmatprep.mubr.f32.mxu0 0.0
      %2509 = vmatmul.mubr.f32.gmra.mrb[0].mxu0 %v2303
      %v2510 = vpop.f32.mrb[0].mxu0
      %v2511 = vadd.f32 0.0, %v2510
      %v2512 = vpop.f32.mrb[0].mxu0
      %2513 = vmatprep.mubr.f32.mxu0 0.0
      %2514 = vmatmul.mubr.f32.gmra.mrb[0].mxu0 %v2306
      %v2515 = vpop.f32.mrb[0].mxu0
      %v2516 = vadd.f32 0.0, %v2515
      %v2517 = vpop.f32.mrb[0].mxu0
      %2518 = vmatprep.mubr.f32.mxu0 0.0
      %2519 = vmatmul.mubr.f32.gmra.mrb[0].mxu0 %v2309
      %v2520 = vpop.f32.mrb[0].mxu0
      %v2521 = vadd.f32 0.0, %v2520
      %v2522 = vpop.f32.mrb[0].mxu0
      %2523 = vmatprep.mubr.f32.mxu0 0.0
      %2524 = vmatmul.mubr.f32.gmra.mrb[0].mxu0 %v2312
      %v2525 = vpop.f32.mrb[0].mxu0
      %v2526 = vadd.f32 0.0, %v2525
      %v2527 = vpop.f32.mrb[0].mxu0
      %2528 = vmatprep.mubr.f32.mxu0 0.0
      %2529 = vmatmul.mubr.f32.gmra.mrb[0].mxu0 %v2315
      %v2530 = vpop.f32.mrb[0].mxu0
      %v2531 = vadd.f32 0.0, %v2530
      %v2532 = vpop.f32.mrb[0].mxu0
      %2533 = vmatprep.mubr.f32.mxu0 0.0
      %2534 = vmatmul.mubr.f32.gmra.mrb[0].mxu0 %v2318
      %v2535 = vpop.f32.mrb[0].mxu0
      %v2536 = vadd.f32 0.0, %v2535
      %v2537 = vpop.f32.mrb[0].mxu0
      %2538 = vmatprep.mubr.f32.mxu0 0.0
      %2539 = vmatmul.mubr.f32.gmra.mrb[0].mxu0 %v2321
      %v2540 = vpop.f32.mrb[0].mxu0
      %v2541 = vadd.f32 0.0, %v2540
      %v2542 = vpop.f32.mrb[0].mxu0
      %2543 = vmatprep.mubr.f32.mxu0 0.0
      %2544 = vmatmul.mubr.f32.gmra.mrb[0].mxu0 %v2324
      %v2545 = vpop.f32.mrb[0].mxu0
      %v2546 = vadd.f32 0.0, %v2545
      %v2547 = vpop.f32.mrb[0].mxu0
      %2548 = vmatprep.mubr.f32.mxu0 0.0
      %2549 = vmatmul.mubr.f32.gmra.mrb[0].mxu0 %v2327
      %v2550 = vpop.f32.mrb[0].mxu0
      %v2551 = vadd.f32 0.0, %v2550
      %v2552 = vpop.f32.mrb[0].mxu0
      %2553 = vmatprep.mubr.f32.mxu0 0.0
      %2554 = vmatmul.mubr.f32.gmra.mrb[0].mxu0 %v2330
      %v2555 = vpop.f32.mrb[0].mxu0
      %v2556 = vadd.f32 0.0, %v2555
      %v2557 = vpop.f32.mrb[0].mxu0
      %2558 = vmatprep.mubr.f32.mxu0 0.0
      %2559 = vmatmul.mubr.f32.gmra.mrb[0].mxu0 %v2333
      %v2560 = vpop.f32.mrb[0].mxu0
      %v2561 = vadd.f32 0.0, %v2560
      %v2562 = vpop.f32.mrb[0].mxu0
      %2563 = vmatprep.mubr.f32.mxu0 0.0
      %2564 = vmatmul.mubr.f32.gmra.mrb[0].mxu0 %v2336
      %v2565 = vpop.f32.mrb[0].mxu0
      %v2566 = vadd.f32 0.0, %v2565
      %v2567 = vpop.f32.mrb[0].mxu0
      %2568 = vmatprep.mubr.f32.mxu0 0.0
      %2569 = vmatmul.mubr.f32.gmra.mrb[0].mxu0 %v2339
      %v2570 = vpop.f32.mrb[0].mxu0
      %v2571 = vadd.f32 0.0, %v2570
      %v2572 = vpop.f32.mrb[0].mxu0
      %2573 = vmatprep.mubr.f32.mxu0 0.0
      %2574 = vmatmul.mubr.f32.gmra.mrb[0].mxu0 %v2342
      %v2575 = vpop.f32.mrb[0].mxu0
      %v2576 = vadd.f32 0.0, %v2575
      %v2577 = vpop.f32.mrb[0].mxu0
      %2578 = vmatprep.mubr.f32.mxu0 0.0
      %2579 = vmatmul.mubr.f32.gmra.mrb[0].mxu0 %v2345
      %v2580 = vpop.f32.mrb[0].mxu0
      %v2581 = vadd.f32 0.0, %v2580
      %v2582 = vpop.f32.mrb[0].mxu0
      %2583 = vmatprep.mubr.f32.mxu0 0.0
      %2584 = vmatmul.mubr.f32.gmra.mrb[0].mxu0 %v2348
      %v2585 = vpop.f32.mrb[0].mxu0
      %v2586 = vadd.f32 0.0, %v2585
      %v2587 = vpop.f32.mrb[0].mxu0
      %2588 = vmatprep.mubr.f32.mxu0 0.0
      %2589 = vmatmul.mubr.f32.gmra.mrb[0].mxu0 %v2351
      %v2590 = vpop.f32.mrb[0].mxu0
      %v2591 = vadd.f32 0.0, %v2590
      %v2592 = vpop.f32.mrb[0].mxu0
      %2593 = vmatprep.mubr.f32.mxu0 0.0
      %2594 = vmatmul.mubr.f32.gmra.mrb[0].mxu0 %v2354
      %v2595 = vpop.f32.mrb[0].mxu0
      %v2596 = vadd.f32 0.0, %v2595
      %v2597 = vpop.f32.mrb[0].mxu0
      %2598 = vmatprep.mubr.f32.mxu0 0.0
      %2599 = vmatmul.mubr.f32.gmra.mrb[0].mxu0 %v2357
      %v2600 = vpop.f32.mrb[0].mxu0
      %v2601 = vadd.f32 0.0, %v2600
      %v2602 = vpop.f32.mrb[0].mxu0
      %2603 = vdwg.mxu0
      %v2640 = vcombine.high %v2426, %v2426
      %v2642 = vunpack.c.l.s4 1983009808
      %v2643 = vunpack.c.0.s8 %v2642
      %v2644 = vlaneseq
      %v2645 = vshrl.u32 %v2644, 7
      %v2646 = vsub.s32 %v2643, %v2645
      %v2647 = vrot.slane %v2426, %v2646
      %v2649 = vunpack.c.l.s4 1983009808
      %v2650 = vunpack.c.0.s8 %v2649
      %v2651 = vlaneseq
      %v2652 = vshrl.u32 %v2651, 7
      %v2653 = vsub.s32 %v2650, %v2652
      %v2654 = vrot.slane %v2640, %v2653
      %v2655 = vcombine.high %v2647, %v2647
      %v2656 = vcombine.high %v2654, %v2654
      %v2657 = vcombine.high %v2431, %v2431
      %v2659 = vunpack.c.l.s4 1983009808
      %v2660 = vunpack.c.0.s8 %v2659
      %v2661 = vlaneseq
      %v2662 = vshrl.u32 %v2661, 7
      %v2663 = vsub.s32 %v2660, %v2662
      %v2664 = vrot.slane %v2431, %v2663
      %v2666 = vunpack.c.l.s4 1983009808
      %v2667 = vunpack.c.0.s8 %v2666
      %v2668 = vlaneseq
      %v2669 = vshrl.u32 %v2668, 7
      %v2670 = vsub.s32 %v2667, %v2669
      %v2671 = vrot.slane %v2657, %v2670
      %v2672 = vcombine.high %v2664, %v2664
      %v2673 = vcombine.high %v2671, %v2671
      %v2674 = vcombine.high %v2436, %v2436
      %v2676 = vunpack.c.l.s4 1983009808
      %v2677 = vunpack.c.0.s8 %v2676
      %v2678 = vlaneseq
      %v2679 = vshrl.u32 %v2678, 7
      %v2680 = vsub.s32 %v2677, %v2679
      %v2681 = vrot.slane %v2436, %v2680
      %v2683 = vunpack.c.l.s4 1983009808
      %v2684 = vunpack.c.0.s8 %v2683
      %v2685 = vlaneseq
      %v2686 = vshrl.u32 %v2685, 7
      %v2687 = vsub.s32 %v2684, %v2686
      %v2688 = vrot.slane %v2674, %v2687
      %v2689 = vcombine.high %v2681, %v2681
      %v2690 = vcombine.high %v2688, %v2688
      %v2691 = vcombine.high %v2441, %v2441
      %v2693 = vunpack.c.l.s4 1983009808
      %v2694 = vunpack.c.0.s8 %v2693
      %v2695 = vlaneseq
      %v2696 = vshrl.u32 %v2695, 7
      %v2697 = vsub.s32 %v2694, %v2696
      %v2698 = vrot.slane %v2441, %v2697
      %v2700 = vunpack.c.l.s4 1983009808
      %v2701 = vunpack.c.0.s8 %v2700
      %v2702 = vlaneseq
      %v2703 = vshrl.u32 %v2702, 7
      %v2704 = vsub.s32 %v2701, %v2703
      %v2705 = vrot.slane %v2691, %v2704
      %v2706 = vcombine.high %v2698, %v2698
      %v2707 = vcombine.high %v2705, %v2705
      %v2708 = vcombine.high %v2446, %v2446
      %v2710 = vunpack.c.l.s4 1983009808
      %v2711 = vunpack.c.0.s8 %v2710
      %v2712 = vlaneseq
      %v2713 = vshrl.u32 %v2712, 7
      %v2714 = vsub.s32 %v2711, %v2713
      %v2715 = vrot.slane %v2446, %v2714
      %v2717 = vunpack.c.l.s4 1983009808
      %v2718 = vunpack.c.0.s8 %v2717
      %v2719 = vlaneseq
      %v2720 = vshrl.u32 %v2719, 7
      %v2721 = vsub.s32 %v2718, %v2720
      %v2722 = vrot.slane %v2708, %v2721
      %v2723 = vcombine.high %v2722, %v2722
      %v2724 = vcombine.high %v2451, %v2451
      %v2726 = vunpack.c.l.s4 1983009808
      %v2727 = vunpack.c.0.s8 %v2726
      %v2728 = vlaneseq
      %v2729 = vshrl.u32 %v2728, 7
      %v2730 = vsub.s32 %v2727, %v2729
      %v2731 = vrot.slane %v2451, %v2730
      %v2733 = vunpack.c.l.s4 1983009808
      %v2734 = vunpack.c.0.s8 %v2733
      %v2735 = vlaneseq
      %v2736 = vshrl.u32 %v2735, 7
      %v2737 = vsub.s32 %v2734, %v2736
      %v2738 = vrot.slane %v2724, %v2737
      %v2739 = vcombine.high %v2731, %v2731
      %v2740 = vcombine.high %v2738, %v2738
      %v2741 = vcombine.high %v2456, %v2456
      %v2743 = vunpack.c.l.s4 1983009808
      %v2744 = vunpack.c.0.s8 %v2743
      %v2745 = vlaneseq
      %v2746 = vshrl.u32 %v2745, 7
      %v2747 = vsub.s32 %v2744, %v2746
      %v2748 = vrot.slane %v2456, %v2747
      %v2750 = vunpack.c.l.s4 1983009808
      %v2751 = vunpack.c.0.s8 %v2750
      %v2752 = vlaneseq
      %v2753 = vshrl.u32 %v2752, 7
      %v2754 = vsub.s32 %v2751, %v2753
      %v2755 = vrot.slane %v2741, %v2754
      %v2756 = vcombine.high %v2748, %v2748
      %v2757 = vcombine.high %v2755, %v2755
      %v2758 = vcombine.high %v2461, %v2461
      %v2760 = vunpack.c.l.s4 1983009808
      %v2761 = vunpack.c.0.s8 %v2760
      %v2762 = vlaneseq
      %v2763 = vshrl.u32 %v2762, 7
      %v2764 = vsub.s32 %v2761, %v2763
      %v2765 = vrot.slane %v2461, %v2764
      %v2767 = vunpack.c.l.s4 1983009808
      %v2768 = vunpack.c.0.s8 %v2767
      %v2769 = vlaneseq
      %v2770 = vshrl.u32 %v2769, 7
      %v2771 = vsub.s32 %v2768, %v2770
      %v2772 = vrot.slane %v2758, %v2771
      %v2773 = vcombine.high %v2765, %v2765
      %v2774 = vcombine.high %v2772, %v2772
      %v2775 = vcombine.high %v2466, %v2466
      %v2777 = vunpack.c.l.s4 1983009808
      %v2778 = vunpack.c.0.s8 %v2777
      %v2779 = vlaneseq
      %v2780 = vshrl.u32 %v2779, 7
      %v2781 = vsub.s32 %v2778, %v2780
      %v2782 = vrot.slane %v2466, %v2781
      %v2784 = vunpack.c.l.s4 1983009808
      %v2785 = vunpack.c.0.s8 %v2784
      %v2786 = vlaneseq
      %v2787 = vshrl.u32 %v2786, 7
      %v2788 = vsub.s32 %v2785, %v2787
      %v2789 = vrot.slane %v2775, %v2788
      %v2790 = vcombine.high %v2782, %v2782
      %v2791 = vcombine.high %v2471, %v2471
      %v2793 = vunpack.c.l.s4 1983009808
      %v2794 = vunpack.c.0.s8 %v2793
      %v2795 = vlaneseq
      %v2796 = vshrl.u32 %v2795, 7
      %v2797 = vsub.s32 %v2794, %v2796
      %v2798 = vrot.slane %v2471, %v2797
      %v2800 = vunpack.c.l.s4 1983009808
      %v2801 = vunpack.c.0.s8 %v2800
      %v2802 = vlaneseq
      %v2803 = vshrl.u32 %v2802, 7
      %v2804 = vsub.s32 %v2801, %v2803
      %v2805 = vrot.slane %v2791, %v2804
      %v2806 = vcombine.high %v2798, %v2798
      %v2807 = vcombine.high %v2805, %v2805
      %v2808 = vcombine.high %v2476, %v2476
      %v2810 = vunpack.c.l.s4 1983009808
      %v2811 = vunpack.c.0.s8 %v2810
      %v2812 = vlaneseq
      %v2813 = vshrl.u32 %v2812, 7
      %v2814 = vsub.s32 %v2811, %v2813
      %v2815 = vrot.slane %v2476, %v2814
      %v2817 = vunpack.c.l.s4 1983009808
      %v2818 = vunpack.c.0.s8 %v2817
      %v2819 = vlaneseq
      %v2820 = vshrl.u32 %v2819, 7
      %v2821 = vsub.s32 %v2818, %v2820
      %v2822 = vrot.slane %v2808, %v2821
      %v2823 = vcombine.high %v2815, %v2815
      %v2824 = vcombine.high %v2822, %v2822
      %v2825 = vcombine.high %v2481, %v2481
      %v2827 = vunpack.c.l.s4 1983009808
      %v2828 = vunpack.c.0.s8 %v2827
      %v2829 = vlaneseq
      %v2830 = vshrl.u32 %v2829, 7
      %v2831 = vsub.s32 %v2828, %v2830
      %v2832 = vrot.slane %v2481, %v2831
      %v2834 = vunpack.c.l.s4 1983009808
      %v2835 = vunpack.c.0.s8 %v2834
      %v2836 = vlaneseq
      %v2837 = vshrl.u32 %v2836, 7
      %v2838 = vsub.s32 %v2835, %v2837
      %v2839 = vrot.slane %v2825, %v2838
      %v2840 = vcombine.high %v2832, %v2832
      %v2841 = vcombine.high %v2839, %v2839
      %v2842 = vcombine.high %v2486, %v2486
      %v2844 = vunpack.c.l.s4 1983009808
      %v2845 = vunpack.c.0.s8 %v2844
      %v2846 = vlaneseq
      %v2847 = vshrl.u32 %v2846, 7
      %v2848 = vsub.s32 %v2845, %v2847
      %v2849 = vrot.slane %v2486, %v2848
      %v2851 = vunpack.c.l.s4 1983009808
      %v2852 = vunpack.c.0.s8 %v2851
      %v2853 = vlaneseq
      %v2854 = vshrl.u32 %v2853, 7
      %v2855 = vsub.s32 %v2852, %v2854
      %v2856 = vrot.slane %v2842, %v2855
      %v2857 = vcombine.high %v2849, %v2849
      %v2858 = vcombine.high %v2856, %v2856
      %v2859 = vcombine.high %v2491, %v2491
      %v2861 = vunpack.c.l.s4 1983009808
      %v2862 = vunpack.c.0.s8 %v2861
      %v2863 = vlaneseq
      %v2864 = vshrl.u32 %v2863, 7
      %v2865 = vsub.s32 %v2862, %v2864
      %v2866 = vrot.slane %v2491, %v2865
      %v2868 = vunpack.c.l.s4 1983009808
      %v2869 = vunpack.c.0.s8 %v2868
      %v2870 = vlaneseq
      %v2871 = vshrl.u32 %v2870, 7
      %v2872 = vsub.s32 %v2869, %v2871
      %v2873 = vrot.slane %v2859, %v2872
      %v2874 = vcombine.high %v2873, %v2873
      %v2875 = vcombine.high %v2496, %v2496
      %v2877 = vunpack.c.l.s4 1983009808
      %v2878 = vunpack.c.0.s8 %v2877
      %v2879 = vlaneseq
      %v2880 = vshrl.u32 %v2879, 7
      %v2881 = vsub.s32 %v2878, %v2880
      %v2882 = vrot.slane %v2496, %v2881
      %v2884 = vunpack.c.l.s4 1983009808
      %v2885 = vunpack.c.0.s8 %v2884
      %v2886 = vlaneseq
      %v2887 = vshrl.u32 %v2886, 7
      %v2888 = vsub.s32 %v2885, %v2887
      %v2889 = vrot.slane %v2875, %v2888
      %v2890 = vcombine.high %v2882, %v2882
      %v2891 = vcombine.high %v2889, %v2889
      %v2892 = vcombine.high %v2501, %v2501
      %v2894 = vunpack.c.l.s4 1983009808
      %v2895 = vunpack.c.0.s8 %v2894
      %v2896 = vlaneseq
      %v2897 = vshrl.u32 %v2896, 7
      %v2898 = vsub.s32 %v2895, %v2897
      %v2899 = vrot.slane %v2501, %v2898
      %v2901 = vunpack.c.l.s4 1983009808
      %v2902 = vunpack.c.0.s8 %v2901
      %v2903 = vlaneseq
      %v2904 = vshrl.u32 %v2903, 7
      %v2905 = vsub.s32 %v2902, %v2904
      %v2906 = vrot.slane %v2892, %v2905
      %v2907 = vcombine.high %v2899, %v2899
      %v2908 = vcombine.high %v2906, %v2906
      %v2909 = vcombine.high %v2506, %v2506
      %v2911 = vunpack.c.l.s4 1983009808
      %v2912 = vunpack.c.0.s8 %v2911
      %v2913 = vlaneseq
      %v2914 = vshrl.u32 %v2913, 7
      %v2915 = vsub.s32 %v2912, %v2914
      %v2916 = vrot.slane %v2506, %v2915
      %v2918 = vunpack.c.l.s4 1983009808
      %v2919 = vunpack.c.0.s8 %v2918
      %v2920 = vlaneseq
      %v2921 = vshrl.u32 %v2920, 7
      %v2922 = vsub.s32 %v2919, %v2921
      %v2923 = vrot.slane %v2909, %v2922
      %v2924 = vcombine.high %v2916, %v2916
      %v2925 = vcombine.high %v2923, %v2923
      %v2926 = vcombine.high %v2511, %v2511
      %v2928 = vunpack.c.l.s4 1983009808
      %v2929 = vunpack.c.0.s8 %v2928
      %v2930 = vlaneseq
      %v2931 = vshrl.u32 %v2930, 7
      %v2932 = vsub.s32 %v2929, %v2931
      %v2933 = vrot.slane %v2511, %v2932
      %v2935 = vunpack.c.l.s4 1983009808
      %v2936 = vunpack.c.0.s8 %v2935
      %v2937 = vlaneseq
      %v2938 = vshrl.u32 %v2937, 7
      %v2939 = vsub.s32 %v2936, %v2938
      %v2940 = vrot.slane %v2926, %v2939
      %v2941 = vcombine.high %v2933, %v2933
      %v2942 = vcombine.high %v2516, %v2516
      %v2944 = vunpack.c.l.s4 1983009808
      %v2945 = vunpack.c.0.s8 %v2944
      %v2946 = vlaneseq
      %v2947 = vshrl.u32 %v2946, 7
      %v2948 = vsub.s32 %v2945, %v2947
      %v2949 = vrot.slane %v2516, %v2948
      %v2951 = vunpack.c.l.s4 1983009808
      %v2952 = vunpack.c.0.s8 %v2951
      %v2953 = vlaneseq
      %v2954 = vshrl.u32 %v2953, 7
      %v2955 = vsub.s32 %v2952, %v2954
      %v2956 = vrot.slane %v2942, %v2955
      %v2957 = vcombine.high %v2949, %v2949
      %v2958 = vcombine.high %v2956, %v2956
      %v2959 = vcombine.high %v2521, %v2521
      %v2961 = vunpack.c.l.s4 1983009808
      %v2962 = vunpack.c.0.s8 %v2961
      %v2963 = vlaneseq
      %v2964 = vshrl.u32 %v2963, 7
      %v2965 = vsub.s32 %v2962, %v2964
      %v2966 = vrot.slane %v2521, %v2965
      %v2968 = vunpack.c.l.s4 1983009808
      %v2969 = vunpack.c.0.s8 %v2968
      %v2970 = vlaneseq
      %v2971 = vshrl.u32 %v2970, 7
      %v2972 = vsub.s32 %v2969, %v2971
      %v2973 = vrot.slane %v2959, %v2972
      %v2974 = vcombine.high %v2966, %v2966
      %v2975 = vcombine.high %v2973, %v2973
      %v2976 = vcombine.high %v2526, %v2526
      %v2978 = vunpack.c.l.s4 1983009808
      %v2979 = vunpack.c.0.s8 %v2978
      %v2980 = vlaneseq
      %v2981 = vshrl.u32 %v2980, 7
      %v2982 = vsub.s32 %v2979, %v2981
      %v2983 = vrot.slane %v2526, %v2982
      %v2985 = vunpack.c.l.s4 1983009808
      %v2986 = vunpack.c.0.s8 %v2985
      %v2987 = vlaneseq
      %v2988 = vshrl.u32 %v2987, 7
      %v2989 = vsub.s32 %v2986, %v2988
      %v2990 = vrot.slane %v2976, %v2989
      %v2991 = vcombine.high %v2983, %v2983
      %v2992 = vcombine.high %v2990, %v2990
      %v2993 = vcombine.high %v2531, %v2531
      %v2995 = vunpack.c.l.s4 1983009808
      %v2996 = vunpack.c.0.s8 %v2995
      %v2997 = vlaneseq
      %v2998 = vshrl.u32 %v2997, 7
      %v2999 = vsub.s32 %v2996, %v2998
      %v3000 = vrot.slane %v2531, %v2999
      %v3002 = vunpack.c.l.s4 1983009808
      %v3003 = vunpack.c.0.s8 %v3002
      %v3004 = vlaneseq
      %v3005 = vshrl.u32 %v3004, 7
      %v3006 = vsub.s32 %v3003, %v3005
      %v3007 = vrot.slane %v2993, %v3006
      %v3008 = vcombine.high %v3000, %v3000
      %v3009 = vcombine.high %v3007, %v3007
      %v3010 = vcombine.high %v2536, %v2536
      %v3012 = vunpack.c.l.s4 1983009808
      %v3013 = vunpack.c.0.s8 %v3012
      %v3014 = vlaneseq
      %v3015 = vshrl.u32 %v3014, 7
      %v3016 = vsub.s32 %v3013, %v3015
      %v3017 = vrot.slane %v2536, %v3016
      %v3019 = vunpack.c.l.s4 1983009808
      %v3020 = vunpack.c.0.s8 %v3019
      %v3021 = vlaneseq
      %v3022 = vshrl.u32 %v3021, 7
      %v3023 = vsub.s32 %v3020, %v3022
      %v3024 = vrot.slane %v3010, %v3023
      %v3025 = vcombine.high %v3024, %v3024
      %v3026 = vcombine.high %v2541, %v2541
      %v3028 = vunpack.c.l.s4 1983009808
      %v3029 = vunpack.c.0.s8 %v3028
      %v3030 = vlaneseq
      %v3031 = vshrl.u32 %v3030, 7
      %v3032 = vsub.s32 %v3029, %v3031
      %v3033 = vrot.slane %v2541, %v3032
      %v3035 = vunpack.c.l.s4 1983009808
      %v3036 = vunpack.c.0.s8 %v3035
      %v3037 = vlaneseq
      %v3038 = vshrl.u32 %v3037, 7
      %v3039 = vsub.s32 %v3036, %v3038
      %v3040 = vrot.slane %v3026, %v3039
      %v3041 = vcombine.high %v3033, %v3033
      %v3042 = vcombine.high %v3040, %v3040
      %v3043 = vcombine.high %v2546, %v2546
      %v3045 = vunpack.c.l.s4 1983009808
      %v3046 = vunpack.c.0.s8 %v3045
      %v3047 = vlaneseq
      %v3048 = vshrl.u32 %v3047, 7
      %v3049 = vsub.s32 %v3046, %v3048
      %v3050 = vrot.slane %v2546, %v3049
      %v3052 = vunpack.c.l.s4 1983009808
      %v3053 = vunpack.c.0.s8 %v3052
      %v3054 = vlaneseq
      %v3055 = vshrl.u32 %v3054, 7
      %v3056 = vsub.s32 %v3053, %v3055
      %v3057 = vrot.slane %v3043, %v3056
      %v3058 = vcombine.high %v3050, %v3050
      %v3059 = vcombine.high %v3057, %v3057
      %v3060 = vcombine.high %v2551, %v2551
      %v3062 = vunpack.c.l.s4 1983009808
      %v3063 = vunpack.c.0.s8 %v3062
      %v3064 = vlaneseq
      %v3065 = vshrl.u32 %v3064, 7
      %v3066 = vsub.s32 %v3063, %v3065
      %v3067 = vrot.slane %v2551, %v3066
      %v3069 = vunpack.c.l.s4 1983009808
      %v3070 = vunpack.c.0.s8 %v3069
      %v3071 = vlaneseq
      %v3072 = vshrl.u32 %v3071, 7
      %v3073 = vsub.s32 %v3070, %v3072
      %v3074 = vrot.slane %v3060, %v3073
      %v3075 = vcombine.high %v3067, %v3067
      %v3076 = vcombine.high %v3074, %v3074
      %v3077 = vcombine.high %v2556, %v2556
      %v3079 = vunpack.c.l.s4 1983009808
      %v3080 = vunpack.c.0.s8 %v3079
      %v3081 = vlaneseq
      %v3082 = vshrl.u32 %v3081, 7
      %v3083 = vsub.s32 %v3080, %v3082
      %v3084 = vrot.slane %v2556, %v3083
      %v3086 = vunpack.c.l.s4 1983009808
      %v3087 = vunpack.c.0.s8 %v3086
      %v3088 = vlaneseq
      %v3089 = vshrl.u32 %v3088, 7
      %v3090 = vsub.s32 %v3087, %v3089
      %v3091 = vrot.slane %v3077, %v3090
      %v3092 = vcombine.high %v3084, %v3084
      %v3093 = vcombine.high %v2561, %v2561
      %v3095 = vunpack.c.l.s4 1983009808
      %v3096 = vunpack.c.0.s8 %v3095
      %v3097 = vlaneseq
      %v3098 = vshrl.u32 %v3097, 7
      %v3099 = vsub.s32 %v3096, %v3098
      %v3100 = vrot.slane %v2561, %v3099
      %v3102 = vunpack.c.l.s4 1983009808
      %v3103 = vunpack.c.0.s8 %v3102
      %v3104 = vlaneseq
      %v3105 = vshrl.u32 %v3104, 7
      %v3106 = vsub.s32 %v3103, %v3105
      %v3107 = vrot.slane %v3093, %v3106
      %v3108 = vcombine.high %v3100, %v3100
      %v3109 = vcombine.high %v3107, %v3107
      %v3110 = vcombine.high %v2566, %v2566
      %v3112 = vunpack.c.l.s4 1983009808
      %v3113 = vunpack.c.0.s8 %v3112
      %v3114 = vlaneseq
      %v3115 = vshrl.u32 %v3114, 7
      %v3116 = vsub.s32 %v3113, %v3115
      %v3117 = vrot.slane %v2566, %v3116
      %v3119 = vunpack.c.l.s4 1983009808
      %v3120 = vunpack.c.0.s8 %v3119
      %v3121 = vlaneseq
      %v3122 = vshrl.u32 %v3121, 7
      %v3123 = vsub.s32 %v3120, %v3122
      %v3124 = vrot.slane %v3110, %v3123
      %v3125 = vcombine.high %v3117, %v3117
      %v3126 = vcombine.high %v3124, %v3124
      %v3127 = vcombine.high %v2571, %v2571
      %v3129 = vunpack.c.l.s4 1983009808
      %v3130 = vunpack.c.0.s8 %v3129
      %v3131 = vlaneseq
      %v3132 = vshrl.u32 %v3131, 7
      %v3133 = vsub.s32 %v3130, %v3132
      %v3134 = vrot.slane %v2571, %v3133
      %v3136 = vunpack.c.l.s4 1983009808
      %v3137 = vunpack.c.0.s8 %v3136
      %v3138 = vlaneseq
      %v3139 = vshrl.u32 %v3138, 7
      %v3140 = vsub.s32 %v3137, %v3139
      %v3141 = vrot.slane %v3127, %v3140
      %v3142 = vcombine.high %v3134, %v3134
      %v3143 = vcombine.high %v3141, %v3141
      %v3144 = vcombine.high %v2576, %v2576
      %v3146 = vunpack.c.l.s4 1983009808
      %v3147 = vunpack.c.0.s8 %v3146
      %v3148 = vlaneseq
      %v3149 = vshrl.u32 %v3148, 7
      %v3150 = vsub.s32 %v3147, %v3149
      %v3151 = vrot.slane %v2576, %v3150
      %v3153 = vunpack.c.l.s4 1983009808
      %v3154 = vunpack.c.0.s8 %v3153
      %v3155 = vlaneseq
      %v3156 = vshrl.u32 %v3155, 7
      %v3157 = vsub.s32 %v3154, %v3156
      %v3158 = vrot.slane %v3144, %v3157
      %v3159 = vcombine.high %v3151, %v3151
      %v3160 = vcombine.high %v3158, %v3158
      %v3161 = vcombine.high %v2581, %v2581
      %v3163 = vunpack.c.l.s4 1983009808
      %v3164 = vunpack.c.0.s8 %v3163
      %v3165 = vlaneseq
      %v3166 = vshrl.u32 %v3165, 7
      %v3167 = vsub.s32 %v3164, %v3166
      %v3168 = vrot.slane %v2581, %v3167
      %v3170 = vunpack.c.l.s4 1983009808
      %v3171 = vunpack.c.0.s8 %v3170
      %v3172 = vlaneseq
      %v3173 = vshrl.u32 %v3172, 7
      %v3174 = vsub.s32 %v3171, %v3173
      %v3175 = vrot.slane %v3161, %v3174
      %v3176 = vcombine.high %v3175, %v3175
      %v3177 = vcombine.high %v2586, %v2586
      %v3179 = vunpack.c.l.s4 1983009808
      %v3180 = vunpack.c.0.s8 %v3179
      %v3181 = vlaneseq
      %v3182 = vshrl.u32 %v3181, 7
      %v3183 = vsub.s32 %v3180, %v3182
      %v3184 = vrot.slane %v2586, %v3183
      %v3186 = vunpack.c.l.s4 1983009808
      %v3187 = vunpack.c.0.s8 %v3186
      %v3188 = vlaneseq
      %v3189 = vshrl.u32 %v3188, 7
      %v3190 = vsub.s32 %v3187, %v3189
      %v3191 = vrot.slane %v3177, %v3190
      %v3192 = vcombine.high %v3184, %v3184
      %v3193 = vcombine.high %v3191, %v3191
      %v3194 = vcombine.high %v2591, %v2591
      %v3196 = vunpack.c.l.s4 1983009808
      %v3197 = vunpack.c.0.s8 %v3196
      %v3198 = vlaneseq
      %v3199 = vshrl.u32 %v3198, 7
      %v3200 = vsub.s32 %v3197, %v3199
      %v3201 = vrot.slane %v2591, %v3200
      %v3203 = vunpack.c.l.s4 1983009808
      %v3204 = vunpack.c.0.s8 %v3203
      %v3205 = vlaneseq
      %v3206 = vshrl.u32 %v3205, 7
      %v3207 = vsub.s32 %v3204, %v3206
      %v3208 = vrot.slane %v3194, %v3207
      %v3209 = vcombine.high %v3201, %v3201
      %v3210 = vcombine.high %v3208, %v3208
      %v3211 = vcombine.high %v2596, %v2596
      %v3213 = vunpack.c.l.s4 1983009808
      %v3214 = vunpack.c.0.s8 %v3213
      %v3215 = vlaneseq
      %v3216 = vshrl.u32 %v3215, 7
      %v3217 = vsub.s32 %v3214, %v3216
      %v3218 = vrot.slane %v2596, %v3217
      %v3220 = vunpack.c.l.s4 1983009808
      %v3221 = vunpack.c.0.s8 %v3220
      %v3222 = vlaneseq
      %v3223 = vshrl.u32 %v3222, 7
      %v3224 = vsub.s32 %v3221, %v3223
      %v3225 = vrot.slane %v3211, %v3224
      %v3226 = vcombine.high %v3218, %v3218
      %v3227 = vcombine.high %v3225, %v3225
      %v3228 = vcombine.high %v2601, %v2601
      %v3230 = vunpack.c.l.s4 1983009808
      %v3231 = vunpack.c.0.s8 %v3230
      %v3232 = vlaneseq
      %v3233 = vshrl.u32 %v3232, 7
      %v3234 = vsub.s32 %v3231, %v3233
      %v3235 = vrot.slane %v2601, %v3234
      %v3237 = vunpack.c.l.s4 1983009808
      %v3238 = vunpack.c.0.s8 %v3237
      %v3239 = vlaneseq
      %v3240 = vshrl.u32 %v3239, 7
      %v3241 = vsub.s32 %v3238, %v3240
      %v3242 = vrot.slane %v3228, %v3241
      %v3243 = vcombine.high %v3235, %v3235
      %v3244 = vcombine.low %v2647, %v2655
      %v3245 = vcombine.low %v2654, %v2656
      %v3247 = vunpack.c.l.s4 1983009808
      %v3248 = vunpack.c.0.s8 %v3247
      %v3249 = vlaneseq
      %v3250 = vshrl.u32 %v3249, 7
      %v3251 = vsub.s32 %v3248, %v3250
      %v3252 = vrot.slane %v3244, %v3251
      %v3254 = vunpack.c.l.s4 1983009808
      %v3255 = vunpack.c.0.s8 %v3254
      %v3256 = vlaneseq
      %v3257 = vshrl.u32 %v3256, 7
      %v3258 = vsub.s32 %v3255, %v3257
      %v3259 = vrot.slane %v3245, %v3258
      %v3260 = vcombine.low %v3252, %v3259
      %v3261 = vcombine.low %v2664, %v2672
      %v3262 = vcombine.low %v2671, %v2673
      %v3264 = vunpack.c.l.s4 1983009808
      %v3265 = vunpack.c.0.s8 %v3264
      %v3266 = vlaneseq
      %v3267 = vshrl.u32 %v3266, 7
      %v3268 = vsub.s32 %v3265, %v3267
      %v3269 = vrot.slane %v3261, %v3268
      %v3271 = vunpack.c.l.s4 1983009808
      %v3272 = vunpack.c.0.s8 %v3271
      %v3273 = vlaneseq
      %v3274 = vshrl.u32 %v3273, 7
      %v3275 = vsub.s32 %v3272, %v3274
      %v3276 = vrot.slane %v3262, %v3275
      %v3277 = vcombine.low %v3269, %v3276
      %v3278 = vcombine.low %v2689, %v2688
      %v3279 = vcombine.low %v2690, %v2698
      %v3281 = vunpack.c.l.s4 1983009808
      %v3282 = vunpack.c.0.s8 %v3281
      %v3283 = vlaneseq
      %v3284 = vshrl.u32 %v3283, 7
      %v3285 = vsub.s32 %v3282, %v3284
      %v3286 = vrot.slane %v3278, %v3285
      %v3288 = vunpack.c.l.s4 1983009808
      %v3289 = vunpack.c.0.s8 %v3288
      %v3290 = vlaneseq
      %v3291 = vshrl.u32 %v3290, 7
      %v3292 = vsub.s32 %v3289, %v3291
      %v3293 = vrot.slane %v3279, %v3292
      %v3294 = vcombine.low %v3286, %v3293
      %v3295 = vcombine.low %v2706, %v2705
      %v3296 = vcombine.low %v2707, %v2715
      %v3298 = vunpack.c.l.s4 1983009808
      %v3299 = vunpack.c.0.s8 %v3298
      %v3300 = vlaneseq
      %v3301 = vshrl.u32 %v3300, 7
      %v3302 = vsub.s32 %v3299, %v3301
      %v3303 = vrot.slane %v3295, %v3302
      %v3305 = vunpack.c.l.s4 1983009808
      %v3306 = vunpack.c.0.s8 %v3305
      %v3307 = vlaneseq
      %v3308 = vshrl.u32 %v3307, 7
      %v3309 = vsub.s32 %v3306, %v3308
      %v3310 = vrot.slane %v3296, %v3309
      %v3311 = vcombine.low %v3303, %v3310
      %v3312 = vcombine.low %v2722, %v2723
      %v3313 = vcombine.low %v2731, %v2739
      %v3315 = vunpack.c.l.s4 1983009808
      %v3316 = vunpack.c.0.s8 %v3315
      %v3317 = vlaneseq
      %v3318 = vshrl.u32 %v3317, 7
      %v3319 = vsub.s32 %v3316, %v3318
      %v3320 = vrot.slane %v3312, %v3319
      %v3322 = vunpack.c.l.s4 1983009808
      %v3323 = vunpack.c.0.s8 %v3322
      %v3324 = vlaneseq
      %v3325 = vshrl.u32 %v3324, 7
      %v3326 = vsub.s32 %v3323, %v3325
      %v3327 = vrot.slane %v3313, %v3326
      %v3328 = vcombine.low %v3320, %v3327
      %v3329 = vcombine.low %v2738, %v2740
      %v3330 = vcombine.low %v2748, %v2756
      %v3332 = vunpack.c.l.s4 1983009808
      %v3333 = vunpack.c.0.s8 %v3332
      %v3334 = vlaneseq
      %v3335 = vshrl.u32 %v3334, 7
      %v3336 = vsub.s32 %v3333, %v3335
      %v3337 = vrot.slane %v3329, %v3336
      %v3339 = vunpack.c.l.s4 1983009808
      %v3340 = vunpack.c.0.s8 %v3339
      %v3341 = vlaneseq
      %v3342 = vshrl.u32 %v3341, 7
      %v3343 = vsub.s32 %v3340, %v3342
      %v3344 = vrot.slane %v3330, %v3343
      %v3345 = vcombine.low %v3337, %v3344
      %v3346 = vcombine.low %v2757, %v2765
      %v3347 = vcombine.low %v2773, %v2772
      %v3349 = vunpack.c.l.s4 1983009808
      %v3350 = vunpack.c.0.s8 %v3349
      %v3351 = vlaneseq
      %v3352 = vshrl.u32 %v3351, 7
      %v3353 = vsub.s32 %v3350, %v3352
      %v3354 = vrot.slane %v3346, %v3353
      %v3356 = vunpack.c.l.s4 1983009808
      %v3357 = vunpack.c.0.s8 %v3356
      %v3358 = vlaneseq
      %v3359 = vshrl.u32 %v3358, 7
      %v3360 = vsub.s32 %v3357, %v3359
      %v3361 = vrot.slane %v3347, %v3360
      %v3362 = vcombine.low %v3354, %v3361
      %v3363 = vcombine.low %v2774, %v2782
      %v3364 = vcombine.low %v2790, %v2789
      %v3366 = vunpack.c.l.s4 1983009808
      %v3367 = vunpack.c.0.s8 %v3366
      %v3368 = vlaneseq
      %v3369 = vshrl.u32 %v3368, 7
      %v3370 = vsub.s32 %v3367, %v3369
      %v3371 = vrot.slane %v3363, %v3370
      %v3373 = vunpack.c.l.s4 1983009808
      %v3374 = vunpack.c.0.s8 %v3373
      %v3375 = vlaneseq
      %v3376 = vshrl.u32 %v3375, 7
      %v3377 = vsub.s32 %v3374, %v3376
      %v3378 = vrot.slane %v3364, %v3377
      %v3379 = vcombine.low %v3371, %v3378
      %v3380 = vcombine.low %v2798, %v2806
      %v3381 = vcombine.low %v2805, %v2807
      %v3383 = vunpack.c.l.s4 1983009808
      %v3384 = vunpack.c.0.s8 %v3383
      %v3385 = vlaneseq
      %v3386 = vshrl.u32 %v3385, 7
      %v3387 = vsub.s32 %v3384, %v3386
      %v3388 = vrot.slane %v3380, %v3387
      %v3390 = vunpack.c.l.s4 1983009808
      %v3391 = vunpack.c.0.s8 %v3390
      %v3392 = vlaneseq
      %v3393 = vshrl.u32 %v3392, 7
      %v3394 = vsub.s32 %v3391, %v3393
      %v3395 = vrot.slane %v3381, %v3394
      %v3396 = vcombine.low %v3388, %v3395
      %v3397 = vcombine.low %v2815, %v2823
      %v3398 = vcombine.low %v2822, %v2824
      %v3400 = vunpack.c.l.s4 1983009808
      %v3401 = vunpack.c.0.s8 %v3400
      %v3402 = vlaneseq
      %v3403 = vshrl.u32 %v3402, 7
      %v3404 = vsub.s32 %v3401, %v3403
      %v3405 = vrot.slane %v3397, %v3404
      %v3407 = vunpack.c.l.s4 1983009808
      %v3408 = vunpack.c.0.s8 %v3407
      %v3409 = vlaneseq
      %v3410 = vshrl.u32 %v3409, 7
      %v3411 = vsub.s32 %v3408, %v3410
      %v3412 = vrot.slane %v3398, %v3411
      %v3413 = vcombine.low %v3405, %v3412
      %v3414 = vcombine.low %v2840, %v2839
      %v3415 = vcombine.low %v2841, %v2849
      %v3417 = vunpack.c.l.s4 1983009808
      %v3418 = vunpack.c.0.s8 %v3417
      %v3419 = vlaneseq
      %v3420 = vshrl.u32 %v3419, 7
      %v3421 = vsub.s32 %v3418, %v3420
      %v3422 = vrot.slane %v3414, %v3421
      %v3424 = vunpack.c.l.s4 1983009808
      %v3425 = vunpack.c.0.s8 %v3424
      %v3426 = vlaneseq
      %v3427 = vshrl.u32 %v3426, 7
      %v3428 = vsub.s32 %v3425, %v3427
      %v3429 = vrot.slane %v3415, %v3428
      %v3430 = vcombine.low %v3422, %v3429
      %v3431 = vcombine.low %v2857, %v2856
      %v3432 = vcombine.low %v2858, %v2866
      %v3434 = vunpack.c.l.s4 1983009808
      %v3435 = vunpack.c.0.s8 %v3434
      %v3436 = vlaneseq
      %v3437 = vshrl.u32 %v3436, 7
      %v3438 = vsub.s32 %v3435, %v3437
      %v3439 = vrot.slane %v3431, %v3438
      %v3441 = vunpack.c.l.s4 1983009808
      %v3442 = vunpack.c.0.s8 %v3441
      %v3443 = vlaneseq
      %v3444 = vshrl.u32 %v3443, 7
      %v3445 = vsub.s32 %v3442, %v3444
      %v3446 = vrot.slane %v3432, %v3445
      %v3447 = vcombine.low %v3439, %v3446
      %v3448 = vcombine.low %v2873, %v2874
      %v3449 = vcombine.low %v2882, %v2890
      %v3451 = vunpack.c.l.s4 1983009808
      %v3452 = vunpack.c.0.s8 %v3451
      %v3453 = vlaneseq
      %v3454 = vshrl.u32 %v3453, 7
      %v3455 = vsub.s32 %v3452, %v3454
      %v3456 = vrot.slane %v3448, %v3455
      %v3458 = vunpack.c.l.s4 1983009808
      %v3459 = vunpack.c.0.s8 %v3458
      %v3460 = vlaneseq
      %v3461 = vshrl.u32 %v3460, 7
      %v3462 = vsub.s32 %v3459, %v3461
      %v3463 = vrot.slane %v3449, %v3462
      %v3464 = vcombine.low %v3456, %v3463
      %v3465 = vcombine.low %v2889, %v2891
      %v3466 = vcombine.low %v2899, %v2907
      %v3468 = vunpack.c.l.s4 1983009808
      %v3469 = vunpack.c.0.s8 %v3468
      %v3470 = vlaneseq
      %v3471 = vshrl.u32 %v3470, 7
      %v3472 = vsub.s32 %v3469, %v3471
      %v3473 = vrot.slane %v3465, %v3472
      %v3475 = vunpack.c.l.s4 1983009808
      %v3476 = vunpack.c.0.s8 %v3475
      %v3477 = vlaneseq
      %v3478 = vshrl.u32 %v3477, 7
      %v3479 = vsub.s32 %v3476, %v3478
      %v3480 = vrot.slane %v3466, %v3479
      %v3481 = vcombine.low %v3473, %v3480
      %v3482 = vcombine.low %v2908, %v2916
      %v3483 = vcombine.low %v2924, %v2923
      %v3485 = vunpack.c.l.s4 1983009808
      %v3486 = vunpack.c.0.s8 %v3485
      %v3487 = vlaneseq
      %v3488 = vshrl.u32 %v3487, 7
      %v3489 = vsub.s32 %v3486, %v3488
      %v3490 = vrot.slane %v3482, %v3489
      %v3492 = vunpack.c.l.s4 1983009808
      %v3493 = vunpack.c.0.s8 %v3492
      %v3494 = vlaneseq
      %v3495 = vshrl.u32 %v3494, 7
      %v3496 = vsub.s32 %v3493, %v3495
      %v3497 = vrot.slane %v3483, %v3496
      %v3498 = vcombine.low %v3490, %v3497
      %v3499 = vcombine.low %v2925, %v2933
      %v3500 = vcombine.low %v2941, %v2940
      %v3502 = vunpack.c.l.s4 1983009808
      %v3503 = vunpack.c.0.s8 %v3502
      %v3504 = vlaneseq
      %v3505 = vshrl.u32 %v3504, 7
      %v3506 = vsub.s32 %v3503, %v3505
      %v3507 = vrot.slane %v3499, %v3506
      %v3509 = vunpack.c.l.s4 1983009808
      %v3510 = vunpack.c.0.s8 %v3509
      %v3511 = vlaneseq
      %v3512 = vshrl.u32 %v3511, 7
      %v3513 = vsub.s32 %v3510, %v3512
      %v3514 = vrot.slane %v3500, %v3513
      %v3515 = vcombine.low %v3507, %v3514
      %v3516 = vcombine.low %v2949, %v2957
      %v3517 = vcombine.low %v2956, %v2958
      %v3519 = vunpack.c.l.s4 1983009808
      %v3520 = vunpack.c.0.s8 %v3519
      %v3521 = vlaneseq
      %v3522 = vshrl.u32 %v3521, 7
      %v3523 = vsub.s32 %v3520, %v3522
      %v3524 = vrot.slane %v3516, %v3523
      %v3526 = vunpack.c.l.s4 1983009808
      %v3527 = vunpack.c.0.s8 %v3526
      %v3528 = vlaneseq
      %v3529 = vshrl.u32 %v3528, 7
      %v3530 = vsub.s32 %v3527, %v3529
      %v3531 = vrot.slane %v3517, %v3530
      %v3532 = vcombine.low %v3524, %v3531
      %v3533 = vcombine.low %v2966, %v2974
      %v3534 = vcombine.low %v2973, %v2975
      %v3536 = vunpack.c.l.s4 1983009808
      %v3537 = vunpack.c.0.s8 %v3536
      %v3538 = vlaneseq
      %v3539 = vshrl.u32 %v3538, 7
      %v3540 = vsub.s32 %v3537, %v3539
      %v3541 = vrot.slane %v3533, %v3540
      %v3543 = vunpack.c.l.s4 1983009808
      %v3544 = vunpack.c.0.s8 %v3543
      %v3545 = vlaneseq
      %v3546 = vshrl.u32 %v3545, 7
      %v3547 = vsub.s32 %v3544, %v3546
      %v3548 = vrot.slane %v3534, %v3547
      %v3549 = vcombine.low %v3541, %v3548
      %v3550 = vcombine.low %v2991, %v2990
      %v3551 = vcombine.low %v2992, %v3000
      %v3553 = vunpack.c.l.s4 1983009808
      %v3554 = vunpack.c.0.s8 %v3553
      %v3555 = vlaneseq
      %v3556 = vshrl.u32 %v3555, 7
      %v3557 = vsub.s32 %v3554, %v3556
      %v3558 = vrot.slane %v3550, %v3557
      %v3560 = vunpack.c.l.s4 1983009808
      %v3561 = vunpack.c.0.s8 %v3560
      %v3562 = vlaneseq
      %v3563 = vshrl.u32 %v3562, 7
      %v3564 = vsub.s32 %v3561, %v3563
      %v3565 = vrot.slane %v3551, %v3564
      %v3566 = vcombine.low %v3558, %v3565
      %v3567 = vcombine.low %v3008, %v3007
      %v3568 = vcombine.low %v3009, %v3017
      %v3570 = vunpack.c.l.s4 1983009808
      %v3571 = vunpack.c.0.s8 %v3570
      %v3572 = vlaneseq
      %v3573 = vshrl.u32 %v3572, 7
      %v3574 = vsub.s32 %v3571, %v3573
      %v3575 = vrot.slane %v3567, %v3574
      %v3577 = vunpack.c.l.s4 1983009808
      %v3578 = vunpack.c.0.s8 %v3577
      %v3579 = vlaneseq
      %v3580 = vshrl.u32 %v3579, 7
      %v3581 = vsub.s32 %v3578, %v3580
      %v3582 = vrot.slane %v3568, %v3581
      %v3583 = vcombine.low %v3575, %v3582
      %v3584 = vcombine.low %v3024, %v3025
      %v3585 = vcombine.low %v3033, %v3041
      %v3587 = vunpack.c.l.s4 1983009808
      %v3588 = vunpack.c.0.s8 %v3587
      %v3589 = vlaneseq
      %v3590 = vshrl.u32 %v3589, 7
      %v3591 = vsub.s32 %v3588, %v3590
      %v3592 = vrot.slane %v3584, %v3591
      %v3594 = vunpack.c.l.s4 1983009808
      %v3595 = vunpack.c.0.s8 %v3594
      %v3596 = vlaneseq
      %v3597 = vshrl.u32 %v3596, 7
      %v3598 = vsub.s32 %v3595, %v3597
      %v3599 = vrot.slane %v3585, %v3598
      %v3600 = vcombine.low %v3592, %v3599
      %v3601 = vcombine.low %v3040, %v3042
      %v3602 = vcombine.low %v3050, %v3058
      %v3604 = vunpack.c.l.s4 1983009808
      %v3605 = vunpack.c.0.s8 %v3604
      %v3606 = vlaneseq
      %v3607 = vshrl.u32 %v3606, 7
      %v3608 = vsub.s32 %v3605, %v3607
      %v3609 = vrot.slane %v3601, %v3608
      %v3611 = vunpack.c.l.s4 1983009808
      %v3612 = vunpack.c.0.s8 %v3611
      %v3613 = vlaneseq
      %v3614 = vshrl.u32 %v3613, 7
      %v3615 = vsub.s32 %v3612, %v3614
      %v3616 = vrot.slane %v3602, %v3615
      %v3617 = vcombine.low %v3609, %v3616
      %v3618 = vcombine.low %v3059, %v3067
      %v3619 = vcombine.low %v3075, %v3074
      %v3621 = vunpack.c.l.s4 1983009808
      %v3622 = vunpack.c.0.s8 %v3621
      %v3623 = vlaneseq
      %v3624 = vshrl.u32 %v3623, 7
      %v3625 = vsub.s32 %v3622, %v3624
      %v3626 = vrot.slane %v3618, %v3625
      %v3628 = vunpack.c.l.s4 1983009808
      %v3629 = vunpack.c.0.s8 %v3628
      %v3630 = vlaneseq
      %v3631 = vshrl.u32 %v3630, 7
      %v3632 = vsub.s32 %v3629, %v3631
      %v3633 = vrot.slane %v3619, %v3632
      %v3634 = vcombine.low %v3626, %v3633
      %v3635 = vcombine.low %v3076, %v3084
      %v3636 = vcombine.low %v3092, %v3091
      %v3638 = vunpack.c.l.s4 1983009808
      %v3639 = vunpack.c.0.s8 %v3638
      %v3640 = vlaneseq
      %v3641 = vshrl.u32 %v3640, 7
      %v3642 = vsub.s32 %v3639, %v3641
      %v3643 = vrot.slane %v3635, %v3642
      %v3645 = vunpack.c.l.s4 1983009808
      %v3646 = vunpack.c.0.s8 %v3645
      %v3647 = vlaneseq
      %v3648 = vshrl.u32 %v3647, 7
      %v3649 = vsub.s32 %v3646, %v3648
      %v3650 = vrot.slane %v3636, %v3649
      %v3651 = vcombine.low %v3643, %v3650
      %v3652 = vcombine.low %v3100, %v3108
      %v3653 = vcombine.low %v3107, %v3109
      %v3655 = vunpack.c.l.s4 1983009808
      %v3656 = vunpack.c.0.s8 %v3655
      %v3657 = vlaneseq
      %v3658 = vshrl.u32 %v3657, 7
      %v3659 = vsub.s32 %v3656, %v3658
      %v3660 = vrot.slane %v3652, %v3659
      %v3662 = vunpack.c.l.s4 1983009808
      %v3663 = vunpack.c.0.s8 %v3662
      %v3664 = vlaneseq
      %v3665 = vshrl.u32 %v3664, 7
      %v3666 = vsub.s32 %v3663, %v3665
      %v3667 = vrot.slane %v3653, %v3666
      %v3668 = vcombine.low %v3660, %v3667
      %v3669 = vcombine.low %v3117, %v3125
      %v3670 = vcombine.low %v3124, %v3126
      %v3672 = vunpack.c.l.s4 1983009808
      %v3673 = vunpack.c.0.s8 %v3672
      %v3674 = vlaneseq
      %v3675 = vshrl.u32 %v3674, 7
      %v3676 = vsub.s32 %v3673, %v3675
      %v3677 = vrot.slane %v3669, %v3676
      %v3679 = vunpack.c.l.s4 1983009808
      %v3680 = vunpack.c.0.s8 %v3679
      %v3681 = vlaneseq
      %v3682 = vshrl.u32 %v3681, 7
      %v3683 = vsub.s32 %v3680, %v3682
      %v3684 = vrot.slane %v3670, %v3683
      %v3685 = vcombine.low %v3677, %v3684
      %v3686 = vcombine.low %v3142, %v3141
      %v3687 = vcombine.low %v3143, %v3151
      %v3689 = vunpack.c.l.s4 1983009808
      %v3690 = vunpack.c.0.s8 %v3689
      %v3691 = vlaneseq
      %v3692 = vshrl.u32 %v3691, 7
      %v3693 = vsub.s32 %v3690, %v3692
      %v3694 = vrot.slane %v3686, %v3693
      %v3696 = vunpack.c.l.s4 1983009808
      %v3697 = vunpack.c.0.s8 %v3696
      %v3698 = vlaneseq
      %v3699 = vshrl.u32 %v3698, 7
      %v3700 = vsub.s32 %v3697, %v3699
      %v3701 = vrot.slane %v3687, %v3700
      %v3702 = vcombine.low %v3694, %v3701
      %v3703 = vcombine.low %v3159, %v3158
      %v3704 = vcombine.low %v3160, %v3168
      %v3706 = vunpack.c.l.s4 1983009808
      %v3707 = vunpack.c.0.s8 %v3706
      %v3708 = vlaneseq
      %v3709 = vshrl.u32 %v3708, 7
      %v3710 = vsub.s32 %v3707, %v3709
      %v3711 = vrot.slane %v3703, %v3710
      %v3713 = vunpack.c.l.s4 1983009808
      %v3714 = vunpack.c.0.s8 %v3713
      %v3715 = vlaneseq
      %v3716 = vshrl.u32 %v3715, 7
      %v3717 = vsub.s32 %v3714, %v3716
      %v3718 = vrot.slane %v3704, %v3717
      %v3719 = vcombine.low %v3711, %v3718
      %v3720 = vcombine.low %v3175, %v3176
      %v3721 = vcombine.low %v3184, %v3192
      %v3723 = vunpack.c.l.s4 1983009808
      %v3724 = vunpack.c.0.s8 %v3723
      %v3725 = vlaneseq
      %v3726 = vshrl.u32 %v3725, 7
      %v3727 = vsub.s32 %v3724, %v3726
      %v3728 = vrot.slane %v3720, %v3727
      %v3730 = vunpack.c.l.s4 1983009808
      %v3731 = vunpack.c.0.s8 %v3730
      %v3732 = vlaneseq
      %v3733 = vshrl.u32 %v3732, 7
      %v3734 = vsub.s32 %v3731, %v3733
      %v3735 = vrot.slane %v3721, %v3734
      %v3736 = vcombine.low %v3728, %v3735
      %v3737 = vcombine.low %v3191, %v3193
      %v3738 = vcombine.low %v3201, %v3209
      %v3740 = vunpack.c.l.s4 1983009808
      %v3741 = vunpack.c.0.s8 %v3740
      %v3742 = vlaneseq
      %v3743 = vshrl.u32 %v3742, 7
      %v3744 = vsub.s32 %v3741, %v3743
      %v3745 = vrot.slane %v3737, %v3744
      %v3747 = vunpack.c.l.s4 1983009808
      %v3748 = vunpack.c.0.s8 %v3747
      %v3749 = vlaneseq
      %v3750 = vshrl.u32 %v3749, 7
      %v3751 = vsub.s32 %v3748, %v3750
      %v3752 = vrot.slane %v3738, %v3751
      %v3753 = vcombine.low %v3745, %v3752
      %v3754 = vcombine.low %v3210, %v3218
      %v3755 = vcombine.low %v3226, %v3225
      %v3757 = vunpack.c.l.s4 1983009808
      %v3758 = vunpack.c.0.s8 %v3757
      %v3759 = vlaneseq
      %v3760 = vshrl.u32 %v3759, 7
      %v3761 = vsub.s32 %v3758, %v3760
      %v3762 = vrot.slane %v3754, %v3761
      %v3764 = vunpack.c.l.s4 1983009808
      %v3765 = vunpack.c.0.s8 %v3764
      %v3766 = vlaneseq
      %v3767 = vshrl.u32 %v3766, 7
      %v3768 = vsub.s32 %v3765, %v3767
      %v3769 = vrot.slane %v3755, %v3768
      %v3770 = vcombine.low %v3762, %v3769
      %v3771 = vcombine.low %v3227, %v3235
      %v3772 = vcombine.low %v3243, %v3242
      %v3774 = vunpack.c.l.s4 1983009808
      %v3775 = vunpack.c.0.s8 %v3774
      %v3776 = vlaneseq
      %v3777 = vshrl.u32 %v3776, 7
      %v3778 = vsub.s32 %v3775, %v3777
      %v3779 = vrot.slane %v3771, %v3778
      %v3781 = vunpack.c.l.s4 1983009808
      %v3782 = vunpack.c.0.s8 %v3781
      %v3783 = vlaneseq
      %v3784 = vshrl.u32 %v3783, 7
      %v3785 = vsub.s32 %v3782, %v3784
      %v3786 = vrot.slane %v3772, %v3785
      %v3787 = vcombine.low %v3779, %v3786
      %3820 = vst.msk [vmem:[%s197] sm:$0xff] %vm340, %v3260
      %3821 = vst.msk [vmem:[%s197 + $0x8] sm:$0xff] %vm340, %v3277
      %3822 = vst.msk [vmem:[%s197 + $0x10] sm:$0xff] %vm340, %v3294
      %3823 = vst.msk [vmem:[%s197 + $0x18] sm:$0xff] %vm340, %v3311
      %3824 = vst.msk [vmem:[%s197 + $0x20] sm:$0xff] %vm340, %v3328
      %3825 = vst.msk [vmem:[%s197 + $0x28] sm:$0xff] %vm340, %v3345
      %3826 = vst.msk [vmem:[%s197 + $0x30] sm:$0xff] %vm340, %v3362
      %3827 = vst.msk [vmem:[%s197 + $0x38] sm:$0xff] %vm340, %v3379
      %3828 = vst.msk [vmem:[%s197 + $0x40] sm:$0xff] %vm340, %v3396
      %3829 = vst.msk [vmem:[%s197 + $0x48] sm:$0xff] %vm340, %v3413
      %3830 = vst.msk [vmem:[%s197 + $0x50] sm:$0xff] %vm340, %v3430
      %3831 = vst.msk [vmem:[%s197 + $0x58] sm:$0xff] %vm340, %v3447
      %3832 = vst.msk [vmem:[%s197 + $0x60] sm:$0xff] %vm340, %v3464
      %3833 = vst.msk [vmem:[%s197 + $0x68] sm:$0xff] %vm340, %v3481
      %3834 = vst.msk [vmem:[%s197 + $0x70] sm:$0xff] %vm340, %v3498
      %3835 = vst.msk [vmem:[%s197 + $0x78] sm:$0xff] %vm340, %v3515
      %3836 = vst.msk [vmem:[%s197 + $0x80] sm:$0xff] %vm340, %v3532
      %3837 = vst.msk [vmem:[%s197 + $0x88] sm:$0xff] %vm340, %v3549
      %3838 = vst.msk [vmem:[%s197 + $0x90] sm:$0xff] %vm340, %v3566
      %3839 = vst.msk [vmem:[%s197 + $0x98] sm:$0xff] %vm340, %v3583
      %3840 = vst.msk [vmem:[%s197 + $0xa0] sm:$0xff] %vm340, %v3600
      %3841 = vst.msk [vmem:[%s197 + $0xa8] sm:$0xff] %vm340, %v3617
      %3842 = vst.msk [vmem:[%s197 + $0xb0] sm:$0xff] %vm340, %v3634
      %3843 = vst.msk [vmem:[%s197 + $0xb8] sm:$0xff] %vm340, %v3651
      %3844 = vst.msk [vmem:[%s197 + $0xc0] sm:$0xff] %vm340, %v3668
      %3845 = vst.msk [vmem:[%s197 + $0xc8] sm:$0xff] %vm340, %v3685
      %3846 = vst.msk [vmem:[%s197 + $0xd0] sm:$0xff] %vm340, %v3702
      %3847 = vst.msk [vmem:[%s197 + $0xd8] sm:$0xff] %vm340, %v3719
      %3848 = vst.msk [vmem:[%s197 + $0xe0] sm:$0xff] %vm340, %v3736
      %3849 = vst.msk [vmem:[%s197 + $0xe8] sm:$0xff] %vm340, %v3753
      %3850 = vst.msk [vmem:[%s197 + $0xf0] sm:$0xff] %vm340, %v3770
      %3851 = vst.msk [vmem:[%s197 + $0xf8] sm:$0xff] %vm340, %v3787
      %p3852 = scmp.lt.s32.totalorder %s15, 1
      %s3853 = scalar_select %p3852, %s15, 1
      %s3854 = smul.addr %s3853, 32
      %s3855 = smul.addr %s3854, 8
      %s3856 = scalar_lea.vmem %s4, %s3855
      // Predicated region
      $region37: #{identity_block.5} parent=35 // pred_check
        %p3857 = pneg %p122
      $region38: #{identity_block.5} parent=35 // pred_check_branch
        %3859 = sbr.rel (%p3857) target = $region40
      $region39: #{identity_block.5} parent=35 // pred_region
        _
      $region40: #{identity_block.5} parent=35 // pred_fallthru
        _
    $region36: #{identity_block.5} parent=5 // pred_fallthru
      _
    %p3860 = scmp.le.s32.totalorder 2, %s10
    // Predicated region
    $region41: #{identity_block.5} parent=5 // pred_check
      %p3861 = pneg %p3860
    $region42: #{identity_block.5} parent=5 // pred_check_branch
      %3863 = sbr.rel (%p3861) target = $region44
    $region43: #{identity_block.5} parent=5 // pred_region
      %s3864 = ssub.s32 %s10, 2
      // Predicated region
      $region45: #{identity_block.5} parent=43 // pred_check
        %p3865 = pneg %p128
      $region46: #{identity_block.5} parent=43 // pred_check_branch
        %3867 = sbr.rel (%p3865) target = $region48
      $region47: #{identity_block.5} parent=43 // pred_region
        %p3868 = scmp.lt.s32.totalorder %s16, 1
        %s3869 = scalar_select %p3868, %s16, 1
        %s3870 = smul.addr %s3869, 32
        %s3871 = smul.addr %s3870, 8
        %s3872 = scalar_lea.vmem %s4, %s3871
      $region48: #{identity_block.5} parent=43 // pred_fallthru
        _
    $region44: #{identity_block.5} parent=5 // pred_fallthru
      _
  $region6: #{identity_block.5} parent=0 // loop_footer
    %s14 = sadd.s32 1, %s10
  $region7: #{identity_block.5} parent=0 // loop_footer_branch
    %9 = sbr.rel target = $region3
  $region8: #{identity_block.5} parent=0 // loop_exit
    _

</llo_original>
